<compile_context>
chip_gen: v6e
topology: v6e:2x2x1
jax: 0.10.0
libtpu: 0.0.40
codegen_flags: <defaults>
</compile_context>

<pallas_src>
import functools

import jax
import jax.numpy as jnp
import numpy as np
from jax import lax
from jax.experimental import pallas as pl
from jax.experimental.pallas import tpu as pltpu


# ----------------------------- Pallas kernels --------------------------------

def _down_up_stats_kernel(x_ref, wd_ref, wu_ref, u_ref, stats_ref,
                          dp_ref, slab_ref, *, oh, ow, cin, inner, outer):
    """Per image: LeakyReLU+Conv2d(4,2,1) -> ReLU+ConvTranspose2d(4,2,1) -> BN stats.

    x_ref    : (1, oh+1, ow+1, 4*cin) f32  parity-packed, zero-padded input
               x_ref[0, i, j, (2r+s)*cin + c] == pad(x)[2i+r, 2j+s, c]
    wd_ref   : (4, 4*cin, inner)  bf16  down weights per tap (a,b):
               wd_ref[2a+b, (2r+s)*cin + ci, co] == w_down[co, ci, 2a+r, 2b+s]
    wu_ref   : (4, 4*inner, outer) bf16  up weights per output phase (ry,rx):
               wu_ref[2ry+rx, (2a+b)*inner + ci, co] == w_up[ci, co, 3-ry-2a, 3-rx-2b]
    u_ref    : (1, 2, 2, oh, ow, outer) f32  un-normalized up output, phase-split
    stats_ref: (1, 2, outer) f32  per-image [sum; sumsq] partials (reduced in XLA)
    dp_ref   : VMEM (oh+2, ow+2, inner) bf16  zero-padded ReLU(down) activation
    slab_ref : VMEM (oh*ow, 4*inner)   bf16  per-phase up-conv LHS slab
    """
    # LeakyReLU(0.2) exactly once per input element; single cast to bf16 (MXU).
    lx = x_ref[0]                                           # (oh+1, ow+1, 4*cin)
    lx = jnp.where(lx > 0, lx, 0.2 * lx).astype(jnp.bfloat16)

    # ---- down conv: 4 accumulated matmuls, K = 4*cin (taps (a,b)) ------------
    d = jnp.zeros((oh * ow, inner), jnp.float32)
    for a in range(2):
        for b in range(2):
            patch = lx[a:a + oh, b:b + ow, :].reshape(oh * ow, 4 * cin)
            d = d + jnp.dot(patch, wd_ref[2 * a + b],
                            preferred_element_type=jnp.float32)

    # ---- ReLU into the zero-padded VMEM scratch --------------------------------
    # Only the 1-pixel border is cleared (interior is fully overwritten below);
    # done every step so the "parallel" batch axis stays safe on multi-core parts.
    zrow = jnp.zeros((1, ow + 2, inner), jnp.bfloat16)
    zcol = jnp.zeros((oh, 1, inner), jnp.bfloat16)
    dp_ref[0:1, :, :] = zrow
    dp_ref[oh + 1:oh + 2, :, :] = zrow
    dp_ref[1:oh + 1, 0:1, :] = zcol
    dp_ref[1:oh + 1, ow + 1:ow + 2, :] = zcol
    dp_ref[1:oh + 1, 1:ow + 1, :] = (
        jnp.maximum(d, 0.0).astype(jnp.bfloat16).reshape(oh, ow, inner))

    # ---- up conv: 4 output-parity phases, one matmul each, K = 4*inner ---------
    sum_c = jnp.zeros((1, outer), jnp.float32)
    ssq_c = jnp.zeros((1, outer), jnp.float32)
    for ry in range(2):
        for rx in range(2):
            for a in range(2):
                for b in range(2):
                    t = 2 * a + b
                    slab_ref[:, t * inner:(t + 1) * inner] = (
                        dp_ref[ry + a:ry + a + oh, rx + b:rx + b + ow, :]
                        .reshape(oh * ow, inner))
            acc = jnp.dot(slab_ref[...], wu_ref[2 * ry + rx],
                          preferred_element_type=jnp.float32)      # (oh*ow, outer)
            u_ref[0, ry, rx] = acc.reshape(oh, ow, outer)
            sum_c = sum_c + jnp.sum(acc, axis=0, keepdims=True)
            ssq_c = ssq_c + jnp.sum(acc * acc, axis=0, keepdims=True)

    # per-image partial BatchNorm statistics (no cross-grid accumulator)
    stats_ref[0, 0:1, :] = sum_c
    stats_ref[0, 1:2, :] = ssq_c


def _bn_apply_kernel(u_ref, scale_ref, shift_ref, o_ref):
    """BatchNorm affine apply: pure FMA (scale/shift precomputed outside)."""
    o_ref[...] = u_ref[...] * scale_ref[...] + shift_ref[...]


# ------------------------------- forward pass ---------------------------------

def unet_innermost_forward(x_nchw, params, *, eps=1e-5):
    w_down, w_up = params["w_down"], params["w_up"]   # (inner,cin,4,4) / (inner,outer,4,4)
    gamma, beta = params["gamma"], params["beta"]
    N, cin, H, W = x_nchw.shape
    inner = w_down.shape[0]
    outer = w_up.shape[1]
    assert H % 2 == 0 and W % 2 == 0 and w_down.shape[2:] == (4, 4)
    assert cin == outer, "innermost block with input_nc=None => input_nc == outer_nc"
    oh, ow = H // 2, W // 2

    x_nchw = x_nchw.astype(jnp.float32)

    # ------------- XLA layout prep (1x-data shuffle + tiny weight reshapes) -------------
    # parity-packed padded input: x_pack[n,i,j,(2r+s)*cin+c] = pad(x)[n,c,2i+r,2j+s]
    xpad = jnp.pad(x_nchw, ((0, 0), (0, 0), (1, 1), (1, 1)))
    x_pack = jnp.transpose(
        xpad.reshape(N, cin, oh + 1, 2, ow + 1, 2),
        (0, 2, 4, 3, 5, 1)).reshape(N, oh + 1, ow + 1, 4 * cin)

    # down weights: wd_taps[2a+b, (2r+s)*cin+ci, co] = w_down[co, ci, 2a+r, 2b+s]
    wd = jnp.transpose(w_down, (2, 3, 1, 0)).reshape(2, 2, 2, 2, cin, inner)   # (a,r,b,s,ci,co)
    wd_taps = jnp.transpose(wd, (0, 2, 1, 3, 4, 5)).reshape(
        4, 4 * cin, inner).astype(jnp.bfloat16)

    # up weights: wu_taps[2ry+rx, (2a+b)*inner+ci, co] = w_up[ci, co, 3-ry-2a, 3-rx-2b]
    wu = jnp.transpose(w_up, (2, 3, 0, 1))[::-1, ::-1].reshape(
        2, 2, 2, 2, inner, outer)                                              # (a,ry,b,rx,ci,co)
    wu_taps = jnp.transpose(wu, (1, 3, 0, 2, 4, 5)).reshape(
        4, 4 * inner, outer).astype(jnp.bfloat16)

    # ------------- kernel 1: fused down + up (phases) + per-image BN partials -------------
    flops = (2 * N * oh * ow * (16 * cin) * inner
             + 2 * N * 4 * oh * ow * (4 * inner) * outer)
    bytes_accessed = int(4 * x_pack.size + 2 * wd_taps.size + 2 * wu_taps.size
                         + 4 * N * 4 * oh * ow * outer + 4 * N * 2 * outer)
    u_phases, stats_part = pl.pallas_call(
        functools.partial(_down_up_stats_kernel, oh=oh, ow=ow, cin=cin,
                          inner=inner, outer=outer),
        out_shape=(jax.ShapeDtypeStruct((N, 2, 2, oh, ow, outer), jnp.float32),
                   jax.ShapeDtypeStruct((N, 2, outer), jnp.float32)),
        grid=(N,),
        in_specs=[
            pl.BlockSpec((1, oh + 1, ow + 1, 4 * cin), lambda n: (n, 0, 0, 0)),
            pl.BlockSpec((4, 4 * cin, inner), lambda n: (0, 0, 0)),
            pl.BlockSpec((4, 4 * inner, outer), lambda n: (0, 0, 0)),
        ],
        out_specs=(
            pl.BlockSpec((1, 2, 2, oh, ow, outer), lambda n: (n, 0, 0, 0, 0, 0)),
            pl.BlockSpec((1, 2, outer), lambda n: (n, 0, 0)),
        ),
        scratch_shapes=[pltpu.VMEM((oh + 2, ow + 2, inner), jnp.bfloat16),
                        pltpu.VMEM((oh * ow, 4 * inner), jnp.bfloat16)],
        compiler_params=pltpu.CompilerParams(
            dimension_semantics=("parallel",),
            vmem_limit_bytes=48 * 1024 * 1024),
        cost_estimate=pl.CostEstimate(flops=flops, transcendentals=0,
                                      bytes_accessed=bytes_accessed),
    )(x_pack, wd_taps, wu_taps)

    # ------------- BatchNorm batch statistics -> scale/shift (tiny XLA op) -------------
    count = float(N * H * W)
    stats = jnp.sum(stats_part, axis=0)                      # (2, outer)
    mean = stats[0] / count
    var = jnp.maximum(stats[1] / count - mean * mean, 0.0)   # clamp: stable rsqrt
    scale = gamma.astype(jnp.float32) * lax.rsqrt(var + eps)
    shift = beta.astype(jnp.float32) - mean * scale

    # ------------- kernel 2: BatchNorm apply (pure FMA over phase-split output) -------------
    bn_phases = pl.pallas_call(
        _bn_apply_kernel,
        out_shape=jax.ShapeDtypeStruct((N, 2, 2, oh, ow, outer), jnp.float32),
        grid=(N,),
        in_specs=[
            pl.BlockSpec((1, 2, 2, oh, ow, outer), lambda n: (n, 0, 0, 0, 0, 0)),
            pl.BlockSpec((1, outer), lambda n: (0, 0)),
            pl.BlockSpec((1, outer), lambda n: (0, 0)),
        ],
        out_specs=pl.BlockSpec((1, 2, 2, oh, ow, outer), lambda n: (n, 0, 0, 0, 0, 0)),
        compiler_params=pltpu.CompilerParams(
            dimension_semantics=("parallel",),
            vmem_limit_bytes=48 * 1024 * 1024),
    )(u_phases, scale.reshape(1, outer), shift.reshape(1, outer))

    # single fused XLA layout pass: phase interleave + NHWC->NCHW + skip concat.
    # out[n, c, 2oy+ry, 2ox+rx] = bn_phases[n, ry, rx, oy, ox, c]
    model_nchw = jnp.transpose(bn_phases, (0, 5, 3, 1, 4, 2)).reshape(N, outer, H, W)
    return jnp.concatenate([x_nchw, model_nchw], axis=1)


# --------------------------- pure-JAX reference --------------------------------

def reference_forward(x_nchw, params):
    w_down, w_up = params["w_down"], params["w_up"]
    gamma, beta = params["gamma"], params["beta"]
    h = jnp.where(x_nchw > 0, x_nchw, 0.2 * x_nchw)
    d = lax.conv_general_dilated(h, w_down, (2, 2), ((1, 1), (1, 1)),
                                 dimension_numbers=("NCHW", "OIHW", "NCHW"))
    r = jnp.maximum(d, 0.0)
    wf = jnp.transpose(w_up[:, :, ::-1, ::-1], (1, 0, 2, 3))
    u = lax.conv_general_dilated(r, wf, (1, 1), ((2, 2), (2, 2)),
                                 lhs_dilation=(2, 2),
                                 dimension_numbers=("NCHW", "OIHW", "NCHW"))
    mean = jnp.mean(u, axis=(0, 2, 3), keepdims=True)
    var = jnp.mean((u - mean) ** 2, axis=(0, 2, 3), keepdims=True)
    un = (u - mean) * lax.rsqrt(var + 1e-5) * gamma.reshape(1, -1, 1, 1) \
        + beta.reshape(1, -1, 1, 1)
    return jnp.concatenate([x_nchw, un], axis=1)


# ----------------------------------- main --------------------------------------

if __name__ == "__main__":
    # innermost block: outer_nc = input_nc = 4, inner_nc = 8
    outer_nc, inner_nc = 4, 8
    N, H, W = 2, 16, 16

    key = jax.random.PRNGKey(0)
    kx, kd, ku = jax.random.split(key, 3)
    x = jax.random.normal(kx, (N, outer_nc, H, W), jnp.float32)

    params = {
        # Conv2d weight: (out_ch, in_ch, kH, kW)
        "w_down": 0.05 * jax.random.normal(kd, (inner_nc, outer_nc, 4, 4), jnp.float32),
        # ConvTranspose2d weight: (in_ch, out_ch, kH, kW)
        "w_up": 0.05 * jax.random.normal(ku, (inner_nc, outer_nc, 4, 4), jnp.float32),
        # BatchNorm2d default init
        "gamma": jnp.ones((outer_nc,), jnp.float32),
        "beta": jnp.zeros((outer_nc,), jnp.float32),
    }

    out = jax.block_until_ready(jax.jit(unet_innermost_forward)(x, params))
    ref = jax.block_until_ready(reference_forward(x, params))

    assert out.shape == (N, 2 * outer_nc, H, W), out.shape
    # bf16 MXU operands (per perf review) -> tolerances sized for bf16 rounding;
    # layout / indexing bugs would show up as O(1) errors, far above this.
    np.testing.assert_allclose(np.asarray(out), np.asarray(ref), rtol=5e-2, atol=5e-2)
    rel_l2 = float(jnp.linalg.norm(out - ref) / jnp.linalg.norm(ref))
    assert rel_l2 < 3e-2, rel_l2
    print("KERNEL_OK")
</pallas_src>

<mosaic_0001>
module attributes {stable_mosaic.version = 11 : i64} {
  func.func @_down_up_stats_kernel(%arg0: i32, %arg1: memref<1x9x9x16xf32, #tpu.memory_space<vmem>>, %arg2: memref<4x16x8xbf16, #tpu.memory_space<vmem>>, %arg3: memref<4x32x4xbf16, #tpu.memory_space<vmem>>, %arg4: memref<1x2x2x8x8x4xf32, #tpu.memory_space<vmem>>, %arg5: memref<1x2x4xf32, #tpu.memory_space<vmem>>, %arg6: memref<10x10x8xbf16, #tpu.memory_space<vmem>>, %arg7: memref<64x32xbf16, #tpu.memory_space<vmem>>) attributes {dimension_semantics = [#tpu.dimension_semantics<parallel>], iteration_bounds = array<i64: 2>, scalar_prefetch = 0 : i64, scratch_operands = 2 : i64, tpu.core_type = #tpu.core_type<tc>, window_params = [{transform_indices = @transform_0, window_bounds = array<i64: 1, 9, 9, 16>}, {pipeline_mode = #tpu.pipeline_mode<synchronous>, transform_indices = @transform_1, window_bounds = array<i64: 4, 16, 8>}, {pipeline_mode = #tpu.pipeline_mode<synchronous>, transform_indices = @transform_2, window_bounds = array<i64: 4, 32, 4>}, {transform_indices = @transform_3, window_bounds = array<i64: 1, 2, 2, 8, 8, 4>}, {transform_indices = @transform_4, window_bounds = array<i64: 1, 2, 4>}]} {
    %c0 = arith.constant 0 : index
    %c0_0 = arith.constant 0 : index
    %c0_1 = arith.constant 0 : index
    %c0_2 = arith.constant 0 : index
    %0 = vector.load %arg1[%c0, %c0_0, %c0_1, %c0_2] : memref<1x9x9x16xf32, #tpu.memory_space<vmem>>, vector<1x9x9x16xf32>
    %1 = vector.shape_cast %0 : vector<1x9x9x16xf32> to vector<9x9x16xf32>
    %cst = arith.constant 0.000000e+00 : f32
    %2 = vector.broadcast %cst : f32 to vector<9x9x16xf32>
    %3 = arith.cmpf ogt, %1, %2 : vector<9x9x16xf32>
    %cst_3 = arith.constant 2.000000e-01 : f32
    %4 = vector.broadcast %cst_3 : f32 to vector<9x9x16xf32>
    %5 = arith.mulf %4, %1 : vector<9x9x16xf32>
    %6 = arith.select %3, %1, %5 : vector<9x9x16xi1>, vector<9x9x16xf32>
    %7 = arith.truncf %6 : vector<9x9x16xf32> to vector<9x9x16xbf16>
    %cst_4 = arith.constant 0.000000e+00 : f32
    %8 = vector.broadcast %cst_4 : f32 to vector<64x8xf32>
    %9 = vector.extract_strided_slice %7 {offsets = [0, 0, 0], sizes = [8, 8, 16], strides = [1, 1, 1]} : vector<9x9x16xbf16> to vector<8x8x16xbf16>
    %10 = vector.shape_cast %9 : vector<8x8x16xbf16> to vector<64x16xbf16>
    %c0_5 = arith.constant 0 : index
    %c0_6 = arith.constant 0 : index
    %c0_7 = arith.constant 0 : index
    %11 = vector.load %arg2[%c0_5, %c0_6, %c0_7] : memref<4x16x8xbf16, #tpu.memory_space<vmem>>, vector<1x16x8xbf16>
    %12 = vector.shape_cast %11 : vector<1x16x8xbf16> to vector<16x8xbf16>
    %cst_8 = arith.constant dense<0.000000e+00> : vector<64x8xf32>
    %13 = tpu.matmul %10, %12, %cst_8 {dimension_numbers = #tpu.dot_dimension_numbers<[1], [0], [0], [1], [0, 0, 1, 1], [], []>} : vector<64x16xbf16>, vector<16x8xbf16>, vector<64x8xf32> -> vector<64x8xf32>
    %14 = arith.addf %8, %13 : vector<64x8xf32>
    %15 = vector.extract_strided_slice %7 {offsets = [0, 1, 0], sizes = [8, 8, 16], strides = [1, 1, 1]} : vector<9x9x16xbf16> to vector<8x8x16xbf16>
    %16 = vector.shape_cast %15 : vector<8x8x16xbf16> to vector<64x16xbf16>
    %c1 = arith.constant 1 : index
    %c0_9 = arith.constant 0 : index
    %c0_10 = arith.constant 0 : index
    %17 = vector.load %arg2[%c1, %c0_9, %c0_10] : memref<4x16x8xbf16, #tpu.memory_space<vmem>>, vector<1x16x8xbf16>
    %18 = vector.shape_cast %17 : vector<1x16x8xbf16> to vector<16x8xbf16>
    %cst_11 = arith.constant dense<0.000000e+00> : vector<64x8xf32>
    %19 = tpu.matmul %16, %18, %cst_11 {dimension_numbers = #tpu.dot_dimension_numbers<[1], [0], [0], [1], [0, 0, 1, 1], [], []>} : vector<64x16xbf16>, vector<16x8xbf16>, vector<64x8xf32> -> vector<64x8xf32>
    %20 = arith.addf %14, %19 : vector<64x8xf32>
    %21 = vector.extract_strided_slice %7 {offsets = [1, 0, 0], sizes = [8, 8, 16], strides = [1, 1, 1]} : vector<9x9x16xbf16> to vector<8x8x16xbf16>
    %22 = vector.shape_cast %21 : vector<8x8x16xbf16> to vector<64x16xbf16>
    %c2 = arith.constant 2 : index
    %c0_12 = arith.constant 0 : index
    %c0_13 = arith.constant 0 : index
    %23 = vector.load %arg2[%c2, %c0_12, %c0_13] : memref<4x16x8xbf16, #tpu.memory_space<vmem>>, vector<1x16x8xbf16>
    %24 = vector.shape_cast %23 : vector<1x16x8xbf16> to vector<16x8xbf16>
    %cst_14 = arith.constant dense<0.000000e+00> : vector<64x8xf32>
    %25 = tpu.matmul %22, %24, %cst_14 {dimension_numbers = #tpu.dot_dimension_numbers<[1], [0], [0], [1], [0, 0, 1, 1], [], []>} : vector<64x16xbf16>, vector<16x8xbf16>, vector<64x8xf32> -> vector<64x8xf32>
    %26 = arith.addf %20, %25 : vector<64x8xf32>
    %27 = vector.extract_strided_slice %7 {offsets = [1, 1, 0], sizes = [8, 8, 16], strides = [1, 1, 1]} : vector<9x9x16xbf16> to vector<8x8x16xbf16>
    %28 = vector.shape_cast %27 : vector<8x8x16xbf16> to vector<64x16xbf16>
    %c3 = arith.constant 3 : index
    %c0_15 = arith.constant 0 : index
    %c0_16 = arith.constant 0 : index
    %29 = vector.load %arg2[%c3, %c0_15, %c0_16] : memref<4x16x8xbf16, #tpu.memory_space<vmem>>, vector<1x16x8xbf16>
    %30 = vector.shape_cast %29 : vector<1x16x8xbf16> to vector<16x8xbf16>
    %cst_17 = arith.constant dense<0.000000e+00> : vector<64x8xf32>
    %31 = tpu.matmul %28, %30, %cst_17 {dimension_numbers = #tpu.dot_dimension_numbers<[1], [0], [0], [1], [0, 0, 1, 1], [], []>} : vector<64x16xbf16>, vector<16x8xbf16>, vector<64x8xf32> -> vector<64x8xf32>
    %32 = arith.addf %26, %31 : vector<64x8xf32>
    %cst_18 = arith.constant 0.000000e+00 : bf16
    %33 = vector.broadcast %cst_18 : bf16 to vector<1x10x8xbf16>
    %cst_19 = arith.constant 0.000000e+00 : bf16
    %34 = vector.broadcast %cst_19 : bf16 to vector<8x1x8xbf16>
    %c0_20 = arith.constant 0 : index
    %c0_21 = arith.constant 0 : index
    %c0_22 = arith.constant 0 : index
    %35 = vector.load %arg6[%c0_20, %c0_21, %c0_22] : memref<10x10x8xbf16, #tpu.memory_space<vmem>>, vector<1x10x8xbf16>
    tpu.vector_store %arg6[%c0_20, %c0_21, %c0_22], %33 {strides = array<i32>} : memref<10x10x8xbf16, #tpu.memory_space<vmem>>, vector<1x10x8xbf16>,
    %c9 = arith.constant 9 : index
    %c0_23 = arith.constant 0 : index
    %c0_24 = arith.constant 0 : index
    %36 = vector.load %arg6[%c9, %c0_23, %c0_24] : memref<10x10x8xbf16, #tpu.memory_space<vmem>>, vector<1x10x8xbf16>
    tpu.vector_store %arg6[%c9, %c0_23, %c0_24], %33 {strides = array<i32>} : memref<10x10x8xbf16, #tpu.memory_space<vmem>>, vector<1x10x8xbf16>,
    %c1_25 = arith.constant 1 : index
    %c0_26 = arith.constant 0 : index
    %c0_27 = arith.constant 0 : index
    %37 = vector.load %arg6[%c1_25, %c0_26, %c0_27] : memref<10x10x8xbf16, #tpu.memory_space<vmem>>, vector<8x1x8xbf16>
    tpu.vector_store %arg6[%c1_25, %c0_26, %c0_27], %34 {strides = array<i32>} : memref<10x10x8xbf16, #tpu.memory_space<vmem>>, vector<8x1x8xbf16>,
    %c1_28 = arith.constant 1 : index
    %c9_29 = arith.constant 9 : index
    %c0_30 = arith.constant 0 : index
    %38 = vector.load %arg6[%c1_28, %c9_29, %c0_30] : memref<10x10x8xbf16, #tpu.memory_space<vmem>>, vector<8x1x8xbf16>
    tpu.vector_store %arg6[%c1_28, %c9_29, %c0_30], %34 {strides = array<i32>} : memref<10x10x8xbf16, #tpu.memory_space<vmem>>, vector<8x1x8xbf16>,
    %cst_31 = arith.constant 0.000000e+00 : f32
    %39 = vector.broadcast %cst_31 : f32 to vector<64x8xf32>
    %40 = arith.maximumf %32, %39 : vector<64x8xf32>
    %41 = arith.truncf %40 : vector<64x8xf32> to vector<64x8xbf16>
    %42 = vector.shape_cast %41 : vector<64x8xbf16> to vector<8x8x8xbf16>
    %c1_32 = arith.constant 1 : index
    %c1_33 = arith.constant 1 : index
    %c0_34 = arith.constant 0 : index
    %43 = vector.load %arg6[%c1_32, %c1_33, %c0_34] : memref<10x10x8xbf16, #tpu.memory_space<vmem>>, vector<8x8x8xbf16>
    tpu.vector_store %arg6[%c1_32, %c1_33, %c0_34], %42 {strides = array<i32>} : memref<10x10x8xbf16, #tpu.memory_space<vmem>>, vector<8x8x8xbf16>,
    %cst_35 = arith.constant 0.000000e+00 : f32
    %44 = vector.broadcast %cst_35 : f32 to vector<1x4xf32>
    %cst_36 = arith.constant 0.000000e+00 : f32
    %45 = vector.broadcast %cst_36 : f32 to vector<1x4xf32>
    %c0_37 = arith.constant 0 : index
    %c0_38 = arith.constant 0 : index
    %c0_39 = arith.constant 0 : index
    %46 = vector.load %arg6[%c0_37, %c0_38, %c0_39] : memref<10x10x8xbf16, #tpu.memory_space<vmem>>, vector<8x8x8xbf16>
    %47 = vector.shape_cast %46 : vector<8x8x8xbf16> to vector<64x8xbf16>
    %c0_40 = arith.constant 0 : index
    %c0_41 = arith.constant 0 : index
    %48 = vector.load %arg7[%c0_40, %c0_41] : memref<64x32xbf16, #tpu.memory_space<vmem>>, vector<64x8xbf16>
    tpu.vector_store %arg7[%c0_40, %c0_41], %47 {strides = array<i32>} : memref<64x32xbf16, #tpu.memory_space<vmem>>, vector<64x8xbf16>,
    %c0_42 = arith.constant 0 : index
    %c1_43 = arith.constant 1 : index
    %c0_44 = arith.constant 0 : index
    %49 = vector.load %arg6[%c0_42, %c1_43, %c0_44] : memref<10x10x8xbf16, #tpu.memory_space<vmem>>, vector<8x8x8xbf16>
    %50 = vector.shape_cast %49 : vector<8x8x8xbf16> to vector<64x8xbf16>
    %c0_45 = arith.constant 0 : index
    %c8 = arith.constant 8 : index
    %51 = vector.load %arg7[%c0_45, %c8] : memref<64x32xbf16, #tpu.memory_space<vmem>>, vector<64x8xbf16>
    tpu.vector_store %arg7[%c0_45, %c8], %50 {strides = array<i32>} : memref<64x32xbf16, #tpu.memory_space<vmem>>, vector<64x8xbf16>,
    %c1_46 = arith.constant 1 : index
    %c0_47 = arith.constant 0 : index
    %c0_48 = arith.constant 0 : index
    %52 = vector.load %arg6[%c1_46, %c0_47, %c0_48] : memref<10x10x8xbf16, #tpu.memory_space<vmem>>, vector<8x8x8xbf16>
    %53 = vector.shape_cast %52 : vector<8x8x8xbf16> to vector<64x8xbf16>
    %c0_49 = arith.constant 0 : index
    %c16 = arith.constant 16 : index
    %54 = vector.load %arg7[%c0_49, %c16] : memref<64x32xbf16, #tpu.memory_space<vmem>>, vector<64x8xbf16>
    tpu.vector_store %arg7[%c0_49, %c16], %53 {strides = array<i32>} : memref<64x32xbf16, #tpu.memory_space<vmem>>, vector<64x8xbf16>,
    %c1_50 = arith.constant 1 : index
    %c1_51 = arith.constant 1 : index
    %c0_52 = arith.constant 0 : index
    %55 = vector.load %arg6[%c1_50, %c1_51, %c0_52] : memref<10x10x8xbf16, #tpu.memory_space<vmem>>, vector<8x8x8xbf16>
    %56 = vector.shape_cast %55 : vector<8x8x8xbf16> to vector<64x8xbf16>
    %c0_53 = arith.constant 0 : index
    %c24 = arith.constant 24 : index
    %57 = vector.load %arg7[%c0_53, %c24] : memref<64x32xbf16, #tpu.memory_space<vmem>>, vector<64x8xbf16>
    tpu.vector_store %arg7[%c0_53, %c24], %56 {strides = array<i32>} : memref<64x32xbf16, #tpu.memory_space<vmem>>, vector<64x8xbf16>,
    %c0_54 = arith.constant 0 : index
    %c0_55 = arith.constant 0 : index
    %58 = vector.load %arg7[%c0_54, %c0_55] : memref<64x32xbf16, #tpu.memory_space<vmem>>, vector<64x32xbf16>
    %c0_56 = arith.constant 0 : index
    %c0_57 = arith.constant 0 : index
    %c0_58 = arith.constant 0 : index
    %59 = vector.load %arg3[%c0_56, %c0_57, %c0_58] : memref<4x32x4xbf16, #tpu.memory_space<vmem>>, vector<1x32x4xbf16>
    %60 = vector.shape_cast %59 : vector<1x32x4xbf16> to vector<32x4xbf16>
    %cst_59 = arith.constant dense<0.000000e+00> : vector<64x4xf32>
    %61 = tpu.matmul %58, %60, %cst_59 {dimension_numbers = #tpu.dot_dimension_numbers<[1], [0], [0], [1], [0, 0, 1, 1], [], []>} : vector<64x32xbf16>, vector<32x4xbf16>, vector<64x4xf32> -> vector<64x4xf32>
    %62 = vector.shape_cast %61 : vector<64x4xf32> to vector<8x8x4xf32>
    %c0_60 = arith.constant 0 : index
    %c0_61 = arith.constant 0 : index
    %c0_62 = arith.constant 0 : index
    %c0_63 = arith.constant 0 : index
    %c0_64 = arith.constant 0 : index
    %c0_65 = arith.constant 0 : index
    %63 = vector.load %arg4[%c0_60, %c0_61, %c0_62, %c0_63, %c0_64, %c0_65] : memref<1x2x2x8x8x4xf32, #tpu.memory_space<vmem>>, vector<1x1x1x8x8x4xf32>
    %64 = vector.shape_cast %63 : vector<1x1x1x8x8x4xf32> to vector<8x8x4xf32>
    %65 = vector.shape_cast %62 : vector<8x8x4xf32> to vector<1x1x1x8x8x4xf32>
    tpu.vector_store %arg4[%c0_60, %c0_61, %c0_62, %c0_63, %c0_64, %c0_65], %65 {strides = array<i32>} : memref<1x2x2x8x8x4xf32, #tpu.memory_space<vmem>>, vector<1x1x1x8x8x4xf32>,
    %cst_66 = arith.constant dense<0.000000e+00> : vector<4xf32>
    %66 = vector.multi_reduction <add>, %61, %cst_66 [0] : vector<64x4xf32> to vector<4xf32>
    %67 = vector.shape_cast %66 : vector<4xf32> to vector<1x4xf32>
    %68 = arith.addf %44, %67 : vector<1x4xf32>
    %69 = arith.mulf %61, %61 : vector<64x4xf32>
    %cst_67 = arith.constant dense<0.000000e+00> : vector<4xf32>
    %70 = vector.multi_reduction <add>, %69, %cst_67 [0] : vector<64x4xf32> to vector<4xf32>
    %71 = vector.shape_cast %70 : vector<4xf32> to vector<1x4xf32>
    %72 = arith.addf %45, %71 : vector<1x4xf32>
    %c0_68 = arith.constant 0 : index
    %c1_69 = arith.constant 1 : index
    %c0_70 = arith.constant 0 : index
    %73 = vector.load %arg6[%c0_68, %c1_69, %c0_70] : memref<10x10x8xbf16, #tpu.memory_space<vmem>>, vector<8x8x8xbf16>
    %74 = vector.shape_cast %73 : vector<8x8x8xbf16> to vector<64x8xbf16>
    %c0_71 = arith.constant 0 : index
    %c0_72 = arith.constant 0 : index
    %75 = vector.load %arg7[%c0_71, %c0_72] : memref<64x32xbf16, #tpu.memory_space<vmem>>, vector<64x8xbf16>
    tpu.vector_store %arg7[%c0_71, %c0_72], %74 {strides = array<i32>} : memref<64x32xbf16, #tpu.memory_space<vmem>>, vector<64x8xbf16>,
    %c0_73 = arith.constant 0 : index
    %c2_74 = arith.constant 2 : index
    %c0_75 = arith.constant 0 : index
    %76 = vector.load %arg6[%c0_73, %c2_74, %c0_75] : memref<10x10x8xbf16, #tpu.memory_space<vmem>>, vector<8x8x8xbf16>
    %77 = vector.shape_cast %76 : vector<8x8x8xbf16> to vector<64x8xbf16>
    %c0_76 = arith.constant 0 : index
    %c8_77 = arith.constant 8 : index
    %78 = vector.load %arg7[%c0_76, %c8_77] : memref<64x32xbf16, #tpu.memory_space<vmem>>, vector<64x8xbf16>
    tpu.vector_store %arg7[%c0_76, %c8_77], %77 {strides = array<i32>} : memref<64x32xbf16, #tpu.memory_space<vmem>>, vector<64x8xbf16>,
    %c1_78 = arith.constant 1 : index
    %c1_79 = arith.constant 1 : index
    %c0_80 = arith.constant 0 : index
    %79 = vector.load %arg6[%c1_78, %c1_79, %c0_80] : memref<10x10x8xbf16, #tpu.memory_space<vmem>>, vector<8x8x8xbf16>
    %80 = vector.shape_cast %79 : vector<8x8x8xbf16> to vector<64x8xbf16>
    %c0_81 = arith.constant 0 : index
    %c16_82 = arith.constant 16 : index
    %81 = vector.load %arg7[%c0_81, %c16_82] : memref<64x32xbf16, #tpu.memory_space<vmem>>, vector<64x8xbf16>
    tpu.vector_store %arg7[%c0_81, %c16_82], %80 {strides = array<i32>} : memref<64x32xbf16, #tpu.memory_space<vmem>>, vector<64x8xbf16>,
    %c1_83 = arith.constant 1 : index
    %c2_84 = arith.constant 2 : index
    %c0_85 = arith.constant 0 : index
    %82 = vector.load %arg6[%c1_83, %c2_84, %c0_85] : memref<10x10x8xbf16, #tpu.memory_space<vmem>>, vector<8x8x8xbf16>
    %83 = vector.shape_cast %82 : vector<8x8x8xbf16> to vector<64x8xbf16>
    %c0_86 = arith.constant 0 : index
    %c24_87 = arith.constant 24 : index
    %84 = vector.load %arg7[%c0_86, %c24_87] : memref<64x32xbf16, #tpu.memory_space<vmem>>, vector<64x8xbf16>
    tpu.vector_store %arg7[%c0_86, %c24_87], %83 {strides = array<i32>} : memref<64x32xbf16, #tpu.memory_space<vmem>>, vector<64x8xbf16>,
    %c0_88 = arith.constant 0 : index
    %c0_89 = arith.constant 0 : index
    %85 = vector.load %arg7[%c0_88, %c0_89] : memref<64x32xbf16, #tpu.memory_space<vmem>>, vector<64x32xbf16>
    %c1_90 = arith.constant 1 : index
    %c0_91 = arith.constant 0 : index
    %c0_92 = arith.constant 0 : index
    %86 = vector.load %arg3[%c1_90, %c0_91, %c0_92] : memref<4x32x4xbf16, #tpu.memory_space<vmem>>, vector<1x32x4xbf16>
    %87 = vector.shape_cast %86 : vector<1x32x4xbf16> to vector<32x4xbf16>
    %cst_93 = arith.constant dense<0.000000e+00> : vector<64x4xf32>
    %88 = tpu.matmul %85, %87, %cst_93 {dimension_numbers = #tpu.dot_dimension_numbers<[1], [0], [0], [1], [0, 0, 1, 1], [], []>} : vector<64x32xbf16>, vector<32x4xbf16>, vector<64x4xf32> -> vector<64x4xf32>
    %89 = vector.shape_cast %88 : vector<64x4xf32> to vector<8x8x4xf32>
    %c0_94 = arith.constant 0 : index
    %c0_95 = arith.constant 0 : index
    %c1_96 = arith.constant 1 : index
    %c0_97 = arith.constant 0 : index
    %c0_98 = arith.constant 0 : index
    %c0_99 = arith.constant 0 : index
    %90 = vector.load %arg4[%c0_94, %c0_95, %c1_96, %c0_97, %c0_98, %c0_99] : memref<1x2x2x8x8x4xf32, #tpu.memory_space<vmem>>, vector<1x1x1x8x8x4xf32>
    %91 = vector.shape_cast %90 : vector<1x1x1x8x8x4xf32> to vector<8x8x4xf32>
    %92 = vector.shape_cast %89 : vector<8x8x4xf32> to vector<1x1x1x8x8x4xf32>
    tpu.vector_store %arg4[%c0_94, %c0_95, %c1_96, %c0_97, %c0_98, %c0_99], %92 {strides = array<i32>} : memref<1x2x2x8x8x4xf32, #tpu.memory_space<vmem>>, vector<1x1x1x8x8x4xf32>,
    %cst_100 = arith.constant dense<0.000000e+00> : vector<4xf32>
    %93 = vector.multi_reduction <add>, %88, %cst_100 [0] : vector<64x4xf32> to vector<4xf32>
    %94 = vector.shape_cast %93 : vector<4xf32> to vector<1x4xf32>
    %95 = arith.addf %68, %94 : vector<1x4xf32>
    %96 = arith.mulf %88, %88 : vector<64x4xf32>
    %cst_101 = arith.constant dense<0.000000e+00> : vector<4xf32>
    %97 = vector.multi_reduction <add>, %96, %cst_101 [0] : vector<64x4xf32> to vector<4xf32>
    %98 = vector.shape_cast %97 : vector<4xf32> to vector<1x4xf32>
    %99 = arith.addf %72, %98 : vector<1x4xf32>
    %c1_102 = arith.constant 1 : index
    %c0_103 = arith.constant 0 : index
    %c0_104 = arith.constant 0 : index
    %100 = vector.load %arg6[%c1_102, %c0_103, %c0_104] : memref<10x10x8xbf16, #tpu.memory_space<vmem>>, vector<8x8x8xbf16>
    %101 = vector.shape_cast %100 : vector<8x8x8xbf16> to vector<64x8xbf16>
    %c0_105 = arith.constant 0 : index
    %c0_106 = arith.constant 0 : index
    %102 = vector.load %arg7[%c0_105, %c0_106] : memref<64x32xbf16, #tpu.memory_space<vmem>>, vector<64x8xbf16>
    tpu.vector_store %arg7[%c0_105, %c0_106], %101 {strides = array<i32>} : memref<64x32xbf16, #tpu.memory_space<vmem>>, vector<64x8xbf16>,
    %c1_107 = arith.constant 1 : index
    %c1_108 = arith.constant 1 : index
    %c0_109 = arith.constant 0 : index
    %103 = vector.load %arg6[%c1_107, %c1_108, %c0_109] : memref<10x10x8xbf16, #tpu.memory_space<vmem>>, vector<8x8x8xbf16>
    %104 = vector.shape_cast %103 : vector<8x8x8xbf16> to vector<64x8xbf16>
    %c0_110 = arith.constant 0 : index
    %c8_111 = arith.constant 8 : index
    %105 = vector.load %arg7[%c0_110, %c8_111] : memref<64x32xbf16, #tpu.memory_space<vmem>>, vector<64x8xbf16>
    tpu.vector_store %arg7[%c0_110, %c8_111], %104 {strides = array<i32>} : memref<64x32xbf16, #tpu.memory_space<vmem>>, vector<64x8xbf16>,
    %c2_112 = arith.constant 2 : index
    %c0_113 = arith.constant 0 : index
    %c0_114 = arith.constant 0 : index
    %106 = vector.load %arg6[%c2_112, %c0_113, %c0_114] : memref<10x10x8xbf16, #tpu.memory_space<vmem>>, vector<8x8x8xbf16>
    %107 = vector.shape_cast %106 : vector<8x8x8xbf16> to vector<64x8xbf16>
    %c0_115 = arith.constant 0 : index
    %c16_116 = arith.constant 16 : index
    %108 = vector.load %arg7[%c0_115, %c16_116] : memref<64x32xbf16, #tpu.memory_space<vmem>>, vector<64x8xbf16>
    tpu.vector_store %arg7[%c0_115, %c16_116], %107 {strides = array<i32>} : memref<64x32xbf16, #tpu.memory_space<vmem>>, vector<64x8xbf16>,
    %c2_117 = arith.constant 2 : index
    %c1_118 = arith.constant 1 : index
    %c0_119 = arith.constant 0 : index
    %109 = vector.load %arg6[%c2_117, %c1_118, %c0_119] : memref<10x10x8xbf16, #tpu.memory_space<vmem>>, vector<8x8x8xbf16>
    %110 = vector.shape_cast %109 : vector<8x8x8xbf16> to vector<64x8xbf16>
    %c0_120 = arith.constant 0 : index
    %c24_121 = arith.constant 24 : index
    %111 = vector.load %arg7[%c0_120, %c24_121] : memref<64x32xbf16, #tpu.memory_space<vmem>>, vector<64x8xbf16>
    tpu.vector_store %arg7[%c0_120, %c24_121], %110 {strides = array<i32>} : memref<64x32xbf16, #tpu.memory_space<vmem>>, vector<64x8xbf16>,
    %c0_122 = arith.constant 0 : index
    %c0_123 = arith.constant 0 : index
    %112 = vector.load %arg7[%c0_122, %c0_123] : memref<64x32xbf16, #tpu.memory_space<vmem>>, vector<64x32xbf16>
    %c2_124 = arith.constant 2 : index
    %c0_125 = arith.constant 0 : index
    %c0_126 = arith.constant 0 : index
    %113 = vector.load %arg3[%c2_124, %c0_125, %c0_126] : memref<4x32x4xbf16, #tpu.memory_space<vmem>>, vector<1x32x4xbf16>
    %114 = vector.shape_cast %113 : vector<1x32x4xbf16> to vector<32x4xbf16>
    %cst_127 = arith.constant dense<0.000000e+00> : vector<64x4xf32>
    %115 = tpu.matmul %112, %114, %cst_127 {dimension_numbers = #tpu.dot_dimension_numbers<[1], [0], [0], [1], [0, 0, 1, 1], [], []>} : vector<64x32xbf16>, vector<32x4xbf16>, vector<64x4xf32> -> vector<64x4xf32>
    %116 = vector.shape_cast %115 : vector<64x4xf32> to vector<8x8x4xf32>
    %c0_128 = arith.constant 0 : index
    %c1_129 = arith.constant 1 : index
    %c0_130 = arith.constant 0 : index
    %c0_131 = arith.constant 0 : index
    %c0_132 = arith.constant 0 : index
    %c0_133 = arith.constant 0 : index
    %117 = vector.load %arg4[%c0_128, %c1_129, %c0_130, %c0_131, %c0_132, %c0_133] : memref<1x2x2x8x8x4xf32, #tpu.memory_space<vmem>>, vector<1x1x1x8x8x4xf32>
    %118 = vector.shape_cast %117 : vector<1x1x1x8x8x4xf32> to vector<8x8x4xf32>
    %119 = vector.shape_cast %116 : vector<8x8x4xf32> to vector<1x1x1x8x8x4xf32>
    tpu.vector_store %arg4[%c0_128, %c1_129, %c0_130, %c0_131, %c0_132, %c0_133], %119 {strides = array<i32>} : memref<1x2x2x8x8x4xf32, #tpu.memory_space<vmem>>, vector<1x1x1x8x8x4xf32>,
    %cst_134 = arith.constant dense<0.000000e+00> : vector<4xf32>
    %120 = vector.multi_reduction <add>, %115, %cst_134 [0] : vector<64x4xf32> to vector<4xf32>
    %121 = vector.shape_cast %120 : vector<4xf32> to vector<1x4xf32>
    %122 = arith.addf %95, %121 : vector<1x4xf32>
    %123 = arith.mulf %115, %115 : vector<64x4xf32>
    %cst_135 = arith.constant dense<0.000000e+00> : vector<4xf32>
    %124 = vector.multi_reduction <add>, %123, %cst_135 [0] : vector<64x4xf32> to vector<4xf32>
    %125 = vector.shape_cast %124 : vector<4xf32> to vector<1x4xf32>
    %126 = arith.addf %99, %125 : vector<1x4xf32>
    %c1_136 = arith.constant 1 : index
    %c1_137 = arith.constant 1 : index
    %c0_138 = arith.constant 0 : index
    %127 = vector.load %arg6[%c1_136, %c1_137, %c0_138] : memref<10x10x8xbf16, #tpu.memory_space<vmem>>, vector<8x8x8xbf16>
    %128 = vector.shape_cast %127 : vector<8x8x8xbf16> to vector<64x8xbf16>
    %c0_139 = arith.constant 0 : index
    %c0_140 = arith.constant 0 : index
    %129 = vector.load %arg7[%c0_139, %c0_140] : memref<64x32xbf16, #tpu.memory_space<vmem>>, vector<64x8xbf16>
    tpu.vector_store %arg7[%c0_139, %c0_140], %128 {strides = array<i32>} : memref<64x32xbf16, #tpu.memory_space<vmem>>, vector<64x8xbf16>,
    %c1_141 = arith.constant 1 : index
    %c2_142 = arith.constant 2 : index
    %c0_143 = arith.constant 0 : index
    %130 = vector.load %arg6[%c1_141, %c2_142, %c0_143] : memref<10x10x8xbf16, #tpu.memory_space<vmem>>, vector<8x8x8xbf16>
    %131 = vector.shape_cast %130 : vector<8x8x8xbf16> to vector<64x8xbf16>
    %c0_144 = arith.constant 0 : index
    %c8_145 = arith.constant 8 : index
    %132 = vector.load %arg7[%c0_144, %c8_145] : memref<64x32xbf16, #tpu.memory_space<vmem>>, vector<64x8xbf16>
    tpu.vector_store %arg7[%c0_144, %c8_145], %131 {strides = array<i32>} : memref<64x32xbf16, #tpu.memory_space<vmem>>, vector<64x8xbf16>,
    %c2_146 = arith.constant 2 : index
    %c1_147 = arith.constant 1 : index
    %c0_148 = arith.constant 0 : index
    %133 = vector.load %arg6[%c2_146, %c1_147, %c0_148] : memref<10x10x8xbf16, #tpu.memory_space<vmem>>, vector<8x8x8xbf16>
    %134 = vector.shape_cast %133 : vector<8x8x8xbf16> to vector<64x8xbf16>
    %c0_149 = arith.constant 0 : index
    %c16_150 = arith.constant 16 : index
    %135 = vector.load %arg7[%c0_149, %c16_150] : memref<64x32xbf16, #tpu.memory_space<vmem>>, vector<64x8xbf16>
    tpu.vector_store %arg7[%c0_149, %c16_150], %134 {strides = array<i32>} : memref<64x32xbf16, #tpu.memory_space<vmem>>, vector<64x8xbf16>,
    %c2_151 = arith.constant 2 : index
    %c2_152 = arith.constant 2 : index
    %c0_153 = arith.constant 0 : index
    %136 = vector.load %arg6[%c2_151, %c2_152, %c0_153] : memref<10x10x8xbf16, #tpu.memory_space<vmem>>, vector<8x8x8xbf16>
    %137 = vector.shape_cast %136 : vector<8x8x8xbf16> to vector<64x8xbf16>
    %c0_154 = arith.constant 0 : index
    %c24_155 = arith.constant 24 : index
    %138 = vector.load %arg7[%c0_154, %c24_155] : memref<64x32xbf16, #tpu.memory_space<vmem>>, vector<64x8xbf16>
    tpu.vector_store %arg7[%c0_154, %c24_155], %137 {strides = array<i32>} : memref<64x32xbf16, #tpu.memory_space<vmem>>, vector<64x8xbf16>,
    %c0_156 = arith.constant 0 : index
    %c0_157 = arith.constant 0 : index
    %139 = vector.load %arg7[%c0_156, %c0_157] : memref<64x32xbf16, #tpu.memory_space<vmem>>, vector<64x32xbf16>
    %c3_158 = arith.constant 3 : index
    %c0_159 = arith.constant 0 : index
    %c0_160 = arith.constant 0 : index
    %140 = vector.load %arg3[%c3_158, %c0_159, %c0_160] : memref<4x32x4xbf16, #tpu.memory_space<vmem>>, vector<1x32x4xbf16>
    %141 = vector.shape_cast %140 : vector<1x32x4xbf16> to vector<32x4xbf16>
    %cst_161 = arith.constant dense<0.000000e+00> : vector<64x4xf32>
    %142 = tpu.matmul %139, %141, %cst_161 {dimension_numbers = #tpu.dot_dimension_numbers<[1], [0], [0], [1], [0, 0, 1, 1], [], []>} : vector<64x32xbf16>, vector<32x4xbf16>, vector<64x4xf32> -> vector<64x4xf32>
    %143 = vector.shape_cast %142 : vector<64x4xf32> to vector<8x8x4xf32>
    %c0_162 = arith.constant 0 : index
    %c1_163 = arith.constant 1 : index
    %c1_164 = arith.constant 1 : index
    %c0_165 = arith.constant 0 : index
    %c0_166 = arith.constant 0 : index
    %c0_167 = arith.constant 0 : index
    %144 = vector.load %arg4[%c0_162, %c1_163, %c1_164, %c0_165, %c0_166, %c0_167] : memref<1x2x2x8x8x4xf32, #tpu.memory_space<vmem>>, vector<1x1x1x8x8x4xf32>
    %145 = vector.shape_cast %144 : vector<1x1x1x8x8x4xf32> to vector<8x8x4xf32>
    %146 = vector.shape_cast %143 : vector<8x8x4xf32> to vector<1x1x1x8x8x4xf32>
    tpu.vector_store %arg4[%c0_162, %c1_163, %c1_164, %c0_165, %c0_166, %c0_167], %146 {strides = array<i32>} : memref<1x2x2x8x8x4xf32, #tpu.memory_space<vmem>>, vector<1x1x1x8x8x4xf32>,
    %cst_168 = arith.constant dense<0.000000e+00> : vector<4xf32>
    %147 = vector.multi_reduction <add>, %142, %cst_168 [0] : vector<64x4xf32> to vector<4xf32>
    %148 = vector.shape_cast %147 : vector<4xf32> to vector<1x4xf32>
    %149 = arith.addf %122, %148 : vector<1x4xf32>
    %150 = arith.mulf %142, %142 : vector<64x4xf32>
    %cst_169 = arith.constant dense<0.000000e+00> : vector<4xf32>
    %151 = vector.multi_reduction <add>, %150, %cst_169 [0] : vector<64x4xf32> to vector<4xf32>
    %152 = vector.shape_cast %151 : vector<4xf32> to vector<1x4xf32>
    %153 = arith.addf %126, %152 : vector<1x4xf32>
    %c0_170 = arith.constant 0 : index
    %c0_171 = arith.constant 0 : index
    %c0_172 = arith.constant 0 : index
    %154 = vector.load %arg5[%c0_170, %c0_171, %c0_172] : memref<1x2x4xf32, #tpu.memory_space<vmem>>, vector<1x1x4xf32>
    %155 = vector.shape_cast %154 : vector<1x1x4xf32> to vector<1x4xf32>
    %156 = vector.shape_cast %149 : vector<1x4xf32> to vector<1x1x4xf32>
    tpu.vector_store %arg5[%c0_170, %c0_171, %c0_172], %156 {strides = array<i32>} : memref<1x2x4xf32, #tpu.memory_space<vmem>>, vector<1x1x4xf32>,
    %c0_173 = arith.constant 0 : index
    %c1_174 = arith.constant 1 : index
    %c0_175 = arith.constant 0 : index
    %157 = vector.load %arg5[%c0_173, %c1_174, %c0_175] : memref<1x2x4xf32, #tpu.memory_space<vmem>>, vector<1x1x4xf32>
    %158 = vector.shape_cast %157 : vector<1x1x4xf32> to vector<1x4xf32>
    %159 = vector.shape_cast %153 : vector<1x4xf32> to vector<1x1x4xf32>
    tpu.vector_store %arg5[%c0_173, %c1_174, %c0_175], %159 {strides = array<i32>} : memref<1x2x4xf32, #tpu.memory_space<vmem>>, vector<1x1x4xf32>,
    return
  }
  func.func @transform_0(%arg0: i32) -> (i32, i32, i32, i32) {
    %c0_i32 = arith.constant 0 : i32
    %c0_i32_0 = arith.constant 0 : i32
    %c0_i32_1 = arith.constant 0 : i32
    %c0_i32_2 = arith.constant 0 : i32
    return %arg0, %c0_i32, %c0_i32_0, %c0_i32_1 : i32, i32, i32, i32
  }
  func.func @transform_1(%arg0: i32) -> (i32, i32, i32) {
    %c0_i32 = arith.constant 0 : i32
    %c0_i32_0 = arith.constant 0 : i32
    %c0_i32_1 = arith.constant 0 : i32
    %c0_i32_2 = arith.constant 0 : i32
    return %c0_i32, %c0_i32_0, %c0_i32_1 : i32, i32, i32
  }
  func.func @transform_2(%arg0: i32) -> (i32, i32, i32) {
    %c0_i32 = arith.constant 0 : i32
    %c0_i32_0 = arith.constant 0 : i32
    %c0_i32_1 = arith.constant 0 : i32
    %c0_i32_2 = arith.constant 0 : i32
    return %c0_i32, %c0_i32_0, %c0_i32_1 : i32, i32, i32
  }
  func.func @transform_3(%arg0: i32) -> (i32, i32, i32, i32, i32, i32) {
    %c0_i32 = arith.constant 0 : i32
    %c0_i32_0 = arith.constant 0 : i32
    %c0_i32_1 = arith.constant 0 : i32
    %c0_i32_2 = arith.constant 0 : i32
    %c0_i32_3 = arith.constant 0 : i32
    %c0_i32_4 = arith.constant 0 : i32
    return %arg0, %c0_i32, %c0_i32_0, %c0_i32_1, %c0_i32_2, %c0_i32_3 : i32, i32, i32, i32, i32, i32
  }
  func.func @transform_4(%arg0: i32) -> (i32, i32, i32) {
    %c0_i32 = arith.constant 0 : i32
    %c0_i32_0 = arith.constant 0 : i32
    %c0_i32_1 = arith.constant 0 : i32
    return %arg0, %c0_i32, %c0_i32_0 : i32, i32, i32
  }
}

module attributes {stable_mosaic.version = 11 : i64} {
  func.func @_bn_apply_kernel(%arg0: i32, %arg1: memref<1x2x2x8x8x4xf32, #tpu.memory_space<vmem>>, %arg2: memref<1x4xf32, #tpu.memory_space<vmem>>, %arg3: memref<1x4xf32, #tpu.memory_space<vmem>>, %arg4: memref<1x2x2x8x8x4xf32, #tpu.memory_space<vmem>>) attributes {dimension_semantics = [#tpu.dimension_semantics<parallel>], iteration_bounds = array<i64: 2>, scalar_prefetch = 0 : i64, scratch_operands = 0 : i64, tpu.core_type = #tpu.core_type<tc>, window_params = [{transform_indices = @transform_0, window_bounds = array<i64: 1, 2, 2, 8, 8, 4>}, {pipeline_mode = #tpu.pipeline_mode<synchronous>, transform_indices = @transform_1, window_bounds = array<i64: 1, 4>}, {pipeline_mode = #tpu.pipeline_mode<synchronous>, transform_indices = @transform_2, window_bounds = array<i64: 1, 4>}, {transform_indices = @transform_3, window_bounds = array<i64: 1, 2, 2, 8, 8, 4>}]} {
    %c0 = arith.constant 0 : index
    %c0_0 = arith.constant 0 : index
    %c0_1 = arith.constant 0 : index
    %c0_2 = arith.constant 0 : index
    %c0_3 = arith.constant 0 : index
    %c0_4 = arith.constant 0 : index
    %0 = vector.load %arg1[%c0, %c0_0, %c0_1, %c0_2, %c0_3, %c0_4] : memref<1x2x2x8x8x4xf32, #tpu.memory_space<vmem>>, vector<1x2x2x8x8x4xf32>
    %c0_5 = arith.constant 0 : index
    %c0_6 = arith.constant 0 : index
    %1 = vector.load %arg2[%c0_5, %c0_6] : memref<1x4xf32, #tpu.memory_space<vmem>>, vector<1x4xf32>
    %2 = vector.shape_cast %1 : vector<1x4xf32> to vector<1x1x1x1x1x4xf32>
    %3 = vector.broadcast %2 : vector<1x1x1x1x1x4xf32> to vector<1x2x2x8x8x4xf32>
    %4 = arith.mulf %0, %3 : vector<1x2x2x8x8x4xf32>
    %c0_7 = arith.constant 0 : index
    %c0_8 = arith.constant 0 : index
    %5 = vector.load %arg3[%c0_7, %c0_8] : memref<1x4xf32, #tpu.memory_space<vmem>>, vector<1x4xf32>
    %6 = vector.shape_cast %5 : vector<1x4xf32> to vector<1x1x1x1x1x4xf32>
    %7 = vector.broadcast %6 : vector<1x1x1x1x1x4xf32> to vector<1x2x2x8x8x4xf32>
    %8 = arith.addf %4, %7 : vector<1x2x2x8x8x4xf32>
    %c0_9 = arith.constant 0 : index
    %c0_10 = arith.constant 0 : index
    %c0_11 = arith.constant 0 : index
    %c0_12 = arith.constant 0 : index
    %c0_13 = arith.constant 0 : index
    %c0_14 = arith.constant 0 : index
    %9 = vector.load %arg4[%c0_9, %c0_10, %c0_11, %c0_12, %c0_13, %c0_14] : memref<1x2x2x8x8x4xf32, #tpu.memory_space<vmem>>, vector<1x2x2x8x8x4xf32>
    tpu.vector_store %arg4[%c0_9, %c0_10, %c0_11, %c0_12, %c0_13, %c0_14], %8 {strides = array<i32>} : memref<1x2x2x8x8x4xf32, #tpu.memory_space<vmem>>, vector<1x2x2x8x8x4xf32>,
    return
  }
  func.func @transform_0(%arg0: i32) -> (i32, i32, i32, i32, i32, i32) {
    %c0_i32 = arith.constant 0 : i32
    %c0_i32_0 = arith.constant 0 : i32
    %c0_i32_1 = arith.constant 0 : i32
    %c0_i32_2 = arith.constant 0 : i32
    %c0_i32_3 = arith.constant 0 : i32
    %c0_i32_4 = arith.constant 0 : i32
    return %arg0, %c0_i32, %c0_i32_0, %c0_i32_1, %c0_i32_2, %c0_i32_3 : i32, i32, i32, i32, i32, i32
  }
  func.func @transform_1(%arg0: i32) -> (i32, i32) {
    %c0_i32 = arith.constant 0 : i32
    %c0_i32_0 = arith.constant 0 : i32
    %c0_i32_1 = arith.constant 0 : i32
    return %c0_i32, %c0_i32_0 : i32, i32
  }
  func.func @transform_2(%arg0: i32) -> (i32, i32) {
    %c0_i32 = arith.constant 0 : i32
    %c0_i32_0 = arith.constant 0 : i32
    %c0_i32_1 = arith.constant 0 : i32
    return %c0_i32, %c0_i32_0 : i32, i32
  }
  func.func @transform_3(%arg0: i32) -> (i32, i32, i32, i32, i32, i32) {
    %c0_i32 = arith.constant 0 : i32
    %c0_i32_0 = arith.constant 0 : i32
    %c0_i32_1 = arith.constant 0 : i32
    %c0_i32_2 = arith.constant 0 : i32
    %c0_i32_3 = arith.constant 0 : i32
    %c0_i32_4 = arith.constant 0 : i32
    return %arg0, %c0_i32, %c0_i32_0, %c0_i32_1, %c0_i32_2, %c0_i32_3 : i32, i32, i32, i32, i32, i32
  }
}

</mosaic_0001>

<llo_original>
// kernel: unet_innermost_forward.3
$region0: #{unet_innermost_forward.3}
  #allocation0 [shape = 'u32[]', space=smem, size = 0x4, offset = 0x4, fixed_abs, tag = 'smem constant byte address 0x4 - core index']
  #allocation1 [shape = 'u32[144,128]{1,0:T(1,128)}', space=vmem, size = 0x12000, scoped, tag = 'internal scratch']
  %s0 = inlined_call_operand.vmem [shape: f32[2,2,2,8,8,4], index: 0, kind: input, shape index: {}]
  %s1 = inlined_call_operand.vmem [shape: f32[1,4], index: 1, kind: input, shape index: {}]
  %s2 = inlined_call_operand.vmem [shape: f32[1,4], index: 2, kind: input, shape index: {}]
  %s3 = inlined_call_operand.vmem [shape: f32[2,2,2,8,8,4], index: 3, kind: output, shape index: {}]
  %s4 = sld [smem:[#allocation0]]
  $region45: #{unet_innermost_forward.3} parent=0
    _
  %s6 = ssub.s32 1, %s4
  %s7 = scalar_select 0, %s6, %s4
  loop: start=0, step=1, limit=4
  $region2: #{unet_innermost_forward.3} parent=0 // loop_pre_header
    _
  $region3: #{unet_innermost_forward.3} parent=0 // loop_header
    %s9 = sphi 0, %s13
    %p10 = scmp.ge.s32.totalorder %s9, 4
    %s19 = sphi 0, %s21
    %s22 = sphi 0, %s19
    %s23 = sphi 0, %s22
    %s39 = sphi 0, %s23
    %s43 = sphi 0, %s43
    %s45 = sphi 0, %s43
    %s46 = sphi 0, %s45
    %s60 = sphi 0, %s46
    %s64 = sphi 0, %s64
    %s66 = sphi 0, %s64
    %s67 = sphi 0, %s66
    %s81 = sphi 0, %s67
    %s87 = sphi 0, %s89
    %s90 = sphi 0, %s87
    %s91 = sphi 0, %s90
    %s107 = sphi 0, %s91
  $region4: #{unet_innermost_forward.3} parent=0 // loop_header_branch
    %12 = sbr.rel (%p10) target = $region8
  $region5: #{unet_innermost_forward.3} parent=0 // loop_body
    %s14 = ssub.s32 %s9, 1
    %s15 = ssub.s32 %s9, 2
    %s16 = sadd.s32 %s9, 1
    %s17 = ssub.s32 %s9, %s16
    %p18 = scmp.eq.s32.totalorder %s17, 0
    %s20 = sadd.s32 %s19, 1
    %s21 = scalar_select %p18, %s19, %s20
    %p24 = pneg %p18
    %p25 = scmp.eq.s32.totalorder %s9, 1
    %p26 = por %p24, %p25
    %p27 = scmp.ne.s32.totalorder %s19, %s22
    %p28 = scmp.eq.s32.totalorder %s9, 0
    %p29 = por %p27, %p28
    %p30 = scmp.ne.s32.totalorder %s19, %s22
    %p31 = scmp.eq.s32.totalorder %s14, 1
    %p32 = por %p30, %p31
    %p33 = scmp.ne.s32.totalorder %s22, %s23
    %p34 = scmp.eq.s32.totalorder %s14, 0
    %p35 = por %p33, %p34
    %p36 = scmp.ne.s32.totalorder %s22, %s23
    %p37 = scmp.eq.s32.totalorder %s15, 1
    %p38 = por %p36, %p37
    %p40 = scmp.ne.s32.totalorder %s23, %s39
    %p41 = scmp.eq.s32.totalorder %s15, 0
    %p42 = por %p40, %p41
    %s44 = sadd.s32 %s43, 1
    %p47 = scmp.eq.s32.totalorder %s9, 1
    %p48 = scmp.ne.s32.totalorder %s43, %s45
    %p49 = scmp.eq.s32.totalorder %s9, 0
    %p50 = por %p48, %p49
    %p51 = scmp.ne.s32.totalorder %s43, %s45
    %p52 = scmp.eq.s32.totalorder %s14, 1
    %p53 = por %p51, %p52
    %p54 = scmp.ne.s32.totalorder %s45, %s46
    %p55 = scmp.eq.s32.totalorder %s14, 0
    %p56 = por %p54, %p55
    %p57 = scmp.ne.s32.totalorder %s45, %s46
    %p58 = scmp.eq.s32.totalorder %s15, 1
    %p59 = por %p57, %p58
    %p61 = scmp.ne.s32.totalorder %s46, %s60
    %p62 = scmp.eq.s32.totalorder %s15, 0
    %p63 = por %p61, %p62
    %s65 = sadd.s32 %s64, 1
    %p68 = scmp.eq.s32.totalorder %s9, 1
    %p69 = scmp.ne.s32.totalorder %s64, %s66
    %p70 = scmp.eq.s32.totalorder %s9, 0
    %p71 = por %p69, %p70
    %p72 = scmp.ne.s32.totalorder %s64, %s66
    %p73 = scmp.eq.s32.totalorder %s14, 1
    %p74 = por %p72, %p73
    %p75 = scmp.ne.s32.totalorder %s66, %s67
    %p76 = scmp.eq.s32.totalorder %s14, 0
    %p77 = por %p75, %p76
    %p78 = scmp.ne.s32.totalorder %s66, %s67
    %p79 = scmp.eq.s32.totalorder %s15, 1
    %p80 = por %p78, %p79
    %p82 = scmp.ne.s32.totalorder %s67, %s81
    %p83 = scmp.eq.s32.totalorder %s15, 0
    %p84 = por %p82, %p83
    %s85 = ssub.s32 %s9, %s16
    %p86 = scmp.eq.s32.totalorder %s85, 0
    %s88 = sadd.s32 %s87, 1
    %s89 = scalar_select %p86, %s87, %s88
    %p92 = pneg %p86
    %p93 = scmp.eq.s32.totalorder %s9, 1
    %p94 = por %p92, %p93
    %p95 = scmp.ne.s32.totalorder %s87, %s90
    %p96 = scmp.eq.s32.totalorder %s9, 0
    %p97 = por %p95, %p96
    %p98 = scmp.ne.s32.totalorder %s87, %s90
    %p99 = scmp.eq.s32.totalorder %s14, 1
    %p100 = por %p98, %p99
    %p101 = scmp.ne.s32.totalorder %s90, %s91
    %p102 = scmp.eq.s32.totalorder %s14, 0
    %p103 = por %p101, %p102
    %p104 = scmp.ne.s32.totalorder %s90, %s91
    %p105 = scmp.eq.s32.totalorder %s15, 1
    %p106 = por %p104, %p105
    %p108 = scmp.ne.s32.totalorder %s91, %s107
    %p109 = scmp.eq.s32.totalorder %s15, 0
    %p110 = por %p108, %p109
    %p111 = scmp.le.s32.totalorder 1, %s9
    %p112 = scmp.lt.s32.totalorder %s9, 3
    %p113 = pnand %p111, %p112
    %p114 = pneg %p113
    // Predicated region
    $region9: #{unet_innermost_forward.3} parent=5 // pred_check
      _
    $region10: #{unet_innermost_forward.3} parent=5 // pred_check_branch
      %116 = sbr.rel (%p113) target = $region12
    $region11: #{unet_innermost_forward.3} parent=5 // pred_region
      %s117 = ssub.s32 %s9, 1
      // Predicated region
      $region13: #{unet_innermost_forward.3} parent=11 // pred_check
        %p118 = pneg %p56
      $region14: #{unet_innermost_forward.3} parent=11 // pred_check_branch
        %120 = sbr.rel (%p118) target = $region16
      $region15: #{unet_innermost_forward.3} parent=11 // pred_region
        _
      $region16: #{unet_innermost_forward.3} parent=11 // pred_fallthru
        _
      // Predicated region
      $region17: #{unet_innermost_forward.3} parent=11 // pred_check
        %p121 = pneg %p77
      $region18: #{unet_innermost_forward.3} parent=11 // pred_check_branch
        %123 = sbr.rel (%p121) target = $region20
      $region19: #{unet_innermost_forward.3} parent=11 // pred_region
        _
      $region20: #{unet_innermost_forward.3} parent=11 // pred_fallthru
        _
    $region12: #{unet_innermost_forward.3} parent=5 // pred_fallthru
      _
    %p124 = scmp.lt.s32.totalorder %s9, 2
    // Predicated region
    $region21: #{unet_innermost_forward.3} parent=5 // pred_check
      %p125 = pneg %p124
    $region22: #{unet_innermost_forward.3} parent=5 // pred_check_branch
      %127 = sbr.rel (%p125) target = $region24
    $region23: #{unet_innermost_forward.3} parent=5 // pred_region
      // Predicated region
      $region25: #{unet_innermost_forward.3} parent=23 // pred_check
        %p128 = pneg %p29
      $region26: #{unet_innermost_forward.3} parent=23 // pred_check_branch
        %130 = sbr.rel (%p128) target = $region28
      $region27: #{unet_innermost_forward.3} parent=23 // pred_region
        %p131 = scmp.lt.s32.totalorder %s9, 1
        %s132 = scalar_select %p131, %s9, 1
        %s133 = smul.addr %s132, 32
        %s134 = smul.addr %s133, 8
        %s135 = scalar_lea.vmem %s0, %s134
      $region28: #{unet_innermost_forward.3} parent=23 // pred_fallthru
        _
    $region24: #{unet_innermost_forward.3} parent=5 // pred_fallthru
      _
    %p136 = scmp.le.s32.totalorder 1, %s9
    %p137 = scmp.lt.s32.totalorder %s9, 3
    %p138 = pnand %p136, %p137
    %p139 = pneg %p138
    // Predicated region
    $region29: #{unet_innermost_forward.3} parent=5 // pred_check
      _
    $region30: #{unet_innermost_forward.3} parent=5 // pred_check_branch
      %141 = sbr.rel (%p138) target = $region32
    $region31: #{unet_innermost_forward.3} parent=5 // pred_region
      %s142 = ssub.s32 %s9, 1
      %p143 = scmp.lt.s32.totalorder %s14, 1
      %s144 = scalar_select %p143, %s14, 1
      %s145 = smul.addr %s144, 32
      %s146 = smul.addr %s145, 8
      %s147 = scalar_lea.vmem %s0, %s146
      %p148 = pneg %p35
      %p149 = pneg %p32
      %p150 = pneg %p56
      %p151 = pneg %p53
      %p152 = pneg %p77
      %p153 = pneg %p74
      %p154 = pneg %p103
      %p155 = pneg %p100
      %p156 = scmp.lt.s32.totalorder %s14, 1
      %s157 = scalar_select %p156, %s14, 1
      %s158 = smul.addr %s157, 32
      %s159 = smul.addr %s158, 8
      %s160 = scalar_lea.vmem %s3, %s159
      %p161 = scmp.lt.s32.totalorder %s14, 1
      %s162 = scalar_select %p161, %s14, 1
      %s163 = smul.addr %s162, 32
      %s164 = smul.addr %s163, 8
      %s165 = scalar_lea.vmem %s0, %s164
      %p166 = scmp.lt.s32.totalorder %s14, 1
      %s167 = scalar_select %p166, %s14, 1
      %s168 = smul.addr %s167, 32
      %s169 = smul.addr %s168, 8
      %s170 = scalar_lea.vmem %s3, %s169
      %v171 = vld [vmem:[%s165] sm:$0xff]
      %v172 = vld [vmem:[%s165 + $0x8] sm:$0xff]
      %v173 = vld [vmem:[%s165 + $0x10] sm:$0xff]
      %v174 = vld [vmem:[%s165 + $0x18] sm:$0xff]
      %v175 = vld [vmem:[%s165 + $0x20] sm:$0xff]
      %v176 = vld [vmem:[%s165 + $0x28] sm:$0xff]
      %v177 = vld [vmem:[%s165 + $0x30] sm:$0xff]
      %v178 = vld [vmem:[%s165 + $0x38] sm:$0xff]
      %v179 = vld [vmem:[%s165 + $0x40] sm:$0xff]
      %v180 = vld [vmem:[%s165 + $0x48] sm:$0xff]
      %v181 = vld [vmem:[%s165 + $0x50] sm:$0xff]
      %v182 = vld [vmem:[%s165 + $0x58] sm:$0xff]
      %v183 = vld [vmem:[%s165 + $0x60] sm:$0xff]
      %v184 = vld [vmem:[%s165 + $0x68] sm:$0xff]
      %v185 = vld [vmem:[%s165 + $0x70] sm:$0xff]
      %v186 = vld [vmem:[%s165 + $0x78] sm:$0xff]
      %v187 = vld [vmem:[%s165 + $0x80] sm:$0xff]
      %v188 = vld [vmem:[%s165 + $0x88] sm:$0xff]
      %v189 = vld [vmem:[%s165 + $0x90] sm:$0xff]
      %v190 = vld [vmem:[%s165 + $0x98] sm:$0xff]
      %v191 = vld [vmem:[%s165 + $0xa0] sm:$0xff]
      %v192 = vld [vmem:[%s165 + $0xa8] sm:$0xff]
      %v193 = vld [vmem:[%s165 + $0xb0] sm:$0xff]
      %v194 = vld [vmem:[%s165 + $0xb8] sm:$0xff]
      %v195 = vld [vmem:[%s165 + $0xc0] sm:$0xff]
      %v196 = vld [vmem:[%s165 + $0xc8] sm:$0xff]
      %v197 = vld [vmem:[%s165 + $0xd0] sm:$0xff]
      %v198 = vld [vmem:[%s165 + $0xd8] sm:$0xff]
      %v199 = vld [vmem:[%s165 + $0xe0] sm:$0xff]
      %v200 = vld [vmem:[%s165 + $0xe8] sm:$0xff]
      %v201 = vld [vmem:[%s165 + $0xf0] sm:$0xff]
      %v202 = vld [vmem:[%s165 + $0xf8] sm:$0xff]
      %v203 = vld [vmem:[%s1] sm:$0x1]
      %v205 = vlaneseq
      %v206 = vshrl.u32 %v205, 7
      %v207 = vsub.s32 0, %v206
      %v208 = vrot.slane %v203, %v207
      %v210 = vmul.f32 %v171, %v208
      %v211 = vmul.f32 %v172, %v208
      %v212 = vmul.f32 %v173, %v208
      %v213 = vmul.f32 %v174, %v208
      %v214 = vmul.f32 %v175, %v208
      %v215 = vmul.f32 %v176, %v208
      %v216 = vmul.f32 %v177, %v208
      %v217 = vmul.f32 %v178, %v208
      %v218 = vmul.f32 %v179, %v208
      %v219 = vmul.f32 %v180, %v208
      %v220 = vmul.f32 %v181, %v208
      %v221 = vmul.f32 %v182, %v208
      %v222 = vmul.f32 %v183, %v208
      %v223 = vmul.f32 %v184, %v208
      %v224 = vmul.f32 %v185, %v208
      %v225 = vmul.f32 %v186, %v208
      %v226 = vmul.f32 %v187, %v208
      %v227 = vmul.f32 %v188, %v208
      %v228 = vmul.f32 %v189, %v208
      %v229 = vmul.f32 %v190, %v208
      %v230 = vmul.f32 %v191, %v208
      %v231 = vmul.f32 %v192, %v208
      %v232 = vmul.f32 %v193, %v208
      %v233 = vmul.f32 %v194, %v208
      %v234 = vmul.f32 %v195, %v208
      %v235 = vmul.f32 %v196, %v208
      %v236 = vmul.f32 %v197, %v208
      %v237 = vmul.f32 %v198, %v208
      %v238 = vmul.f32 %v199, %v208
      %v239 = vmul.f32 %v200, %v208
      %v240 = vmul.f32 %v201, %v208
      %v241 = vmul.f32 %v202, %v208
      %v242 = vld [vmem:[%s2] sm:$0x1]
      %v244 = vlaneseq
      %v245 = vshrl.u32 %v244, 7
      %v246 = vsub.s32 0, %v245
      %v247 = vrot.slane %v242, %v246
      %v249 = vadd.f32 %v210, %v247
      %v250 = vadd.f32 %v211, %v247
      %v251 = vadd.f32 %v212, %v247
      %v252 = vadd.f32 %v213, %v247
      %v253 = vadd.f32 %v214, %v247
      %v254 = vadd.f32 %v215, %v247
      %v255 = vadd.f32 %v216, %v247
      %v256 = vadd.f32 %v217, %v247
      %v257 = vadd.f32 %v218, %v247
      %v258 = vadd.f32 %v219, %v247
      %v259 = vadd.f32 %v220, %v247
      %v260 = vadd.f32 %v221, %v247
      %v261 = vadd.f32 %v222, %v247
      %v262 = vadd.f32 %v223, %v247
      %v263 = vadd.f32 %v224, %v247
      %v264 = vadd.f32 %v225, %v247
      %v265 = vadd.f32 %v226, %v247
      %v266 = vadd.f32 %v227, %v247
      %v267 = vadd.f32 %v228, %v247
      %v268 = vadd.f32 %v229, %v247
      %v269 = vadd.f32 %v230, %v247
      %v270 = vadd.f32 %v231, %v247
      %v271 = vadd.f32 %v232, %v247
      %v272 = vadd.f32 %v233, %v247
      %v273 = vadd.f32 %v234, %v247
      %v274 = vadd.f32 %v235, %v247
      %v275 = vadd.f32 %v236, %v247
      %v276 = vadd.f32 %v237, %v247
      %v277 = vadd.f32 %v238, %v247
      %v278 = vadd.f32 %v239, %v247
      %v279 = vadd.f32 %v240, %v247
      %v280 = vadd.f32 %v241, %v247
      %vm281 = vcmask 31744
      %282 = vst.msk [vmem:[%s170] sm:$0xff] %vm281, %v249
      %283 = vst.msk [vmem:[%s170 + $0x8] sm:$0xff] %vm281, %v250
      %284 = vst.msk [vmem:[%s170 + $0x10] sm:$0xff] %vm281, %v251
      %285 = vst.msk [vmem:[%s170 + $0x18] sm:$0xff] %vm281, %v252
      %286 = vst.msk [vmem:[%s170 + $0x20] sm:$0xff] %vm281, %v253
      %287 = vst.msk [vmem:[%s170 + $0x28] sm:$0xff] %vm281, %v254
      %288 = vst.msk [vmem:[%s170 + $0x30] sm:$0xff] %vm281, %v255
      %289 = vst.msk [vmem:[%s170 + $0x38] sm:$0xff] %vm281, %v256
      %290 = vst.msk [vmem:[%s170 + $0x40] sm:$0xff] %vm281, %v257
      %291 = vst.msk [vmem:[%s170 + $0x48] sm:$0xff] %vm281, %v258
      %292 = vst.msk [vmem:[%s170 + $0x50] sm:$0xff] %vm281, %v259
      %293 = vst.msk [vmem:[%s170 + $0x58] sm:$0xff] %vm281, %v260
      %294 = vst.msk [vmem:[%s170 + $0x60] sm:$0xff] %vm281, %v261
      %295 = vst.msk [vmem:[%s170 + $0x68] sm:$0xff] %vm281, %v262
      %296 = vst.msk [vmem:[%s170 + $0x70] sm:$0xff] %vm281, %v263
      %297 = vst.msk [vmem:[%s170 + $0x78] sm:$0xff] %vm281, %v264
      %298 = vst.msk [vmem:[%s170 + $0x80] sm:$0xff] %vm281, %v265
      %299 = vst.msk [vmem:[%s170 + $0x88] sm:$0xff] %vm281, %v266
      %300 = vst.msk [vmem:[%s170 + $0x90] sm:$0xff] %vm281, %v267
      %301 = vst.msk [vmem:[%s170 + $0x98] sm:$0xff] %vm281, %v268
      %302 = vst.msk [vmem:[%s170 + $0xa0] sm:$0xff] %vm281, %v269
      %303 = vst.msk [vmem:[%s170 + $0xa8] sm:$0xff] %vm281, %v270
      %304 = vst.msk [vmem:[%s170 + $0xb0] sm:$0xff] %vm281, %v271
      %305 = vst.msk [vmem:[%s170 + $0xb8] sm:$0xff] %vm281, %v272
      %306 = vst.msk [vmem:[%s170 + $0xc0] sm:$0xff] %vm281, %v273
      %307 = vst.msk [vmem:[%s170 + $0xc8] sm:$0xff] %vm281, %v274
      %308 = vst.msk [vmem:[%s170 + $0xd0] sm:$0xff] %vm281, %v275
      %309 = vst.msk [vmem:[%s170 + $0xd8] sm:$0xff] %vm281, %v276
      %310 = vst.msk [vmem:[%s170 + $0xe0] sm:$0xff] %vm281, %v277
      %311 = vst.msk [vmem:[%s170 + $0xe8] sm:$0xff] %vm281, %v278
      %312 = vst.msk [vmem:[%s170 + $0xf0] sm:$0xff] %vm281, %v279
      %313 = vst.msk [vmem:[%s170 + $0xf8] sm:$0xff] %vm281, %v280
      %p314 = scmp.lt.s32.totalorder %s14, 1
      %s315 = scalar_select %p314, %s14, 1
      %s316 = smul.addr %s315, 32
      %s317 = smul.addr %s316, 8
      %s318 = scalar_lea.vmem %s3, %s317
      // Predicated region
      $region33: #{unet_innermost_forward.3} parent=31 // pred_check
        %p319 = pneg %p100
      $region34: #{unet_innermost_forward.3} parent=31 // pred_check_branch
        %321 = sbr.rel (%p319) target = $region36
      $region35: #{unet_innermost_forward.3} parent=31 // pred_region
        _
      $region36: #{unet_innermost_forward.3} parent=31 // pred_fallthru
        _
    $region32: #{unet_innermost_forward.3} parent=5 // pred_fallthru
      _
    %p322 = scmp.le.s32.totalorder 2, %s9
    // Predicated region
    $region37: #{unet_innermost_forward.3} parent=5 // pred_check
      %p323 = pneg %p322
    $region38: #{unet_innermost_forward.3} parent=5 // pred_check_branch
      %325 = sbr.rel (%p323) target = $region40
    $region39: #{unet_innermost_forward.3} parent=5 // pred_region
      %s326 = ssub.s32 %s9, 2
      // Predicated region
      $region41: #{unet_innermost_forward.3} parent=39 // pred_check
        %p327 = pneg %p106
      $region42: #{unet_innermost_forward.3} parent=39 // pred_check_branch
        %329 = sbr.rel (%p327) target = $region44
      $region43: #{unet_innermost_forward.3} parent=39 // pred_region
        %p330 = scmp.lt.s32.totalorder %s15, 1
        %s331 = scalar_select %p330, %s15, 1
        %s332 = smul.addr %s331, 32
        %s333 = smul.addr %s332, 8
        %s334 = scalar_lea.vmem %s3, %s333
      $region44: #{unet_innermost_forward.3} parent=39 // pred_fallthru
        _
    $region40: #{unet_innermost_forward.3} parent=5 // pred_fallthru
      _
  $region6: #{unet_innermost_forward.3} parent=0 // loop_footer
    %s13 = sadd.s32 1, %s9
  $region7: #{unet_innermost_forward.3} parent=0 // loop_footer_branch
    %8 = sbr.rel target = $region3
  $region8: #{unet_innermost_forward.3} parent=0 // loop_exit
    _

// kernel: unet_innermost_forward.2
$region0: #{unet_innermost_forward.2}
  #allocation0 [shape = 'u32[]', space=smem, size = 0x4, offset = 0x4, fixed_abs, tag = 'smem constant byte address 0x4 - core index']
  #allocation1 [shape = 'u32[144,128]{1,0:T(1,128)}', space=vmem, size = 0x12000, scoped, tag = 'internal scratch']
  #allocation2 [shape = 'bf16[10,10,8]{2,1,0:T(8,128)(2,1)}', space=vmem, size = 0xa000, scoped, tag = 'scratch operand']
  #allocation3 [shape = 'bf16[64,32]{1,0:T(8,128)(2,1)}', space=vmem, size = 0x4000, scoped, tag = 'scratch operand']
  %s0 = inlined_call_operand.vmem [shape: f32[2,9,9,16], index: 0, kind: input, shape index: {}]
  %s1 = inlined_call_operand.vmem [shape: bf16[4,16,8], index: 1, kind: input, shape index: {}]
  %s2 = inlined_call_operand.vmem [shape: bf16[4,32,4], index: 2, kind: input, shape index: {}]
  %s3 = inlined_call_operand.vmem [shape: f32[2,2,2,8,8,4], index: 3, kind: output, shape index: {0}]
  %s4 = inlined_call_operand.vmem [shape: f32[2,2,4], index: 4, kind: output, shape index: {1}]
  %5 = xla_tuple %s3, %s4
  %s6 = sld [smem:[#allocation0]]
  $region53: #{unet_innermost_forward.2} parent=0
    _
  %s8 = ssub.s32 1, %s6
  %s9 = scalar_select 0, %s8, %s6
  loop: start=0, step=1, limit=4
  $region2: #{unet_innermost_forward.2} parent=0 // loop_pre_header
    _
  $region3: #{unet_innermost_forward.2} parent=0 // loop_header
    %s11 = sphi 0, %s15
    %p12 = scmp.ge.s32.totalorder %s11, 4
    %s21 = sphi 0, %s23
    %s24 = sphi 0, %s21
    %s25 = sphi 0, %s24
    %s41 = sphi 0, %s25
    %s45 = sphi 0, %s45
    %s47 = sphi 0, %s45
    %s48 = sphi 0, %s47
    %s62 = sphi 0, %s48
    %s66 = sphi 0, %s66
    %s68 = sphi 0, %s66
    %s69 = sphi 0, %s68
    %s83 = sphi 0, %s69
    %s89 = sphi 0, %s91
    %s92 = sphi 0, %s89
    %s93 = sphi 0, %s92
    %s109 = sphi 0, %s93
    %s115 = sphi 0, %s117
    %s118 = sphi 0, %s115
    %s119 = sphi 0, %s118
    %s135 = sphi 0, %s119
  $region4: #{unet_innermost_forward.2} parent=0 // loop_header_branch
    %14 = sbr.rel (%p12) target = $region8
  $region5: #{unet_innermost_forward.2} parent=0 // loop_body
    %s16 = ssub.s32 %s11, 1
    %s17 = ssub.s32 %s11, 2
    %s18 = sadd.s32 %s11, 1
    %s19 = ssub.s32 %s11, %s18
    %p20 = scmp.eq.s32.totalorder %s19, 0
    %s22 = sadd.s32 %s21, 1
    %s23 = scalar_select %p20, %s21, %s22
    %p26 = pneg %p20
    %p27 = scmp.eq.s32.totalorder %s11, 1
    %p28 = por %p26, %p27
    %p29 = scmp.ne.s32.totalorder %s21, %s24
    %p30 = scmp.eq.s32.totalorder %s11, 0
    %p31 = por %p29, %p30
    %p32 = scmp.ne.s32.totalorder %s21, %s24
    %p33 = scmp.eq.s32.totalorder %s16, 1
    %p34 = por %p32, %p33
    %p35 = scmp.ne.s32.totalorder %s24, %s25
    %p36 = scmp.eq.s32.totalorder %s16, 0
    %p37 = por %p35, %p36
    %p38 = scmp.ne.s32.totalorder %s24, %s25
    %p39 = scmp.eq.s32.totalorder %s17, 1
    %p40 = por %p38, %p39
    %p42 = scmp.ne.s32.totalorder %s25, %s41
    %p43 = scmp.eq.s32.totalorder %s17, 0
    %p44 = por %p42, %p43
    %s46 = sadd.s32 %s45, 1
    %p49 = scmp.eq.s32.totalorder %s11, 1
    %p50 = scmp.ne.s32.totalorder %s45, %s47
    %p51 = scmp.eq.s32.totalorder %s11, 0
    %p52 = por %p50, %p51
    %p53 = scmp.ne.s32.totalorder %s45, %s47
    %p54 = scmp.eq.s32.totalorder %s16, 1
    %p55 = por %p53, %p54
    %p56 = scmp.ne.s32.totalorder %s47, %s48
    %p57 = scmp.eq.s32.totalorder %s16, 0
    %p58 = por %p56, %p57
    %p59 = scmp.ne.s32.totalorder %s47, %s48
    %p60 = scmp.eq.s32.totalorder %s17, 1
    %p61 = por %p59, %p60
    %p63 = scmp.ne.s32.totalorder %s48, %s62
    %p64 = scmp.eq.s32.totalorder %s17, 0
    %p65 = por %p63, %p64
    %s67 = sadd.s32 %s66, 1
    %p70 = scmp.eq.s32.totalorder %s11, 1
    %p71 = scmp.ne.s32.totalorder %s66, %s68
    %p72 = scmp.eq.s32.totalorder %s11, 0
    %p73 = por %p71, %p72
    %p74 = scmp.ne.s32.totalorder %s66, %s68
    %p75 = scmp.eq.s32.totalorder %s16, 1
    %p76 = por %p74, %p75
    %p77 = scmp.ne.s32.totalorder %s68, %s69
    %p78 = scmp.eq.s32.totalorder %s16, 0
    %p79 = por %p77, %p78
    %p80 = scmp.ne.s32.totalorder %s68, %s69
    %p81 = scmp.eq.s32.totalorder %s17, 1
    %p82 = por %p80, %p81
    %p84 = scmp.ne.s32.totalorder %s69, %s83
    %p85 = scmp.eq.s32.totalorder %s17, 0
    %p86 = por %p84, %p85
    %s87 = ssub.s32 %s11, %s18
    %p88 = scmp.eq.s32.totalorder %s87, 0
    %s90 = sadd.s32 %s89, 1
    %s91 = scalar_select %p88, %s89, %s90
    %p94 = pneg %p88
    %p95 = scmp.eq.s32.totalorder %s11, 1
    %p96 = por %p94, %p95
    %p97 = scmp.ne.s32.totalorder %s89, %s92
    %p98 = scmp.eq.s32.totalorder %s11, 0
    %p99 = por %p97, %p98
    %p100 = scmp.ne.s32.totalorder %s89, %s92
    %p101 = scmp.eq.s32.totalorder %s16, 1
    %p102 = por %p100, %p101
    %p103 = scmp.ne.s32.totalorder %s92, %s93
    %p104 = scmp.eq.s32.totalorder %s16, 0
    %p105 = por %p103, %p104
    %p106 = scmp.ne.s32.totalorder %s92, %s93
    %p107 = scmp.eq.s32.totalorder %s17, 1
    %p108 = por %p106, %p107
    %p110 = scmp.ne.s32.totalorder %s93, %s109
    %p111 = scmp.eq.s32.totalorder %s17, 0
    %p112 = por %p110, %p111
    %s113 = ssub.s32 %s11, %s18
    %p114 = scmp.eq.s32.totalorder %s113, 0
    %s116 = sadd.s32 %s115, 1
    %s117 = scalar_select %p114, %s115, %s116
    %p120 = pneg %p114
    %p121 = scmp.eq.s32.totalorder %s11, 1
    %p122 = por %p120, %p121
    %p123 = scmp.ne.s32.totalorder %s115, %s118
    %p124 = scmp.eq.s32.totalorder %s11, 0
    %p125 = por %p123, %p124
    %p126 = scmp.ne.s32.totalorder %s115, %s118
    %p127 = scmp.eq.s32.totalorder %s16, 1
    %p128 = por %p126, %p127
    %p129 = scmp.ne.s32.totalorder %s118, %s119
    %p130 = scmp.eq.s32.totalorder %s16, 0
    %p131 = por %p129, %p130
    %p132 = scmp.ne.s32.totalorder %s118, %s119
    %p133 = scmp.eq.s32.totalorder %s17, 1
    %p134 = por %p132, %p133
    %p136 = scmp.ne.s32.totalorder %s119, %s135
    %p137 = scmp.eq.s32.totalorder %s17, 0
    %p138 = por %p136, %p137
    %p139 = scmp.le.s32.totalorder 1, %s11
    %p140 = scmp.lt.s32.totalorder %s11, 3
    %p141 = pnand %p139, %p140
    %p142 = pneg %p141
    // Predicated region
    $region9: #{unet_innermost_forward.2} parent=5 // pred_check
      _
    $region10: #{unet_innermost_forward.2} parent=5 // pred_check_branch
      %144 = sbr.rel (%p141) target = $region12
    $region11: #{unet_innermost_forward.2} parent=5 // pred_region
      %s145 = ssub.s32 %s11, 1
      // Predicated region
      $region13: #{unet_innermost_forward.2} parent=11 // pred_check
        %p146 = pneg %p58
      $region14: #{unet_innermost_forward.2} parent=11 // pred_check_branch
        %148 = sbr.rel (%p146) target = $region16
      $region15: #{unet_innermost_forward.2} parent=11 // pred_region
        _
      $region16: #{unet_innermost_forward.2} parent=11 // pred_fallthru
        _
      // Predicated region
      $region17: #{unet_innermost_forward.2} parent=11 // pred_check
        %p149 = pneg %p79
      $region18: #{unet_innermost_forward.2} parent=11 // pred_check_branch
        %151 = sbr.rel (%p149) target = $region20
      $region19: #{unet_innermost_forward.2} parent=11 // pred_region
        _
      $region20: #{unet_innermost_forward.2} parent=11 // pred_fallthru
        _
    $region12: #{unet_innermost_forward.2} parent=5 // pred_fallthru
      _
    %p152 = scmp.lt.s32.totalorder %s11, 2
    // Predicated region
    $region21: #{unet_innermost_forward.2} parent=5 // pred_check
      %p153 = pneg %p152
    $region22: #{unet_innermost_forward.2} parent=5 // pred_check_branch
      %155 = sbr.rel (%p153) target = $region24
    $region23: #{unet_innermost_forward.2} parent=5 // pred_region
      // Predicated region
      $region25: #{unet_innermost_forward.2} parent=23 // pred_check
        %p156 = pneg %p31
      $region26: #{unet_innermost_forward.2} parent=23 // pred_check_branch
        %158 = sbr.rel (%p156) target = $region28
      $region27: #{unet_innermost_forward.2} parent=23 // pred_region
        %p159 = scmp.lt.s32.totalorder %s11, 1
        %s160 = scalar_select %p159, %s11, 1
        %s161 = smul.addr %s160, 18
        %s162 = smul.addr %s161, 8
        %s163 = scalar_lea.vmem %s0, %s162
      $region28: #{unet_innermost_forward.2} parent=23 // pred_fallthru
        _
    $region24: #{unet_innermost_forward.2} parent=5 // pred_fallthru
      _
    %p164 = scmp.le.s32.totalorder 1, %s11
    %p165 = scmp.lt.s32.totalorder %s11, 3
    %p166 = pnand %p164, %p165
    %p167 = pneg %p166
    // Predicated region
    $region29: #{unet_innermost_forward.2} parent=5 // pred_check
      _
    $region30: #{unet_innermost_forward.2} parent=5 // pred_check_branch
      %169 = sbr.rel (%p166) target = $region32
    $region31: #{unet_innermost_forward.2} parent=5 // pred_region
      %s170 = ssub.s32 %s11, 1
      %p171 = scmp.lt.s32.totalorder %s16, 1
      %s172 = scalar_select %p171, %s16, 1
      %s173 = smul.addr %s172, 18
      %s174 = smul.addr %s173, 8
      %s175 = scalar_lea.vmem %s0, %s174
      %p176 = pneg %p37
      %p177 = pneg %p34
      %p178 = pneg %p58
      %p179 = pneg %p55
      %p180 = pneg %p79
      %p181 = pneg %p76
      %p182 = pneg %p105
      %p183 = pneg %p102
      %p184 = scmp.lt.s32.totalorder %s16, 1
      %s185 = scalar_select %p184, %s16, 1
      %s186 = smul.addr %s185, 32
      %s187 = smul.addr %s186, 8
      %s188 = scalar_lea.vmem %s3, %s187
      %p189 = pneg %p131
      %p190 = pneg %p128
      %p191 = scmp.lt.s32.totalorder %s16, 1
      %s192 = scalar_select %p191, %s16, 1
      %s193 = smul.addr %s192, 2
      %s194 = scalar_lea.vmem %s4, %s193
      %p195 = scmp.lt.s32.totalorder %s16, 1
      %s196 = scalar_select %p195, %s16, 1
      %s197 = smul.addr %s196, 18
      %s198 = smul.addr %s197, 8
      %s199 = scalar_lea.vmem %s0, %s198
      %p200 = scmp.lt.s32.totalorder %s16, 1
      %s201 = scalar_select %p200, %s16, 1
      %s202 = smul.addr %s201, 32
      %s203 = smul.addr %s202, 8
      %s204 = scalar_lea.vmem %s3, %s203
      %p205 = scmp.lt.s32.totalorder %s16, 1
      %s206 = scalar_select %p205, %s16, 1
      %s207 = smul.addr %s206, 2
      %s208 = scalar_lea.vmem %s4, %s207
      %v210 = vld [vmem:[%s199] sm:$0xff]
      %v211 = vld [vmem:[%s199 + $0x8] sm:$0x1]
      %v212 = vld [vmem:[%s199 + $0x10] sm:$0xff]
      %v213 = vld [vmem:[%s199 + $0x18] sm:$0x1]
      %v214 = vld [vmem:[%s199 + $0x20] sm:$0xff]
      %v215 = vld [vmem:[%s199 + $0x28] sm:$0x1]
      %v216 = vld [vmem:[%s199 + $0x30] sm:$0xff]
      %v217 = vld [vmem:[%s199 + $0x38] sm:$0x1]
      %v218 = vld [vmem:[%s199 + $0x40] sm:$0xff]
      %v219 = vld [vmem:[%s199 + $0x48] sm:$0x1]
      %v220 = vld [vmem:[%s199 + $0x50] sm:$0xff]
      %v221 = vld [vmem:[%s199 + $0x58] sm:$0x1]
      %v222 = vld [vmem:[%s199 + $0x60] sm:$0xff]
      %v223 = vld [vmem:[%s199 + $0x68] sm:$0x1]
      %v224 = vld [vmem:[%s199 + $0x70] sm:$0xff]
      %v225 = vld [vmem:[%s199 + $0x78] sm:$0x1]
      %v226 = vld [vmem:[%s199 + $0x80] sm:$0xff]
      %v227 = vld [vmem:[%s199 + $0x88] sm:$0x1]
      %vm228 = vcmp.gt.f32.partialorder %v210, 0.0
      %vm229 = vcmp.gt.f32.partialorder %v211, 0.0
      %vm230 = vcmp.gt.f32.partialorder %v212, 0.0
      %vm231 = vcmp.gt.f32.partialorder %v213, 0.0
      %vm232 = vcmp.gt.f32.partialorder %v214, 0.0
      %vm233 = vcmp.gt.f32.partialorder %v215, 0.0
      %vm234 = vcmp.gt.f32.partialorder %v216, 0.0
      %vm235 = vcmp.gt.f32.partialorder %v217, 0.0
      %vm236 = vcmp.gt.f32.partialorder %v218, 0.0
      %vm237 = vcmp.gt.f32.partialorder %v219, 0.0
      %vm238 = vcmp.gt.f32.partialorder %v220, 0.0
      %vm239 = vcmp.gt.f32.partialorder %v221, 0.0
      %vm240 = vcmp.gt.f32.partialorder %v222, 0.0
      %vm241 = vcmp.gt.f32.partialorder %v223, 0.0
      %vm242 = vcmp.gt.f32.partialorder %v224, 0.0
      %vm243 = vcmp.gt.f32.partialorder %v225, 0.0
      %vm244 = vcmp.gt.f32.partialorder %v226, 0.0
      %vm245 = vcmp.gt.f32.partialorder %v227, 0.0
      %v246 = vmul.f32 %v210, 0.2
      %v247 = vmul.f32 %v211, 0.2
      %v248 = vmul.f32 %v212, 0.2
      %v249 = vmul.f32 %v213, 0.2
      %v250 = vmul.f32 %v214, 0.2
      %v251 = vmul.f32 %v215, 0.2
      %v252 = vmul.f32 %v216, 0.2
      %v253 = vmul.f32 %v217, 0.2
      %v254 = vmul.f32 %v218, 0.2
      %v255 = vmul.f32 %v219, 0.2
      %v256 = vmul.f32 %v220, 0.2
      %v257 = vmul.f32 %v221, 0.2
      %v258 = vmul.f32 %v222, 0.2
      %v259 = vmul.f32 %v223, 0.2
      %v260 = vmul.f32 %v224, 0.2
      %v261 = vmul.f32 %v225, 0.2
      %v262 = vmul.f32 %v226, 0.2
      %v263 = vmul.f32 %v227, 0.2
      %v264 = vsel %vm228, %v210, %v246
      %v265 = vsel %vm229, %v211, %v247
      %v266 = vsel %vm230, %v212, %v248
      %v267 = vsel %vm231, %v213, %v249
      %v268 = vsel %vm232, %v214, %v250
      %v269 = vsel %vm233, %v215, %v251
      %v270 = vsel %vm234, %v216, %v252
      %v271 = vsel %vm235, %v217, %v253
      %v272 = vsel %vm236, %v218, %v254
      %v273 = vsel %vm237, %v219, %v255
      %v274 = vsel %vm238, %v220, %v256
      %v275 = vsel %vm239, %v221, %v257
      %v276 = vsel %vm240, %v222, %v258
      %v277 = vsel %vm241, %v223, %v259
      %v278 = vsel %vm242, %v224, %v260
      %v279 = vsel %vm243, %v225, %v261
      %v280 = vsel %vm244, %v226, %v262
      %v281 = vsel %vm245, %v227, %v263
      %v282 = vpack.c.bf16 %v265, %v264
      %v283 = vpack.c.bf16 %v267, %v266
      %v284 = vpack.c.bf16 %v269, %v268
      %v285 = vpack.c.bf16 %v271, %v270
      %v286 = vpack.c.bf16 %v273, %v272
      %v287 = vpack.c.bf16 %v275, %v274
      %v288 = vpack.c.bf16 %v277, %v276
      %v289 = vpack.c.bf16 %v279, %v278
      %v290 = vpack.c.bf16 %v281, %v280
      %v291 = vld [vmem:[%s1] sm:$0xf]
      %v292 = vld [vmem:[%s1 + $0x4] sm:$0xf]
      %v301 = vunpack.c.l.b16 %v282
      %v302 = vunpack.c.h.b16 %v282
      %v303 = vunpack.c.l.b16 %v283
      %v304 = vunpack.c.h.b16 %v283
      %v305 = vunpack.c.l.b16 %v284
      %v306 = vunpack.c.h.b16 %v284
      %v307 = vunpack.c.l.b16 %v285
      %v308 = vunpack.c.h.b16 %v285
      %v309 = vunpack.c.l.b16 %v286
      %v310 = vunpack.c.h.b16 %v286
      %v311 = vunpack.c.l.b16 %v287
      %v312 = vunpack.c.h.b16 %v287
      %v313 = vunpack.c.l.b16 %v288
      %v314 = vunpack.c.h.b16 %v288
      %v315 = vunpack.c.l.b16 %v289
      %v316 = vunpack.c.h.b16 %v289
      %v317 = vpack.c.b16 %v301, %v301
      %v318 = vpack.c.b16 %v302, %v302
      %v319 = vpack.c.b16 %v303, %v303
      %v320 = vpack.c.b16 %v304, %v304
      %v321 = vpack.c.b16 %v305, %v305
      %v322 = vpack.c.b16 %v306, %v306
      %v323 = vpack.c.b16 %v307, %v307
      %v324 = vpack.c.b16 %v308, %v308
      %v325 = vpack.c.b16 %v309, %v309
      %v326 = vpack.c.b16 %v310, %v310
      %v327 = vpack.c.b16 %v311, %v311
      %v328 = vpack.c.b16 %v312, %v312
      %v329 = vpack.c.b16 %v313, %v313
      %v330 = vpack.c.b16 %v314, %v314
      %v331 = vpack.c.b16 %v315, %v315
      %v332 = vpack.c.b16 %v316, %v316
      %vm333 = vsmask.f32 3328
      %vm334 = vsmask.f32 7440
      %vm335 = vmor %vm333, %vm334
      %v337 = vshrl.u32 %v317, 16
      %v339 = vrot.slane %v337, 4
      %v340 = vshll.u32 %v317, 16
      %v342 = vrot.slane %v340, 5
      %v343 = vor.u32 %v339, %v342
      %v344 = vrot.slane %v343, 4
      %v346 = vshll.u32 %v318, 16
      %v348 = vrot.slane %v346, 5
      %v349 = vsel %vm335, %v344, %v348
      %v351 = vshrl.u32 %v319, 16
      %v353 = vrot.slane %v351, 4
      %v354 = vshll.u32 %v319, 16
      %v356 = vrot.slane %v354, 5
      %v357 = vor.u32 %v353, %v356
      %v358 = vrot.slane %v357, 4
      %v360 = vshll.u32 %v320, 16
      %v362 = vrot.slane %v360, 5
      %v363 = vsel %vm335, %v358, %v362
      %v365 = vshrl.u32 %v321, 16
      %v367 = vrot.slane %v365, 4
      %v368 = vshll.u32 %v321, 16
      %v370 = vrot.slane %v368, 5
      %v371 = vor.u32 %v367, %v370
      %v372 = vrot.slane %v371, 4
      %v374 = vshll.u32 %v322, 16
      %v376 = vrot.slane %v374, 5
      %v377 = vsel %vm335, %v372, %v376
      %v379 = vshrl.u32 %v323, 16
      %v381 = vrot.slane %v379, 4
      %v382 = vshll.u32 %v323, 16
      %v384 = vrot.slane %v382, 5
      %v385 = vor.u32 %v381, %v384
      %v386 = vrot.slane %v385, 4
      %v388 = vshll.u32 %v324, 16
      %v390 = vrot.slane %v388, 5
      %v391 = vsel %vm335, %v386, %v390
      %v393 = vshrl.u32 %v325, 16
      %v395 = vrot.slane %v393, 4
      %v396 = vshll.u32 %v325, 16
      %v398 = vrot.slane %v396, 5
      %v399 = vor.u32 %v395, %v398
      %v400 = vrot.slane %v399, 4
      %v402 = vshll.u32 %v326, 16
      %v404 = vrot.slane %v402, 5
      %v405 = vsel %vm335, %v400, %v404
      %v407 = vshrl.u32 %v327, 16
      %v409 = vrot.slane %v407, 4
      %v410 = vshll.u32 %v327, 16
      %v412 = vrot.slane %v410, 5
      %v413 = vor.u32 %v409, %v412
      %v414 = vrot.slane %v413, 4
      %v416 = vshll.u32 %v328, 16
      %v418 = vrot.slane %v416, 5
      %v419 = vsel %vm335, %v414, %v418
      %v421 = vshrl.u32 %v329, 16
      %v423 = vrot.slane %v421, 4
      %v424 = vshll.u32 %v329, 16
      %v426 = vrot.slane %v424, 5
      %v427 = vor.u32 %v423, %v426
      %v428 = vrot.slane %v427, 4
      %v430 = vshll.u32 %v330, 16
      %v432 = vrot.slane %v430, 5
      %v433 = vsel %vm335, %v428, %v432
      %v435 = vshrl.u32 %v331, 16
      %v437 = vrot.slane %v435, 4
      %v438 = vshll.u32 %v331, 16
      %v440 = vrot.slane %v438, 5
      %v441 = vor.u32 %v437, %v440
      %v442 = vrot.slane %v441, 4
      %v444 = vshll.u32 %v332, 16
      %v446 = vrot.slane %v444, 5
      %v447 = vsel %vm335, %v442, %v446
      %s448 = scalar_lea.vmem %s1, 8
      %v449 = vld [vmem:[%s448] sm:$0xf]
      %v450 = vld [vmem:[%s448 + $0x4] sm:$0xf]
      %v451 = vunpack.c.l.b16 %v349
      %v452 = vunpack.c.l.b16 %v363
      %v453 = vunpack.c.l.b16 %v377
      %v454 = vunpack.c.l.b16 %v391
      %v455 = vunpack.c.l.b16 %v405
      %v456 = vunpack.c.l.b16 %v419
      %v457 = vunpack.c.l.b16 %v433
      %v458 = vunpack.c.l.b16 %v447
      %v459 = vpack.c.b16 %v452, %v451
      %v460 = vpack.c.b16 %v454, %v453
      %v461 = vpack.c.b16 %v456, %v455
      %v462 = vpack.c.b16 %v458, %v457
      %v465 = vunpack.c.l.b16 %v449
      %v466 = vunpack.c.l.b16 %v450
      %v467 = vpack.c.b16 %v466, %v465
      %vm469 = vcmask 130048
      %v471 = vsel %vm469, %v459, 0
      %v474 = vsel %vm469, %v460, 0
      %v477 = vsel %vm469, %v461, 0
      %v480 = vsel %vm469, %v462, 0
      %482 = vmatprep.subr.bf16.mxu0 0
      %483 = vmatpush1.bf16.msra.mxu0 0
      %484 = vmatprep.subr.bf16.mxu0 0
      %485 = vmatpush1.bf16.msra.mxu0 0
      %486 = vmatprep.subr.bf16.mxu0 0
      %487 = vmatpush1.bf16.msra.mxu0 0
      %488 = vmatprep.subr.bf16.mxu0 0
      %489 = vmatpush1.bf16.msra.mxu0 0
      %490 = vmatprep.subr.bf16.mxu0 0
      %491 = vmatpush1.bf16.msra.mxu0 0
      %492 = vmatprep.subr.bf16.mxu0 0
      %493 = vmatpush1.bf16.msra.mxu0 0
      %494 = vmatprep.subr.bf16.mxu0 0
      %495 = vmatpush1.bf16.msra.mxu0 0
      %496 = vmatprep.subr.bf16.mxu0 0
      %497 = vmatpush1.bf16.msra.mxu0 %v467
      %498 = vmatprep.subr.bf16.mxu0 0
      %499 = vmatpush2.bf16.msra.mxu0 0
      %500 = vmatprep.subr.bf16.mxu0 0
      %501 = vmatpush2.bf16.msra.mxu0 0
      %502 = vmatprep.subr.bf16.mxu0 0
      %503 = vmatpush2.bf16.msra.mxu0 0
      %504 = vmatprep.subr.bf16.mxu0 0
      %505 = vmatpush2.bf16.msra.mxu0 0
      %506 = vmatprep.subr.bf16.mxu0 0
      %507 = vmatpush2.bf16.msra.mxu0 0
      %508 = vmatprep.subr.bf16.mxu0 0
      %509 = vmatpush2.bf16.msra.mxu0 0
      %510 = vmatprep.subr.bf16.mxu0 0
      %511 = vmatpush2.bf16.msra.mxu0 0
      %512 = vmatprep.subr.bf16.mxu0 0
      %513 = vmatpush2.bf16.msra.mxu0 0
      %514 = vmatprep.mubr.bf16.mxu0 0
      %515 = vmatmul.mubr.bf16.gmra.mxu0 %v471
      %v516 = vpop.f32.mrf.mxu0
      %v517 = vadd.f32 0.0, %v516
      %v518 = vpop.f32.mrf.mxu0
      %v519 = vpop.f32.mrf.mxu0
      %v520 = vadd.f32 0.0, %v519
      %v521 = vpop.f32.mrf.mxu0
      %522 = vmatprep.mubr.bf16.mxu0 0
      %523 = vmatmul.mubr.bf16.gmra.mxu0 %v474
      %v524 = vpop.f32.mrf.mxu0
      %v525 = vadd.f32 0.0, %v524
      %v526 = vpop.f32.mrf.mxu0
      %v527 = vpop.f32.mrf.mxu0
      %v528 = vadd.f32 0.0, %v527
      %v529 = vpop.f32.mrf.mxu0
      %530 = vmatprep.mubr.bf16.mxu0 0
      %531 = vmatmul.mubr.bf16.gmra.mxu0 %v477
      %v532 = vpop.f32.mrf.mxu0
      %v533 = vadd.f32 0.0, %v532
      %v534 = vpop.f32.mrf.mxu0
      %v535 = vpop.f32.mrf.mxu0
      %v536 = vadd.f32 0.0, %v535
      %v537 = vpop.f32.mrf.mxu0
      %538 = vmatprep.mubr.bf16.mxu0 0
      %539 = vmatmul.mubr.bf16.gmra.mxu0 %v480
      %v540 = vpop.f32.mrf.mxu0
      %v541 = vadd.f32 0.0, %v540
      %v542 = vpop.f32.mrf.mxu0
      %v543 = vpop.f32.mrf.mxu0
      %v544 = vadd.f32 0.0, %v543
      %v545 = vpop.f32.mrf.mxu0
      %546 = vdwg.mxu0
      %v547 = vpack.c.b16 %v303, %v301
      %v548 = vpack.c.b16 %v307, %v305
      %v549 = vpack.c.b16 %v311, %v309
      %v550 = vpack.c.b16 %v315, %v313
      %v553 = vunpack.c.l.b16 %v291
      %v554 = vunpack.c.l.b16 %v292
      %v555 = vpack.c.b16 %v554, %v553
      %v558 = vsel %vm469, %v547, 0
      %v561 = vsel %vm469, %v548, 0
      %v564 = vsel %vm469, %v549, 0
      %v567 = vsel %vm469, %v550, 0
      %569 = vmatprep.subr.bf16.mxu0 0
      %570 = vmatpush1.bf16.msra.mxu0 0
      %571 = vmatprep.subr.bf16.mxu0 0
      %572 = vmatpush1.bf16.msra.mxu0 0
      %573 = vmatprep.subr.bf16.mxu0 0
      %574 = vmatpush1.bf16.msra.mxu0 0
      %575 = vmatprep.subr.bf16.mxu0 0
      %576 = vmatpush1.bf16.msra.mxu0 0
      %577 = vmatprep.subr.bf16.mxu0 0
      %578 = vmatpush1.bf16.msra.mxu0 0
      %579 = vmatprep.subr.bf16.mxu0 0
      %580 = vmatpush1.bf16.msra.mxu0 0
      %581 = vmatprep.subr.bf16.mxu0 0
      %582 = vmatpush1.bf16.msra.mxu0 0
      %583 = vmatprep.subr.bf16.mxu0 0
      %584 = vmatpush1.bf16.msra.mxu0 %v555
      %585 = vmatprep.subr.bf16.mxu0 0
      %586 = vmatpush2.bf16.msra.mxu0 0
      %587 = vmatprep.subr.bf16.mxu0 0
      %588 = vmatpush2.bf16.msra.mxu0 0
      %589 = vmatprep.subr.bf16.mxu0 0
      %590 = vmatpush2.bf16.msra.mxu0 0
      %591 = vmatprep.subr.bf16.mxu0 0
      %592 = vmatpush2.bf16.msra.mxu0 0
      %593 = vmatprep.subr.bf16.mxu0 0
      %594 = vmatpush2.bf16.msra.mxu0 0
      %595 = vmatprep.subr.bf16.mxu0 0
      %596 = vmatpush2.bf16.msra.mxu0 0
      %597 = vmatprep.subr.bf16.mxu0 0
      %598 = vmatpush2.bf16.msra.mxu0 0
      %599 = vmatprep.subr.bf16.mxu0 0
      %600 = vmatpush2.bf16.msra.mxu0 0
      %601 = vmatprep.mubr.bf16.mxu0 0
      %602 = vmatmul.mubr.bf16.gmra.mxu0 %v558
      %v603 = vpop.f32.mrf.mxu0
      %v604 = vadd.f32 %v517, %v603
      %v605 = vpop.f32.mrf.mxu0
      %v606 = vpop.f32.mrf.mxu0
      %v607 = vadd.f32 %v520, %v606
      %v608 = vpop.f32.mrf.mxu0
      %609 = vmatprep.mubr.bf16.mxu0 0
      %610 = vmatmul.mubr.bf16.gmra.mxu0 %v561
      %v611 = vpop.f32.mrf.mxu0
      %v612 = vadd.f32 %v525, %v611
      %v613 = vpop.f32.mrf.mxu0
      %v614 = vpop.f32.mrf.mxu0
      %v615 = vadd.f32 %v528, %v614
      %v616 = vpop.f32.mrf.mxu0
      %617 = vmatprep.mubr.bf16.mxu0 0
      %618 = vmatmul.mubr.bf16.gmra.mxu0 %v564
      %v619 = vpop.f32.mrf.mxu0
      %v620 = vadd.f32 %v533, %v619
      %v621 = vpop.f32.mrf.mxu0
      %v622 = vpop.f32.mrf.mxu0
      %v623 = vadd.f32 %v536, %v622
      %v624 = vpop.f32.mrf.mxu0
      %625 = vmatprep.mubr.bf16.mxu0 0
      %626 = vmatmul.mubr.bf16.gmra.mxu0 %v567
      %v627 = vpop.f32.mrf.mxu0
      %v628 = vadd.f32 %v541, %v627
      %v629 = vpop.f32.mrf.mxu0
      %v630 = vpop.f32.mrf.mxu0
      %v631 = vadd.f32 %v544, %v630
      %v632 = vpop.f32.mrf.mxu0
      %633 = vdwg.mxu0
      %s634 = scalar_lea.vmem %s1, 16
      %v635 = vld [vmem:[%s634] sm:$0xf]
      %v636 = vld [vmem:[%s634 + $0x4] sm:$0xf]
      %v638 = vunpack.c.l.b16 %v290
      %v639 = vpack.c.b16 %v305, %v303
      %v640 = vpack.c.b16 %v309, %v307
      %v641 = vpack.c.b16 %v313, %v311
      %v642 = vpack.c.b16 %v638, %v315
      %v645 = vunpack.c.l.b16 %v635
      %v646 = vunpack.c.l.b16 %v636
      %v647 = vpack.c.b16 %v646, %v645
      %v650 = vsel %vm469, %v639, 0
      %v653 = vsel %vm469, %v640, 0
      %v656 = vsel %vm469, %v641, 0
      %v659 = vsel %vm469, %v642, 0
      %661 = vmatprep.subr.bf16.mxu0 0
      %662 = vmatpush1.bf16.msra.mxu0 0
      %663 = vmatprep.subr.bf16.mxu0 0
      %664 = vmatpush1.bf16.msra.mxu0 0
      %665 = vmatprep.subr.bf16.mxu0 0
      %666 = vmatpush1.bf16.msra.mxu0 0
      %667 = vmatprep.subr.bf16.mxu0 0
      %668 = vmatpush1.bf16.msra.mxu0 0
      %669 = vmatprep.subr.bf16.mxu0 0
      %670 = vmatpush1.bf16.msra.mxu0 0
      %671 = vmatprep.subr.bf16.mxu0 0
      %672 = vmatpush1.bf16.msra.mxu0 0
      %673 = vmatprep.subr.bf16.mxu0 0
      %674 = vmatpush1.bf16.msra.mxu0 0
      %675 = vmatprep.subr.bf16.mxu0 0
      %676 = vmatpush1.bf16.msra.mxu0 %v647
      %677 = vmatprep.subr.bf16.mxu0 0
      %678 = vmatpush2.bf16.msra.mxu0 0
      %679 = vmatprep.subr.bf16.mxu0 0
      %680 = vmatpush2.bf16.msra.mxu0 0
      %681 = vmatprep.subr.bf16.mxu0 0
      %682 = vmatpush2.bf16.msra.mxu0 0
      %683 = vmatprep.subr.bf16.mxu0 0
      %684 = vmatpush2.bf16.msra.mxu0 0
      %685 = vmatprep.subr.bf16.mxu0 0
      %686 = vmatpush2.bf16.msra.mxu0 0
      %687 = vmatprep.subr.bf16.mxu0 0
      %688 = vmatpush2.bf16.msra.mxu0 0
      %689 = vmatprep.subr.bf16.mxu0 0
      %690 = vmatpush2.bf16.msra.mxu0 0
      %691 = vmatprep.subr.bf16.mxu0 0
      %692 = vmatpush2.bf16.msra.mxu0 0
      %693 = vmatprep.mubr.bf16.mxu0 0
      %694 = vmatmul.mubr.bf16.gmra.mxu0 %v650
      %v695 = vpop.f32.mrf.mxu0
      %v696 = vadd.f32 0.0, %v695
      %v697 = vpop.f32.mrf.mxu0
      %v698 = vpop.f32.mrf.mxu0
      %v699 = vadd.f32 0.0, %v698
      %v700 = vpop.f32.mrf.mxu0
      %701 = vmatprep.mubr.bf16.mxu0 0
      %702 = vmatmul.mubr.bf16.gmra.mxu0 %v653
      %v703 = vpop.f32.mrf.mxu0
      %v704 = vadd.f32 0.0, %v703
      %v705 = vpop.f32.mrf.mxu0
      %v706 = vpop.f32.mrf.mxu0
      %v707 = vadd.f32 0.0, %v706
      %v708 = vpop.f32.mrf.mxu0
      %709 = vmatprep.mubr.bf16.mxu0 0
      %710 = vmatmul.mubr.bf16.gmra.mxu0 %v656
      %v711 = vpop.f32.mrf.mxu0
      %v712 = vadd.f32 0.0, %v711
      %v713 = vpop.f32.mrf.mxu0
      %v714 = vpop.f32.mrf.mxu0
      %v715 = vadd.f32 0.0, %v714
      %v716 = vpop.f32.mrf.mxu0
      %717 = vmatprep.mubr.bf16.mxu0 0
      %718 = vmatmul.mubr.bf16.gmra.mxu0 %v659
      %v719 = vpop.f32.mrf.mxu0
      %v720 = vadd.f32 0.0, %v719
      %v721 = vpop.f32.mrf.mxu0
      %v722 = vpop.f32.mrf.mxu0
      %v723 = vadd.f32 0.0, %v722
      %v724 = vpop.f32.mrf.mxu0
      %725 = vdwg.mxu0
      %v726 = vadd.f32 %v604, %v696
      %v727 = vadd.f32 %v607, %v699
      %v728 = vadd.f32 %v612, %v704
      %v729 = vadd.f32 %v615, %v707
      %v730 = vadd.f32 %v620, %v712
      %v731 = vadd.f32 %v623, %v715
      %v732 = vadd.f32 %v628, %v720
      %v733 = vadd.f32 %v631, %v723
      %v734 = vunpack.c.h.b16 %v290
      %v735 = vpack.c.b16 %v638, %v638
      %v736 = vpack.c.b16 %v734, %v734
      %v738 = vshrl.u32 %v735, 16
      %v740 = vrot.slane %v738, 4
      %v741 = vshll.u32 %v735, 16
      %v743 = vrot.slane %v741, 5
      %v744 = vor.u32 %v740, %v743
      %v745 = vrot.slane %v744, 4
      %v747 = vshll.u32 %v736, 16
      %v749 = vrot.slane %v747, 5
      %v750 = vsel %vm335, %v745, %v749
      %s751 = scalar_lea.vmem %s1, 24
      %v752 = vld [vmem:[%s751] sm:$0xf]
      %v753 = vld [vmem:[%s751 + $0x4] sm:$0xf]
      %v754 = vunpack.c.l.b16 %v750
      %v755 = vpack.c.b16 %v453, %v452
      %v756 = vpack.c.b16 %v455, %v454
      %v757 = vpack.c.b16 %v457, %v456
      %v758 = vpack.c.b16 %v754, %v458
      %v761 = vunpack.c.l.b16 %v752
      %v762 = vunpack.c.l.b16 %v753
      %v763 = vpack.c.b16 %v762, %v761
      %v766 = vsel %vm469, %v755, 0
      %v769 = vsel %vm469, %v756, 0
      %v772 = vsel %vm469, %v757, 0
      %v775 = vsel %vm469, %v758, 0
      %777 = vmatprep.subr.bf16.mxu0 0
      %778 = vmatpush1.bf16.msra.mxu0 0
      %779 = vmatprep.subr.bf16.mxu0 0
      %780 = vmatpush1.bf16.msra.mxu0 0
      %781 = vmatprep.subr.bf16.mxu0 0
      %782 = vmatpush1.bf16.msra.mxu0 0
      %783 = vmatprep.subr.bf16.mxu0 0
      %784 = vmatpush1.bf16.msra.mxu0 0
      %785 = vmatprep.subr.bf16.mxu0 0
      %786 = vmatpush1.bf16.msra.mxu0 0
      %787 = vmatprep.subr.bf16.mxu0 0
      %788 = vmatpush1.bf16.msra.mxu0 0
      %789 = vmatprep.subr.bf16.mxu0 0
      %790 = vmatpush1.bf16.msra.mxu0 0
      %791 = vmatprep.subr.bf16.mxu0 0
      %792 = vmatpush1.bf16.msra.mxu0 %v763
      %793 = vmatprep.subr.bf16.mxu0 0
      %794 = vmatpush2.bf16.msra.mxu0 0
      %795 = vmatprep.subr.bf16.mxu0 0
      %796 = vmatpush2.bf16.msra.mxu0 0
      %797 = vmatprep.subr.bf16.mxu0 0
      %798 = vmatpush2.bf16.msra.mxu0 0
      %799 = vmatprep.subr.bf16.mxu0 0
      %800 = vmatpush2.bf16.msra.mxu0 0
      %801 = vmatprep.subr.bf16.mxu0 0
      %802 = vmatpush2.bf16.msra.mxu0 0
      %803 = vmatprep.subr.bf16.mxu0 0
      %804 = vmatpush2.bf16.msra.mxu0 0
      %805 = vmatprep.subr.bf16.mxu0 0
      %806 = vmatpush2.bf16.msra.mxu0 0
      %807 = vmatprep.subr.bf16.mxu0 0
      %808 = vmatpush2.bf16.msra.mxu0 0
      %809 = vmatprep.mubr.bf16.mxu0 0
      %810 = vmatmul.mubr.bf16.gmra.mxu0 %v766
      %v811 = vpop.f32.mrf.mxu0
      %v812 = vadd.f32 0.0, %v811
      %v813 = vpop.f32.mrf.mxu0
      %v814 = vpop.f32.mrf.mxu0
      %v815 = vadd.f32 0.0, %v814
      %v816 = vpop.f32.mrf.mxu0
      %817 = vmatprep.mubr.bf16.mxu0 0
      %818 = vmatmul.mubr.bf16.gmra.mxu0 %v769
      %v819 = vpop.f32.mrf.mxu0
      %v820 = vadd.f32 0.0, %v819
      %v821 = vpop.f32.mrf.mxu0
      %v822 = vpop.f32.mrf.mxu0
      %v823 = vadd.f32 0.0, %v822
      %v824 = vpop.f32.mrf.mxu0
      %825 = vmatprep.mubr.bf16.mxu0 0
      %826 = vmatmul.mubr.bf16.gmra.mxu0 %v772
      %v827 = vpop.f32.mrf.mxu0
      %v828 = vadd.f32 0.0, %v827
      %v829 = vpop.f32.mrf.mxu0
      %v830 = vpop.f32.mrf.mxu0
      %v831 = vadd.f32 0.0, %v830
      %v832 = vpop.f32.mrf.mxu0
      %833 = vmatprep.mubr.bf16.mxu0 0
      %834 = vmatmul.mubr.bf16.gmra.mxu0 %v775
      %v835 = vpop.f32.mrf.mxu0
      %v836 = vadd.f32 0.0, %v835
      %v837 = vpop.f32.mrf.mxu0
      %v838 = vpop.f32.mrf.mxu0
      %v839 = vadd.f32 0.0, %v838
      %v840 = vpop.f32.mrf.mxu0
      %841 = vdwg.mxu0
      %v842 = vadd.f32 %v726, %v812
      %v843 = vadd.f32 %v727, %v815
      %v844 = vadd.f32 %v728, %v820
      %v845 = vadd.f32 %v729, %v823
      %v846 = vadd.f32 %v730, %v828
      %v847 = vadd.f32 %v731, %v831
      %v848 = vadd.f32 %v732, %v836
      %v849 = vadd.f32 %v733, %v839
      %vm850 = vcmask 60416
      %851 = vst.msk [vmem:[#allocation2] sm:$0xf] %vm850, 0
      %vm852 = vcmask 57344
      %853 = vst.msk [vmem:[#allocation2 + $0x4] sm:$0x1] %vm852, 0
      %s854 = scalar_lea.vmem [#allocation2], 72
      %855 = vst.msk [vmem:[%s854] sm:$0xf] %vm850, 0
      %856 = vst.msk [vmem:[%s854 + $0x4] sm:$0x1] %vm852, 0
      %s857 = scalar_lea.vmem [#allocation2], 8
      %vm858 = vcmask 57344
      %vm859 = vsmask.f32 256
      %vm860 = vmand %vm858, %vm859
      %v861 = vld [vmem:[%s857] sm:$0x1]
      %v862 = vsel %vm860, 0, %v861
      %863 = vst [vmem:[%s857] sm:$0x1] %v862
      %v864 = vld [vmem:[%s857 + $0x8] sm:$0x1]
      %v865 = vsel %vm860, 0, %v864
      %866 = vst [vmem:[%s857 + $0x8] sm:$0x1] %v865
      %v867 = vld [vmem:[%s857 + $0x10] sm:$0x1]
      %v868 = vsel %vm860, 0, %v867
      %869 = vst [vmem:[%s857 + $0x10] sm:$0x1] %v868
      %v870 = vld [vmem:[%s857 + $0x18] sm:$0x1]
      %v871 = vsel %vm860, 0, %v870
      %872 = vst [vmem:[%s857 + $0x18] sm:$0x1] %v871
      %v873 = vld [vmem:[%s857 + $0x20] sm:$0x1]
      %v874 = vsel %vm860, 0, %v873
      %875 = vst [vmem:[%s857 + $0x20] sm:$0x1] %v874
      %v876 = vld [vmem:[%s857 + $0x28] sm:$0x1]
      %v877 = vsel %vm860, 0, %v876
      %878 = vst [vmem:[%s857 + $0x28] sm:$0x1] %v877
      %v879 = vld [vmem:[%s857 + $0x30] sm:$0x1]
      %v880 = vsel %vm860, 0, %v879
      %881 = vst [vmem:[%s857 + $0x30] sm:$0x1] %v880
      %v882 = vld [vmem:[%s857 + $0x38] sm:$0x1]
      %v883 = vsel %vm860, 0, %v882
      %884 = vst [vmem:[%s857 + $0x38] sm:$0x1] %v883
      %vm885 = vsmask.f32 7938
      %vm886 = vmand %vm858, %vm885
      %v887 = vld [vmem:[%s857 + $0x4] sm:$0x1]
      %v888 = vsel %vm886, 0, %v887
      %889 = vst [vmem:[%s857 + $0x4] sm:$0x1] %v888
      %v890 = vld [vmem:[%s857 + $0xc] sm:$0x1]
      %v891 = vsel %vm886, 0, %v890
      %892 = vst [vmem:[%s857 + $0xc] sm:$0x1] %v891
      %v893 = vld [vmem:[%s857 + $0x14] sm:$0x1]
      %v894 = vsel %vm886, 0, %v893
      %895 = vst [vmem:[%s857 + $0x14] sm:$0x1] %v894
      %v896 = vld [vmem:[%s857 + $0x1c] sm:$0x1]
      %v897 = vsel %vm886, 0, %v896
      %898 = vst [vmem:[%s857 + $0x1c] sm:$0x1] %v897
      %v899 = vld [vmem:[%s857 + $0x24] sm:$0x1]
      %v900 = vsel %vm886, 0, %v899
      %901 = vst [vmem:[%s857 + $0x24] sm:$0x1] %v900
      %v902 = vld [vmem:[%s857 + $0x2c] sm:$0x1]
      %v903 = vsel %vm886, 0, %v902
      %904 = vst [vmem:[%s857 + $0x2c] sm:$0x1] %v903
      %v905 = vld [vmem:[%s857 + $0x34] sm:$0x1]
      %v906 = vsel %vm886, 0, %v905
      %907 = vst [vmem:[%s857 + $0x34] sm:$0x1] %v906
      %v908 = vld [vmem:[%s857 + $0x3c] sm:$0x1]
      %v909 = vsel %vm886, 0, %v908
      %910 = vst [vmem:[%s857 + $0x3c] sm:$0x1] %v909
      %v911 = vmax.f32 %v842, 0.0
      %v912 = vmax.f32 %v843, 0.0
      %v913 = vmax.f32 %v844, 0.0
      %v914 = vmax.f32 %v845, 0.0
      %v915 = vmax.f32 %v846, 0.0
      %v916 = vmax.f32 %v847, 0.0
      %v917 = vmax.f32 %v848, 0.0
      %v918 = vmax.f32 %v849, 0.0
      %v919 = vpack.c.bf16 %v912, %v911
      %v920 = vpack.c.bf16 %v914, %v913
      %v921 = vpack.c.bf16 %v916, %v915
      %v922 = vpack.c.bf16 %v918, %v917
      %v927 = vunpack.c.l.b16 %v919
      %v928 = vunpack.c.h.b16 %v919
      %v929 = vunpack.c.l.b16 %v920
      %v930 = vunpack.c.h.b16 %v920
      %v931 = vunpack.c.l.b16 %v921
      %v932 = vunpack.c.h.b16 %v921
      %v933 = vunpack.c.l.b16 %v922
      %v934 = vunpack.c.h.b16 %v922
      %v935 = vpack.c.b16 %v927, %v927
      %v936 = vpack.c.b16 %v928, %v928
      %v937 = vpack.c.b16 %v929, %v929
      %v938 = vpack.c.b16 %v930, %v930
      %v939 = vpack.c.b16 %v931, %v931
      %v940 = vpack.c.b16 %v932, %v932
      %v941 = vpack.c.b16 %v933, %v933
      %v942 = vpack.c.b16 %v934, %v934
      %v944 = vshrl.u32 %v935, 16
      %v946 = vrot.slane %v944, 7
      %v947 = vshll.u32 %v935, 16
      %v949 = vor.u32 %v946, %v947
      %v950 = vrot.slane %v946, 4
      %v952 = vshrl.u32 %v936, 16
      %v954 = vrot.slane %v952, 7
      %v955 = vshll.u32 %v936, 16
      %v957 = vor.u32 %v954, %v955
      %v958 = vrot.slane %v954, 4
      %v960 = vshrl.u32 %v937, 16
      %v962 = vrot.slane %v960, 7
      %v963 = vshll.u32 %v937, 16
      %v965 = vor.u32 %v962, %v963
      %v966 = vrot.slane %v962, 4
      %v968 = vshrl.u32 %v938, 16
      %v970 = vrot.slane %v968, 7
      %v971 = vshll.u32 %v938, 16
      %v973 = vor.u32 %v970, %v971
      %v974 = vrot.slane %v970, 4
      %v976 = vshrl.u32 %v939, 16
      %v978 = vrot.slane %v976, 7
      %v979 = vshll.u32 %v939, 16
      %v981 = vor.u32 %v978, %v979
      %v982 = vrot.slane %v978, 4
      %v984 = vshrl.u32 %v940, 16
      %v986 = vrot.slane %v984, 7
      %v987 = vshll.u32 %v940, 16
      %v989 = vor.u32 %v986, %v987
      %v990 = vrot.slane %v986, 4
      %v992 = vshrl.u32 %v941, 16
      %v994 = vrot.slane %v992, 7
      %v995 = vshll.u32 %v941, 16
      %v997 = vor.u32 %v994, %v995
      %v998 = vrot.slane %v994, 4
      %v1000 = vshrl.u32 %v942, 16
      %v1002 = vrot.slane %v1000, 7
      %v1003 = vshll.u32 %v942, 16
      %v1005 = vor.u32 %v1002, %v1003
      %v1006 = vrot.slane %v1002, 4
      %vm1023 = vcmask 60416
      %vm1024 = vmand %vm1023, %vm885
      %v1025 = vld [vmem:[%s857] sm:$0xf]
      %v1026 = vsel %vm1024, %v949, %v1025
      %1027 = vst [vmem:[%s857] sm:$0xf] %v1026
      %v1028 = vld [vmem:[%s857 + $0x4] sm:$0x1]
      %v1029 = vsel %vm860, %v950, %v1028
      %1030 = vst [vmem:[%s857 + $0x4] sm:$0x1] %v1029
      %v1031 = vld [vmem:[%s857 + $0x8] sm:$0xf]
      %v1032 = vsel %vm1024, %v957, %v1031
      %1033 = vst [vmem:[%s857 + $0x8] sm:$0xf] %v1032
      %v1034 = vld [vmem:[%s857 + $0xc] sm:$0x1]
      %v1035 = vsel %vm860, %v958, %v1034
      %1036 = vst [vmem:[%s857 + $0xc] sm:$0x1] %v1035
      %v1037 = vld [vmem:[%s857 + $0x10] sm:$0xf]
      %v1038 = vsel %vm1024, %v965, %v1037
      %1039 = vst [vmem:[%s857 + $0x10] sm:$0xf] %v1038
      %v1040 = vld [vmem:[%s857 + $0x14] sm:$0x1]
      %v1041 = vsel %vm860, %v966, %v1040
      %1042 = vst [vmem:[%s857 + $0x14] sm:$0x1] %v1041
      %v1043 = vld [vmem:[%s857 + $0x18] sm:$0xf]
      %v1044 = vsel %vm1024, %v973, %v1043
      %1045 = vst [vmem:[%s857 + $0x18] sm:$0xf] %v1044
      %v1046 = vld [vmem:[%s857 + $0x1c] sm:$0x1]
      %v1047 = vsel %vm860, %v974, %v1046
      %1048 = vst [vmem:[%s857 + $0x1c] sm:$0x1] %v1047
      %v1049 = vld [vmem:[%s857 + $0x20] sm:$0xf]
      %v1050 = vsel %vm1024, %v981, %v1049
      %1051 = vst [vmem:[%s857 + $0x20] sm:$0xf] %v1050
      %v1052 = vld [vmem:[%s857 + $0x24] sm:$0x1]
      %v1053 = vsel %vm860, %v982, %v1052
      %1054 = vst [vmem:[%s857 + $0x24] sm:$0x1] %v1053
      %v1055 = vld [vmem:[%s857 + $0x28] sm:$0xf]
      %v1056 = vsel %vm1024, %v989, %v1055
      %1057 = vst [vmem:[%s857 + $0x28] sm:$0xf] %v1056
      %v1058 = vld [vmem:[%s857 + $0x2c] sm:$0x1]
      %v1059 = vsel %vm860, %v990, %v1058
      %1060 = vst [vmem:[%s857 + $0x2c] sm:$0x1] %v1059
      %v1061 = vld [vmem:[%s857 + $0x30] sm:$0xf]
      %v1062 = vsel %vm1024, %v997, %v1061
      %1063 = vst [vmem:[%s857 + $0x30] sm:$0xf] %v1062
      %v1064 = vld [vmem:[%s857 + $0x34] sm:$0x1]
      %v1065 = vsel %vm860, %v998, %v1064
      %1066 = vst [vmem:[%s857 + $0x34] sm:$0x1] %v1065
      %v1067 = vld [vmem:[%s857 + $0x38] sm:$0xf]
      %v1068 = vsel %vm1024, %v1005, %v1067
      %1069 = vst [vmem:[%s857 + $0x38] sm:$0xf] %v1068
      %v1070 = vld [vmem:[%s857 + $0x3c] sm:$0x1]
      %v1071 = vsel %vm860, %v1006, %v1070
      %1072 = vst [vmem:[%s857 + $0x3c] sm:$0x1] %v1071
      %v1073 = vld [vmem:[#allocation2] sm:$0xf]
      %v1074 = vld [vmem:[#allocation2 + $0x8] sm:$0xf]
      %v1075 = vld [vmem:[#allocation2 + $0x10] sm:$0xf]
      %v1076 = vld [vmem:[#allocation2 + $0x18] sm:$0xf]
      %v1077 = vld [vmem:[#allocation2 + $0x20] sm:$0xf]
      %v1078 = vld [vmem:[#allocation2 + $0x28] sm:$0xf]
      %v1079 = vld [vmem:[#allocation2 + $0x30] sm:$0xf]
      %v1080 = vld [vmem:[#allocation2 + $0x38] sm:$0xf]
      %1081 = vst.msk [vmem:[#allocation3] sm:$0xf] %vm850, %v1073
      %1082 = vst.msk [vmem:[#allocation3 + $0x4] sm:$0xf] %vm850, %v1074
      %1083 = vst.msk [vmem:[#allocation3 + $0x8] sm:$0xf] %vm850, %v1075
      %1084 = vst.msk [vmem:[#allocation3 + $0xc] sm:$0xf] %vm850, %v1076
      %1085 = vst.msk [vmem:[#allocation3 + $0x10] sm:$0xf] %vm850, %v1077
      %1086 = vst.msk [vmem:[#allocation3 + $0x14] sm:$0xf] %vm850, %v1078
      %1087 = vst.msk [vmem:[#allocation3 + $0x18] sm:$0xf] %vm850, %v1079
      %1088 = vst.msk [vmem:[#allocation3 + $0x1c] sm:$0xf] %vm850, %v1080
      %v1089 = vld [vmem:[#allocation2] sm:$0xf]
      %v1090 = vld [vmem:[#allocation2 + $0x4] sm:$0x1]
      %v1091 = vld [vmem:[#allocation2 + $0x8] sm:$0xf]
      %v1092 = vld [vmem:[#allocation2 + $0xc] sm:$0x1]
      %v1093 = vld [vmem:[#allocation2 + $0x10] sm:$0xf]
      %v1094 = vld [vmem:[#allocation2 + $0x14] sm:$0x1]
      %v1095 = vld [vmem:[#allocation2 + $0x18] sm:$0xf]
      %v1096 = vld [vmem:[#allocation2 + $0x1c] sm:$0x1]
      %v1097 = vld [vmem:[#allocation2 + $0x20] sm:$0xf]
      %v1098 = vld [vmem:[#allocation2 + $0x24] sm:$0x1]
      %v1099 = vld [vmem:[#allocation2 + $0x28] sm:$0xf]
      %v1100 = vld [vmem:[#allocation2 + $0x2c] sm:$0x1]
      %v1101 = vld [vmem:[#allocation2 + $0x30] sm:$0xf]
      %v1102 = vld [vmem:[#allocation2 + $0x34] sm:$0x1]
      %v1103 = vld [vmem:[#allocation2 + $0x38] sm:$0xf]
      %v1104 = vld [vmem:[#allocation2 + $0x3c] sm:$0x1]
      %v1106 = vshrl.u32 %v1089, 16
      %v1108 = vrot.slane %v1106, 4
      %v1109 = vshll.u32 %v1089, 16
      %v1111 = vrot.slane %v1109, 5
      %v1112 = vor.u32 %v1108, %v1111
      %v1113 = vrot.slane %v1112, 4
      %v1115 = vshll.u32 %v1090, 16
      %v1117 = vrot.slane %v1115, 5
      %v1118 = vsel %vm335, %v1113, %v1117
      %v1120 = vshrl.u32 %v1091, 16
      %v1122 = vrot.slane %v1120, 4
      %v1123 = vshll.u32 %v1091, 16
      %v1125 = vrot.slane %v1123, 5
      %v1126 = vor.u32 %v1122, %v1125
      %v1127 = vrot.slane %v1126, 4
      %v1129 = vshll.u32 %v1092, 16
      %v1131 = vrot.slane %v1129, 5
      %v1132 = vsel %vm335, %v1127, %v1131
      %v1134 = vshrl.u32 %v1093, 16
      %v1136 = vrot.slane %v1134, 4
      %v1137 = vshll.u32 %v1093, 16
      %v1139 = vrot.slane %v1137, 5
      %v1140 = vor.u32 %v1136, %v1139
      %v1141 = vrot.slane %v1140, 4
      %v1143 = vshll.u32 %v1094, 16
      %v1145 = vrot.slane %v1143, 5
      %v1146 = vsel %vm335, %v1141, %v1145
      %v1148 = vshrl.u32 %v1095, 16
      %v1150 = vrot.slane %v1148, 4
      %v1151 = vshll.u32 %v1095, 16
      %v1153 = vrot.slane %v1151, 5
      %v1154 = vor.u32 %v1150, %v1153
      %v1155 = vrot.slane %v1154, 4
      %v1157 = vshll.u32 %v1096, 16
      %v1159 = vrot.slane %v1157, 5
      %v1160 = vsel %vm335, %v1155, %v1159
      %v1162 = vshrl.u32 %v1097, 16
      %v1164 = vrot.slane %v1162, 4
      %v1165 = vshll.u32 %v1097, 16
      %v1167 = vrot.slane %v1165, 5
      %v1168 = vor.u32 %v1164, %v1167
      %v1169 = vrot.slane %v1168, 4
      %v1171 = vshll.u32 %v1098, 16
      %v1173 = vrot.slane %v1171, 5
      %v1174 = vsel %vm335, %v1169, %v1173
      %v1176 = vshrl.u32 %v1099, 16
      %v1178 = vrot.slane %v1176, 4
      %v1179 = vshll.u32 %v1099, 16
      %v1181 = vrot.slane %v1179, 5
      %v1182 = vor.u32 %v1178, %v1181
      %v1183 = vrot.slane %v1182, 4
      %v1185 = vshll.u32 %v1100, 16
      %v1187 = vrot.slane %v1185, 5
      %v1188 = vsel %vm335, %v1183, %v1187
      %v1190 = vshrl.u32 %v1101, 16
      %v1192 = vrot.slane %v1190, 4
      %v1193 = vshll.u32 %v1101, 16
      %v1195 = vrot.slane %v1193, 5
      %v1196 = vor.u32 %v1192, %v1195
      %v1197 = vrot.slane %v1196, 4
      %v1199 = vshll.u32 %v1102, 16
      %v1201 = vrot.slane %v1199, 5
      %v1202 = vsel %vm335, %v1197, %v1201
      %v1204 = vshrl.u32 %v1103, 16
      %v1206 = vrot.slane %v1204, 4
      %v1207 = vshll.u32 %v1103, 16
      %v1209 = vrot.slane %v1207, 5
      %v1210 = vor.u32 %v1206, %v1209
      %v1211 = vrot.slane %v1210, 4
      %v1213 = vshll.u32 %v1104, 16
      %v1215 = vrot.slane %v1213, 5
      %v1216 = vsel %vm335, %v1211, %v1215
      %1217 = vrot.lane.b32.xlu0 %v1118, 8
      %v1218 = vpop.permute.xlu0 %1217
      %1219 = vrot.lane.b32.xlu0 %v1132, 8
      %v1220 = vpop.permute.xlu0 %1219
      %1221 = vrot.lane.b32.xlu0 %v1146, 8
      %v1222 = vpop.permute.xlu0 %1221
      %1223 = vrot.lane.b32.xlu0 %v1160, 8
      %v1224 = vpop.permute.xlu0 %1223
      %1225 = vrot.lane.b32.xlu0 %v1174, 8
      %v1226 = vpop.permute.xlu0 %1225
      %1227 = vrot.lane.b32.xlu0 %v1188, 8
      %v1228 = vpop.permute.xlu0 %1227
      %1229 = vrot.lane.b32.xlu0 %v1202, 8
      %v1230 = vpop.permute.xlu0 %1229
      %1231 = vrot.lane.b32.xlu0 %v1216, 8
      %v1232 = vpop.permute.xlu0 %1231
      %vm1241 = vcmask 126016
      %1242 = vst.msk [vmem:[#allocation3] sm:$0xf] %vm1241, %v1218
      %1243 = vst.msk [vmem:[#allocation3 + $0x4] sm:$0xf] %vm1241, %v1220
      %1244 = vst.msk [vmem:[#allocation3 + $0x8] sm:$0xf] %vm1241, %v1222
      %1245 = vst.msk [vmem:[#allocation3 + $0xc] sm:$0xf] %vm1241, %v1224
      %1246 = vst.msk [vmem:[#allocation3 + $0x10] sm:$0xf] %vm1241, %v1226
      %1247 = vst.msk [vmem:[#allocation3 + $0x14] sm:$0xf] %vm1241, %v1228
      %1248 = vst.msk [vmem:[#allocation3 + $0x18] sm:$0xf] %vm1241, %v1230
      %1249 = vst.msk [vmem:[#allocation3 + $0x1c] sm:$0xf] %vm1241, %v1232
      %v1250 = vld [vmem:[%s857] sm:$0xf]
      %v1251 = vld [vmem:[%s857 + $0x8] sm:$0xf]
      %v1252 = vld [vmem:[%s857 + $0x10] sm:$0xf]
      %v1253 = vld [vmem:[%s857 + $0x18] sm:$0xf]
      %v1254 = vld [vmem:[%s857 + $0x20] sm:$0xf]
      %v1255 = vld [vmem:[%s857 + $0x28] sm:$0xf]
      %v1256 = vld [vmem:[%s857 + $0x30] sm:$0xf]
      %v1257 = vld [vmem:[%s857 + $0x38] sm:$0xf]
      %1266 = vrot.lane.b32.xlu0 %v1250, 16
      %v1267 = vpop.permute.xlu0 %1266
      %1268 = vrot.lane.b32.xlu0 %v1251, 16
      %v1269 = vpop.permute.xlu0 %1268
      %1270 = vrot.lane.b32.xlu0 %v1252, 16
      %v1271 = vpop.permute.xlu0 %1270
      %1272 = vrot.lane.b32.xlu0 %v1253, 16
      %v1273 = vpop.permute.xlu0 %1272
      %1274 = vrot.lane.b32.xlu0 %v1254, 16
      %v1275 = vpop.permute.xlu0 %1274
      %1276 = vrot.lane.b32.xlu0 %v1255, 16
      %v1277 = vpop.permute.xlu0 %1276
      %1278 = vrot.lane.b32.xlu0 %v1256, 16
      %v1279 = vpop.permute.xlu0 %1278
      %1280 = vrot.lane.b32.xlu0 %v1257, 16
      %v1281 = vpop.permute.xlu0 %1280
      %vm1290 = vcmask 191616
      %1291 = vst.msk [vmem:[#allocation3] sm:$0xf] %vm1290, %v1267
      %1292 = vst.msk [vmem:[#allocation3 + $0x4] sm:$0xf] %vm1290, %v1269
      %1293 = vst.msk [vmem:[#allocation3 + $0x8] sm:$0xf] %vm1290, %v1271
      %1294 = vst.msk [vmem:[#allocation3 + $0xc] sm:$0xf] %vm1290, %v1273
      %1295 = vst.msk [vmem:[#allocation3 + $0x10] sm:$0xf] %vm1290, %v1275
      %1296 = vst.msk [vmem:[#allocation3 + $0x14] sm:$0xf] %vm1290, %v1277
      %1297 = vst.msk [vmem:[#allocation3 + $0x18] sm:$0xf] %vm1290, %v1279
      %1298 = vst.msk [vmem:[#allocation3 + $0x1c] sm:$0xf] %vm1290, %v1281
      %v1299 = vld [vmem:[%s857] sm:$0xf]
      %v1300 = vld [vmem:[%s857 + $0x4] sm:$0x1]
      %v1301 = vld [vmem:[%s857 + $0x8] sm:$0xf]
      %v1302 = vld [vmem:[%s857 + $0xc] sm:$0x1]
      %v1303 = vld [vmem:[%s857 + $0x10] sm:$0xf]
      %v1304 = vld [vmem:[%s857 + $0x14] sm:$0x1]
      %v1305 = vld [vmem:[%s857 + $0x18] sm:$0xf]
      %v1306 = vld [vmem:[%s857 + $0x1c] sm:$0x1]
      %v1307 = vld [vmem:[%s857 + $0x20] sm:$0xf]
      %v1308 = vld [vmem:[%s857 + $0x24] sm:$0x1]
      %v1309 = vld [vmem:[%s857 + $0x28] sm:$0xf]
      %v1310 = vld [vmem:[%s857 + $0x2c] sm:$0x1]
      %v1311 = vld [vmem:[%s857 + $0x30] sm:$0xf]
      %v1312 = vld [vmem:[%s857 + $0x34] sm:$0x1]
      %v1313 = vld [vmem:[%s857 + $0x38] sm:$0xf]
      %v1314 = vld [vmem:[%s857 + $0x3c] sm:$0x1]
      %v1316 = vshrl.u32 %v1299, 16
      %v1318 = vrot.slane %v1316, 4
      %v1319 = vshll.u32 %v1299, 16
      %v1321 = vrot.slane %v1319, 5
      %v1322 = vor.u32 %v1318, %v1321
      %v1323 = vrot.slane %v1322, 4
      %v1325 = vshll.u32 %v1300, 16
      %v1327 = vrot.slane %v1325, 5
      %v1328 = vsel %vm335, %v1323, %v1327
      %v1330 = vshrl.u32 %v1301, 16
      %v1332 = vrot.slane %v1330, 4
      %v1333 = vshll.u32 %v1301, 16
      %v1335 = vrot.slane %v1333, 5
      %v1336 = vor.u32 %v1332, %v1335
      %v1337 = vrot.slane %v1336, 4
      %v1339 = vshll.u32 %v1302, 16
      %v1341 = vrot.slane %v1339, 5
      %v1342 = vsel %vm335, %v1337, %v1341
      %v1344 = vshrl.u32 %v1303, 16
      %v1346 = vrot.slane %v1344, 4
      %v1347 = vshll.u32 %v1303, 16
      %v1349 = vrot.slane %v1347, 5
      %v1350 = vor.u32 %v1346, %v1349
      %v1351 = vrot.slane %v1350, 4
      %v1353 = vshll.u32 %v1304, 16
      %v1355 = vrot.slane %v1353, 5
      %v1356 = vsel %vm335, %v1351, %v1355
      %v1358 = vshrl.u32 %v1305, 16
      %v1360 = vrot.slane %v1358, 4
      %v1361 = vshll.u32 %v1305, 16
      %v1363 = vrot.slane %v1361, 5
      %v1364 = vor.u32 %v1360, %v1363
      %v1365 = vrot.slane %v1364, 4
      %v1367 = vshll.u32 %v1306, 16
      %v1369 = vrot.slane %v1367, 5
      %v1370 = vsel %vm335, %v1365, %v1369
      %v1372 = vshrl.u32 %v1307, 16
      %v1374 = vrot.slane %v1372, 4
      %v1375 = vshll.u32 %v1307, 16
      %v1377 = vrot.slane %v1375, 5
      %v1378 = vor.u32 %v1374, %v1377
      %v1379 = vrot.slane %v1378, 4
      %v1381 = vshll.u32 %v1308, 16
      %v1383 = vrot.slane %v1381, 5
      %v1384 = vsel %vm335, %v1379, %v1383
      %v1386 = vshrl.u32 %v1309, 16
      %v1388 = vrot.slane %v1386, 4
      %v1389 = vshll.u32 %v1309, 16
      %v1391 = vrot.slane %v1389, 5
      %v1392 = vor.u32 %v1388, %v1391
      %v1393 = vrot.slane %v1392, 4
      %v1395 = vshll.u32 %v1310, 16
      %v1397 = vrot.slane %v1395, 5
      %v1398 = vsel %vm335, %v1393, %v1397
      %v1400 = vshrl.u32 %v1311, 16
      %v1402 = vrot.slane %v1400, 4
      %v1403 = vshll.u32 %v1311, 16
      %v1405 = vrot.slane %v1403, 5
      %v1406 = vor.u32 %v1402, %v1405
      %v1407 = vrot.slane %v1406, 4
      %v1409 = vshll.u32 %v1312, 16
      %v1411 = vrot.slane %v1409, 5
      %v1412 = vsel %vm335, %v1407, %v1411
      %v1414 = vshrl.u32 %v1313, 16
      %v1416 = vrot.slane %v1414, 4
      %v1417 = vshll.u32 %v1313, 16
      %v1419 = vrot.slane %v1417, 5
      %v1420 = vor.u32 %v1416, %v1419
      %v1421 = vrot.slane %v1420, 4
      %v1423 = vshll.u32 %v1314, 16
      %v1425 = vrot.slane %v1423, 5
      %v1426 = vsel %vm335, %v1421, %v1425
      %1427 = vrot.lane.b32.xlu0 %v1328, 24
      %v1428 = vpop.permute.xlu0 %1427
      %1429 = vrot.lane.b32.xlu0 %v1342, 24
      %v1430 = vpop.permute.xlu0 %1429
      %1431 = vrot.lane.b32.xlu0 %v1356, 24
      %v1432 = vpop.permute.xlu0 %1431
      %1433 = vrot.lane.b32.xlu0 %v1370, 24
      %v1434 = vpop.permute.xlu0 %1433
      %1435 = vrot.lane.b32.xlu0 %v1384, 24
      %v1436 = vpop.permute.xlu0 %1435
      %1437 = vrot.lane.b32.xlu0 %v1398, 24
      %v1438 = vpop.permute.xlu0 %1437
      %1439 = vrot.lane.b32.xlu0 %v1412, 24
      %v1440 = vpop.permute.xlu0 %1439
      %1441 = vrot.lane.b32.xlu0 %v1426, 24
      %v1442 = vpop.permute.xlu0 %1441
      %vm1451 = vcmask 257216
      %1452 = vst.msk [vmem:[#allocation3] sm:$0xf] %vm1451, %v1428
      %1453 = vst.msk [vmem:[#allocation3 + $0x4] sm:$0xf] %vm1451, %v1430
      %1454 = vst.msk [vmem:[#allocation3 + $0x8] sm:$0xf] %vm1451, %v1432
      %1455 = vst.msk [vmem:[#allocation3 + $0xc] sm:$0xf] %vm1451, %v1434
      %1456 = vst.msk [vmem:[#allocation3 + $0x10] sm:$0xf] %vm1451, %v1436
      %1457 = vst.msk [vmem:[#allocation3 + $0x14] sm:$0xf] %vm1451, %v1438
      %1458 = vst.msk [vmem:[#allocation3 + $0x18] sm:$0xf] %vm1451, %v1440
      %1459 = vst.msk [vmem:[#allocation3 + $0x1c] sm:$0xf] %vm1451, %v1442
      %v1460 = vld [vmem:[#allocation3] sm:$0xf]
      %v1461 = vld [vmem:[#allocation3 + $0x4] sm:$0xf]
      %v1462 = vld [vmem:[#allocation3 + $0x8] sm:$0xf]
      %v1463 = vld [vmem:[#allocation3 + $0xc] sm:$0xf]
      %v1464 = vld [vmem:[#allocation3 + $0x10] sm:$0xf]
      %v1465 = vld [vmem:[#allocation3 + $0x14] sm:$0xf]
      %v1466 = vld [vmem:[#allocation3 + $0x18] sm:$0xf]
      %v1467 = vld [vmem:[#allocation3 + $0x1c] sm:$0xf]
      %v1468 = vld [vmem:[%s2] sm:$0xf]
      %v1469 = vld [vmem:[%s2 + $0x4] sm:$0xf]
      %v1470 = vld [vmem:[%s2 + $0x8] sm:$0xf]
      %v1471 = vld [vmem:[%s2 + $0xc] sm:$0xf]
      %v1480 = vunpack.c.l.b16 %v1460
      %v1481 = vunpack.c.l.b16 %v1461
      %v1482 = vunpack.c.l.b16 %v1462
      %v1483 = vunpack.c.l.b16 %v1463
      %v1484 = vunpack.c.l.b16 %v1464
      %v1485 = vunpack.c.l.b16 %v1465
      %v1486 = vunpack.c.l.b16 %v1466
      %v1487 = vunpack.c.l.b16 %v1467
      %v1488 = vpack.c.b16 %v1481, %v1480
      %v1489 = vpack.c.b16 %v1483, %v1482
      %v1490 = vpack.c.b16 %v1485, %v1484
      %v1491 = vpack.c.b16 %v1487, %v1486
      %v1496 = vunpack.c.l.b16 %v1468
      %v1497 = vunpack.c.l.b16 %v1469
      %v1498 = vunpack.c.l.b16 %v1470
      %v1499 = vunpack.c.l.b16 %v1471
      %v1500 = vpack.c.b16 %v1497, %v1496
      %v1501 = vpack.c.b16 %v1499, %v1498
      %vm1504 = vcmask 261120
      %v1506 = vsel %vm1504, %v1488, 0
      %v1509 = vsel %vm1504, %v1489, 0
      %v1512 = vsel %vm1504, %v1490, 0
      %v1515 = vsel %vm1504, %v1491, 0
      %1517 = vmatprep.subr.bf16.mxu0 0
      %1518 = vmatpush1.bf16.msra.mxu0 0
      %1519 = vmatprep.subr.bf16.mxu0 0
      %1520 = vmatpush1.bf16.msra.mxu0 0
      %1521 = vmatprep.subr.bf16.mxu0 0
      %1522 = vmatpush1.bf16.msra.mxu0 0
      %1523 = vmatprep.subr.bf16.mxu0 0
      %1524 = vmatpush1.bf16.msra.mxu0 0
      %1525 = vmatprep.subr.bf16.mxu0 0
      %1526 = vmatpush1.bf16.msra.mxu0 0
      %1527 = vmatprep.subr.bf16.mxu0 0
      %1528 = vmatpush1.bf16.msra.mxu0 0
      %1529 = vmatprep.subr.bf16.mxu0 0
      %1530 = vmatpush1.bf16.msra.mxu0 %v1501
      %1531 = vmatprep.subr.bf16.mxu0 0
      %1532 = vmatpush1.bf16.msra.mxu0 %v1500
      %1533 = vmatprep.subr.bf16.mxu0 0
      %1534 = vmatpush2.bf16.msra.mxu0 0
      %1535 = vmatprep.subr.bf16.mxu0 0
      %1536 = vmatpush2.bf16.msra.mxu0 0
      %1537 = vmatprep.subr.bf16.mxu0 0
      %1538 = vmatpush2.bf16.msra.mxu0 0
      %1539 = vmatprep.subr.bf16.mxu0 0
      %1540 = vmatpush2.bf16.msra.mxu0 0
      %1541 = vmatprep.subr.bf16.mxu0 0
      %1542 = vmatpush2.bf16.msra.mxu0 0
      %1543 = vmatprep.subr.bf16.mxu0 0
      %1544 = vmatpush2.bf16.msra.mxu0 0
      %1545 = vmatprep.subr.bf16.mxu0 0
      %1546 = vmatpush2.bf16.msra.mxu0 0
      %1547 = vmatprep.subr.bf16.mxu0 0
      %1548 = vmatpush2.bf16.msra.mxu0 0
      %1549 = vmatprep.mubr.bf16.mxu0 0
      %1550 = vmatmul.mubr.bf16.gmra.mxu0 %v1506
      %v1551 = vpop.f32.mrf.mxu0
      %v1552 = vadd.f32 0.0, %v1551
      %v1553 = vpop.f32.mrf.mxu0
      %v1554 = vpop.f32.mrf.mxu0
      %v1555 = vadd.f32 0.0, %v1554
      %v1556 = vpop.f32.mrf.mxu0
      %1557 = vmatprep.mubr.bf16.mxu0 0
      %1558 = vmatmul.mubr.bf16.gmra.mxu0 %v1509
      %v1559 = vpop.f32.mrf.mxu0
      %v1560 = vadd.f32 0.0, %v1559
      %v1561 = vpop.f32.mrf.mxu0
      %v1562 = vpop.f32.mrf.mxu0
      %v1563 = vadd.f32 0.0, %v1562
      %v1564 = vpop.f32.mrf.mxu0
      %1565 = vmatprep.mubr.bf16.mxu0 0
      %1566 = vmatmul.mubr.bf16.gmra.mxu0 %v1512
      %v1567 = vpop.f32.mrf.mxu0
      %v1568 = vadd.f32 0.0, %v1567
      %v1569 = vpop.f32.mrf.mxu0
      %v1570 = vpop.f32.mrf.mxu0
      %v1571 = vadd.f32 0.0, %v1570
      %v1572 = vpop.f32.mrf.mxu0
      %1573 = vmatprep.mubr.bf16.mxu0 0
      %1574 = vmatmul.mubr.bf16.gmra.mxu0 %v1515
      %v1575 = vpop.f32.mrf.mxu0
      %v1576 = vadd.f32 0.0, %v1575
      %v1577 = vpop.f32.mrf.mxu0
      %v1578 = vpop.f32.mrf.mxu0
      %v1579 = vadd.f32 0.0, %v1578
      %v1580 = vpop.f32.mrf.mxu0
      %1581 = vdwg.mxu0
      %vm1582 = vcmask 31744
      %1583 = vst.msk [vmem:[%s204] sm:$0xff] %vm1582, %v1552
      %1584 = vst.msk [vmem:[%s204 + $0x8] sm:$0xff] %vm1582, %v1555
      %1585 = vst.msk [vmem:[%s204 + $0x10] sm:$0xff] %vm1582, %v1560
      %1586 = vst.msk [vmem:[%s204 + $0x18] sm:$0xff] %vm1582, %v1563
      %1587 = vst.msk [vmem:[%s204 + $0x20] sm:$0xff] %vm1582, %v1568
      %1588 = vst.msk [vmem:[%s204 + $0x28] sm:$0xff] %vm1582, %v1571
      %1589 = vst.msk [vmem:[%s204 + $0x30] sm:$0xff] %vm1582, %v1576
      %1590 = vst.msk [vmem:[%s204 + $0x38] sm:$0xff] %vm1582, %v1579
      %v1591 = vsel %vm1582, %v1552, 0.0
      %v1592 = vsel %vm1582, %v1555, 0.0
      %v1593 = vadd.f32 %v1591, %v1592
      %v1594 = vsel %vm1582, %v1560, 0.0
      %v1595 = vadd.f32 %v1593, %v1594
      %v1596 = vsel %vm1582, %v1563, 0.0
      %v1597 = vadd.f32 %v1595, %v1596
      %v1598 = vsel %vm1582, %v1568, 0.0
      %v1599 = vadd.f32 %v1597, %v1598
      %v1600 = vsel %vm1582, %v1571, 0.0
      %v1601 = vadd.f32 %v1599, %v1600
      %v1602 = vsel %vm1582, %v1576, 0.0
      %v1603 = vadd.f32 %v1601, %v1602
      %v1604 = vsel %vm1582, %v1579, 0.0
      %v1605 = vadd.f32 %v1603, %v1604
      %v1606 = vrot.slane %v1605, 4
      %v1607 = vadd.f32 %v1605, %v1606
      %v1608 = vrot.slane %v1607, 2
      %v1609 = vadd.f32 %v1607, %v1608
      %v1610 = vrot.slane %v1609, 1
      %v1611 = vadd.f32 %v1609, %v1610
      %v1612 = vadd.f32 %v1611, 0.0
      %v1613 = vmul.f32 %v1552, %v1552
      %v1614 = vmul.f32 %v1555, %v1555
      %v1615 = vmul.f32 %v1560, %v1560
      %v1616 = vmul.f32 %v1563, %v1563
      %v1617 = vmul.f32 %v1568, %v1568
      %v1618 = vmul.f32 %v1571, %v1571
      %v1619 = vmul.f32 %v1576, %v1576
      %v1620 = vmul.f32 %v1579, %v1579
      %v1621 = vsel %vm1582, %v1613, 0.0
      %v1622 = vsel %vm1582, %v1614, 0.0
      %v1623 = vadd.f32 %v1621, %v1622
      %v1624 = vsel %vm1582, %v1615, 0.0
      %v1625 = vadd.f32 %v1623, %v1624
      %v1626 = vsel %vm1582, %v1616, 0.0
      %v1627 = vadd.f32 %v1625, %v1626
      %v1628 = vsel %vm1582, %v1617, 0.0
      %v1629 = vadd.f32 %v1627, %v1628
      %v1630 = vsel %vm1582, %v1618, 0.0
      %v1631 = vadd.f32 %v1629, %v1630
      %v1632 = vsel %vm1582, %v1619, 0.0
      %v1633 = vadd.f32 %v1631, %v1632
      %v1634 = vsel %vm1582, %v1620, 0.0
      %v1635 = vadd.f32 %v1633, %v1634
      %v1636 = vrot.slane %v1635, 4
      %v1637 = vadd.f32 %v1635, %v1636
      %v1638 = vrot.slane %v1637, 2
      %v1639 = vadd.f32 %v1637, %v1638
      %v1640 = vrot.slane %v1639, 1
      %v1641 = vadd.f32 %v1639, %v1640
      %v1642 = vadd.f32 %v1641, 0.0
      %v1643 = vld [vmem:[#allocation2] sm:$0xf]
      %v1644 = vld [vmem:[#allocation2 + $0x4] sm:$0x1]
      %v1645 = vld [vmem:[#allocation2 + $0x8] sm:$0xf]
      %v1646 = vld [vmem:[#allocation2 + $0xc] sm:$0x1]
      %v1647 = vld [vmem:[#allocation2 + $0x10] sm:$0xf]
      %v1648 = vld [vmem:[#allocation2 + $0x14] sm:$0x1]
      %v1649 = vld [vmem:[#allocation2 + $0x18] sm:$0xf]
      %v1650 = vld [vmem:[#allocation2 + $0x1c] sm:$0x1]
      %v1651 = vld [vmem:[#allocation2 + $0x20] sm:$0xf]
      %v1652 = vld [vmem:[#allocation2 + $0x24] sm:$0x1]
      %v1653 = vld [vmem:[#allocation2 + $0x28] sm:$0xf]
      %v1654 = vld [vmem:[#allocation2 + $0x2c] sm:$0x1]
      %v1655 = vld [vmem:[#allocation2 + $0x30] sm:$0xf]
      %v1656 = vld [vmem:[#allocation2 + $0x34] sm:$0x1]
      %v1657 = vld [vmem:[#allocation2 + $0x38] sm:$0xf]
      %v1658 = vld [vmem:[#allocation2 + $0x3c] sm:$0x1]
      %v1660 = vshrl.u32 %v1643, 16
      %v1662 = vrot.slane %v1660, 4
      %v1663 = vshll.u32 %v1643, 16
      %v1665 = vrot.slane %v1663, 5
      %v1666 = vor.u32 %v1662, %v1665
      %v1667 = vrot.slane %v1666, 4
      %v1669 = vshll.u32 %v1644, 16
      %v1671 = vrot.slane %v1669, 5
      %v1672 = vsel %vm335, %v1667, %v1671
      %v1674 = vshrl.u32 %v1645, 16
      %v1676 = vrot.slane %v1674, 4
      %v1677 = vshll.u32 %v1645, 16
      %v1679 = vrot.slane %v1677, 5
      %v1680 = vor.u32 %v1676, %v1679
      %v1681 = vrot.slane %v1680, 4
      %v1683 = vshll.u32 %v1646, 16
      %v1685 = vrot.slane %v1683, 5
      %v1686 = vsel %vm335, %v1681, %v1685
      %v1688 = vshrl.u32 %v1647, 16
      %v1690 = vrot.slane %v1688, 4
      %v1691 = vshll.u32 %v1647, 16
      %v1693 = vrot.slane %v1691, 5
      %v1694 = vor.u32 %v1690, %v1693
      %v1695 = vrot.slane %v1694, 4
      %v1697 = vshll.u32 %v1648, 16
      %v1699 = vrot.slane %v1697, 5
      %v1700 = vsel %vm335, %v1695, %v1699
      %v1702 = vshrl.u32 %v1649, 16
      %v1704 = vrot.slane %v1702, 4
      %v1705 = vshll.u32 %v1649, 16
      %v1707 = vrot.slane %v1705, 5
      %v1708 = vor.u32 %v1704, %v1707
      %v1709 = vrot.slane %v1708, 4
      %v1711 = vshll.u32 %v1650, 16
      %v1713 = vrot.slane %v1711, 5
      %v1714 = vsel %vm335, %v1709, %v1713
      %v1716 = vshrl.u32 %v1651, 16
      %v1718 = vrot.slane %v1716, 4
      %v1719 = vshll.u32 %v1651, 16
      %v1721 = vrot.slane %v1719, 5
      %v1722 = vor.u32 %v1718, %v1721
      %v1723 = vrot.slane %v1722, 4
      %v1725 = vshll.u32 %v1652, 16
      %v1727 = vrot.slane %v1725, 5
      %v1728 = vsel %vm335, %v1723, %v1727
      %v1730 = vshrl.u32 %v1653, 16
      %v1732 = vrot.slane %v1730, 4
      %v1733 = vshll.u32 %v1653, 16
      %v1735 = vrot.slane %v1733, 5
      %v1736 = vor.u32 %v1732, %v1735
      %v1737 = vrot.slane %v1736, 4
      %v1739 = vshll.u32 %v1654, 16
      %v1741 = vrot.slane %v1739, 5
      %v1742 = vsel %vm335, %v1737, %v1741
      %v1744 = vshrl.u32 %v1655, 16
      %v1746 = vrot.slane %v1744, 4
      %v1747 = vshll.u32 %v1655, 16
      %v1749 = vrot.slane %v1747, 5
      %v1750 = vor.u32 %v1746, %v1749
      %v1751 = vrot.slane %v1750, 4
      %v1753 = vshll.u32 %v1656, 16
      %v1755 = vrot.slane %v1753, 5
      %v1756 = vsel %vm335, %v1751, %v1755
      %v1758 = vshrl.u32 %v1657, 16
      %v1760 = vrot.slane %v1758, 4
      %v1761 = vshll.u32 %v1657, 16
      %v1763 = vrot.slane %v1761, 5
      %v1764 = vor.u32 %v1760, %v1763
      %v1765 = vrot.slane %v1764, 4
      %v1767 = vshll.u32 %v1658, 16
      %v1769 = vrot.slane %v1767, 5
      %v1770 = vsel %vm335, %v1765, %v1769
      %1779 = vst.msk [vmem:[#allocation3] sm:$0xf] %vm850, %v1672
      %1780 = vst.msk [vmem:[#allocation3 + $0x4] sm:$0xf] %vm850, %v1686
      %1781 = vst.msk [vmem:[#allocation3 + $0x8] sm:$0xf] %vm850, %v1700
      %1782 = vst.msk [vmem:[#allocation3 + $0xc] sm:$0xf] %vm850, %v1714
      %1783 = vst.msk [vmem:[#allocation3 + $0x10] sm:$0xf] %vm850, %v1728
      %1784 = vst.msk [vmem:[#allocation3 + $0x14] sm:$0xf] %vm850, %v1742
      %1785 = vst.msk [vmem:[#allocation3 + $0x18] sm:$0xf] %vm850, %v1756
      %1786 = vst.msk [vmem:[#allocation3 + $0x1c] sm:$0xf] %vm850, %v1770
      %v1787 = vld [vmem:[#allocation2] sm:$0xe]
      %v1788 = vld [vmem:[#allocation2 + $0x4] sm:$0x1]
      %v1789 = vld [vmem:[#allocation2 + $0x8] sm:$0xe]
      %v1790 = vld [vmem:[#allocation2 + $0xc] sm:$0x1]
      %v1791 = vld [vmem:[#allocation2 + $0x10] sm:$0xe]
      %v1792 = vld [vmem:[#allocation2 + $0x14] sm:$0x1]
      %v1793 = vld [vmem:[#allocation2 + $0x18] sm:$0xe]
      %v1794 = vld [vmem:[#allocation2 + $0x1c] sm:$0x1]
      %v1795 = vld [vmem:[#allocation2 + $0x20] sm:$0xe]
      %v1796 = vld [vmem:[#allocation2 + $0x24] sm:$0x1]
      %v1797 = vld [vmem:[#allocation2 + $0x28] sm:$0xe]
      %v1798 = vld [vmem:[#allocation2 + $0x2c] sm:$0x1]
      %v1799 = vld [vmem:[#allocation2 + $0x30] sm:$0xe]
      %v1800 = vld [vmem:[#allocation2 + $0x34] sm:$0x1]
      %v1801 = vld [vmem:[#allocation2 + $0x38] sm:$0xe]
      %v1802 = vld [vmem:[#allocation2 + $0x3c] sm:$0x1]
      %vm1819 = vcmask 1042432
      %vm1820 = vcmask 1046532
      %vm1821 = vmor %vm1819, %vm1820
      %v1822 = vrot.slane %v1787, 5
      %v1823 = vrot.slane %v1822, 4
      %v1824 = vrot.slane %v1788, 5
      %v1825 = vsel %vm1821, %v1823, %v1824
      %v1826 = vrot.slane %v1789, 5
      %v1827 = vrot.slane %v1826, 4
      %v1828 = vrot.slane %v1790, 5
      %v1829 = vsel %vm1821, %v1827, %v1828
      %v1830 = vrot.slane %v1791, 5
      %v1831 = vrot.slane %v1830, 4
      %v1832 = vrot.slane %v1792, 5
      %v1833 = vsel %vm1821, %v1831, %v1832
      %v1834 = vrot.slane %v1793, 5
      %v1835 = vrot.slane %v1834, 4
      %v1836 = vrot.slane %v1794, 5
      %v1837 = vsel %vm1821, %v1835, %v1836
      %v1838 = vrot.slane %v1795, 5
      %v1839 = vrot.slane %v1838, 4
      %v1840 = vrot.slane %v1796, 5
      %v1841 = vsel %vm1821, %v1839, %v1840
      %v1842 = vrot.slane %v1797, 5
      %v1843 = vrot.slane %v1842, 4
      %v1844 = vrot.slane %v1798, 5
      %v1845 = vsel %vm1821, %v1843, %v1844
      %v1846 = vrot.slane %v1799, 5
      %v1847 = vrot.slane %v1846, 4
      %v1848 = vrot.slane %v1800, 5
      %v1849 = vsel %vm1821, %v1847, %v1848
      %v1850 = vrot.slane %v1801, 5
      %v1851 = vrot.slane %v1850, 4
      %v1852 = vrot.slane %v1802, 5
      %v1853 = vsel %vm1821, %v1851, %v1852
      %1854 = vrot.lane.b32.xlu0 %v1825, 8
      %v1855 = vpop.permute.xlu0 %1854
      %1856 = vrot.lane.b32.xlu0 %v1829, 8
      %v1857 = vpop.permute.xlu0 %1856
      %1858 = vrot.lane.b32.xlu0 %v1833, 8
      %v1859 = vpop.permute.xlu0 %1858
      %1860 = vrot.lane.b32.xlu0 %v1837, 8
      %v1861 = vpop.permute.xlu0 %1860
      %1862 = vrot.lane.b32.xlu0 %v1841, 8
      %v1863 = vpop.permute.xlu0 %1862
      %1864 = vrot.lane.b32.xlu0 %v1845, 8
      %v1865 = vpop.permute.xlu0 %1864
      %1866 = vrot.lane.b32.xlu0 %v1849, 8
      %v1867 = vpop.permute.xlu0 %1866
      %1868 = vrot.lane.b32.xlu0 %v1853, 8
      %v1869 = vpop.permute.xlu0 %1868
      %1878 = vst.msk [vmem:[#allocation3] sm:$0xf] %vm1241, %v1855
      %1879 = vst.msk [vmem:[#allocation3 + $0x4] sm:$0xf] %vm1241, %v1857
      %1880 = vst.msk [vmem:[#allocation3 + $0x8] sm:$0xf] %vm1241, %v1859
      %1881 = vst.msk [vmem:[#allocation3 + $0xc] sm:$0xf] %vm1241, %v1861
      %1882 = vst.msk [vmem:[#allocation3 + $0x10] sm:$0xf] %vm1241, %v1863
      %1883 = vst.msk [vmem:[#allocation3 + $0x14] sm:$0xf] %vm1241, %v1865
      %1884 = vst.msk [vmem:[#allocation3 + $0x18] sm:$0xf] %vm1241, %v1867
      %1885 = vst.msk [vmem:[#allocation3 + $0x1c] sm:$0xf] %vm1241, %v1869
      %v1886 = vld [vmem:[%s857] sm:$0xf]
      %v1887 = vld [vmem:[%s857 + $0x4] sm:$0x1]
      %v1888 = vld [vmem:[%s857 + $0x8] sm:$0xf]
      %v1889 = vld [vmem:[%s857 + $0xc] sm:$0x1]
      %v1890 = vld [vmem:[%s857 + $0x10] sm:$0xf]
      %v1891 = vld [vmem:[%s857 + $0x14] sm:$0x1]
      %v1892 = vld [vmem:[%s857 + $0x18] sm:$0xf]
      %v1893 = vld [vmem:[%s857 + $0x1c] sm:$0x1]
      %v1894 = vld [vmem:[%s857 + $0x20] sm:$0xf]
      %v1895 = vld [vmem:[%s857 + $0x24] sm:$0x1]
      %v1896 = vld [vmem:[%s857 + $0x28] sm:$0xf]
      %v1897 = vld [vmem:[%s857 + $0x2c] sm:$0x1]
      %v1898 = vld [vmem:[%s857 + $0x30] sm:$0xf]
      %v1899 = vld [vmem:[%s857 + $0x34] sm:$0x1]
      %v1900 = vld [vmem:[%s857 + $0x38] sm:$0xf]
      %v1901 = vld [vmem:[%s857 + $0x3c] sm:$0x1]
      %v1903 = vshrl.u32 %v1886, 16
      %v1905 = vrot.slane %v1903, 4
      %v1906 = vshll.u32 %v1886, 16
      %v1908 = vrot.slane %v1906, 5
      %v1909 = vor.u32 %v1905, %v1908
      %v1910 = vrot.slane %v1909, 4
      %v1912 = vshll.u32 %v1887, 16
      %v1914 = vrot.slane %v1912, 5
      %v1915 = vsel %vm335, %v1910, %v1914
      %v1917 = vshrl.u32 %v1888, 16
      %v1919 = vrot.slane %v1917, 4
      %v1920 = vshll.u32 %v1888, 16
      %v1922 = vrot.slane %v1920, 5
      %v1923 = vor.u32 %v1919, %v1922
      %v1924 = vrot.slane %v1923, 4
      %v1926 = vshll.u32 %v1889, 16
      %v1928 = vrot.slane %v1926, 5
      %v1929 = vsel %vm335, %v1924, %v1928
      %v1931 = vshrl.u32 %v1890, 16
      %v1933 = vrot.slane %v1931, 4
      %v1934 = vshll.u32 %v1890, 16
      %v1936 = vrot.slane %v1934, 5
      %v1937 = vor.u32 %v1933, %v1936
      %v1938 = vrot.slane %v1937, 4
      %v1940 = vshll.u32 %v1891, 16
      %v1942 = vrot.slane %v1940, 5
      %v1943 = vsel %vm335, %v1938, %v1942
      %v1945 = vshrl.u32 %v1892, 16
      %v1947 = vrot.slane %v1945, 4
      %v1948 = vshll.u32 %v1892, 16
      %v1950 = vrot.slane %v1948, 5
      %v1951 = vor.u32 %v1947, %v1950
      %v1952 = vrot.slane %v1951, 4
      %v1954 = vshll.u32 %v1893, 16
      %v1956 = vrot.slane %v1954, 5
      %v1957 = vsel %vm335, %v1952, %v1956
      %v1959 = vshrl.u32 %v1894, 16
      %v1961 = vrot.slane %v1959, 4
      %v1962 = vshll.u32 %v1894, 16
      %v1964 = vrot.slane %v1962, 5
      %v1965 = vor.u32 %v1961, %v1964
      %v1966 = vrot.slane %v1965, 4
      %v1968 = vshll.u32 %v1895, 16
      %v1970 = vrot.slane %v1968, 5
      %v1971 = vsel %vm335, %v1966, %v1970
      %v1973 = vshrl.u32 %v1896, 16
      %v1975 = vrot.slane %v1973, 4
      %v1976 = vshll.u32 %v1896, 16
      %v1978 = vrot.slane %v1976, 5
      %v1979 = vor.u32 %v1975, %v1978
      %v1980 = vrot.slane %v1979, 4
      %v1982 = vshll.u32 %v1897, 16
      %v1984 = vrot.slane %v1982, 5
      %v1985 = vsel %vm335, %v1980, %v1984
      %v1987 = vshrl.u32 %v1898, 16
      %v1989 = vrot.slane %v1987, 4
      %v1990 = vshll.u32 %v1898, 16
      %v1992 = vrot.slane %v1990, 5
      %v1993 = vor.u32 %v1989, %v1992
      %v1994 = vrot.slane %v1993, 4
      %v1996 = vshll.u32 %v1899, 16
      %v1998 = vrot.slane %v1996, 5
      %v1999 = vsel %vm335, %v1994, %v1998
      %v2001 = vshrl.u32 %v1900, 16
      %v2003 = vrot.slane %v2001, 4
      %v2004 = vshll.u32 %v1900, 16
      %v2006 = vrot.slane %v2004, 5
      %v2007 = vor.u32 %v2003, %v2006
      %v2008 = vrot.slane %v2007, 4
      %v2010 = vshll.u32 %v1901, 16
      %v2012 = vrot.slane %v2010, 5
      %v2013 = vsel %vm335, %v2008, %v2012
      %2014 = vrot.lane.b32.xlu0 %v1915, 16
      %v2015 = vpop.permute.xlu0 %2014
      %2016 = vrot.lane.b32.xlu0 %v1929, 16
      %v2017 = vpop.permute.xlu0 %2016
      %2018 = vrot.lane.b32.xlu0 %v1943, 16
      %v2019 = vpop.permute.xlu0 %2018
      %2020 = vrot.lane.b32.xlu0 %v1957, 16
      %v2021 = vpop.permute.xlu0 %2020
      %2022 = vrot.lane.b32.xlu0 %v1971, 16
      %v2023 = vpop.permute.xlu0 %2022
      %2024 = vrot.lane.b32.xlu0 %v1985, 16
      %v2025 = vpop.permute.xlu0 %2024
      %2026 = vrot.lane.b32.xlu0 %v1999, 16
      %v2027 = vpop.permute.xlu0 %2026
      %2028 = vrot.lane.b32.xlu0 %v2013, 16
      %v2029 = vpop.permute.xlu0 %2028
      %2038 = vst.msk [vmem:[#allocation3] sm:$0xf] %vm1290, %v2015
      %2039 = vst.msk [vmem:[#allocation3 + $0x4] sm:$0xf] %vm1290, %v2017
      %2040 = vst.msk [vmem:[#allocation3 + $0x8] sm:$0xf] %vm1290, %v2019
      %2041 = vst.msk [vmem:[#allocation3 + $0xc] sm:$0xf] %vm1290, %v2021
      %2042 = vst.msk [vmem:[#allocation3 + $0x10] sm:$0xf] %vm1290, %v2023
      %2043 = vst.msk [vmem:[#allocation3 + $0x14] sm:$0xf] %vm1290, %v2025
      %2044 = vst.msk [vmem:[#allocation3 + $0x18] sm:$0xf] %vm1290, %v2027
      %2045 = vst.msk [vmem:[#allocation3 + $0x1c] sm:$0xf] %vm1290, %v2029
      %v2046 = vld [vmem:[%s857] sm:$0xe]
      %v2047 = vld [vmem:[%s857 + $0x4] sm:$0x1]
      %v2048 = vld [vmem:[%s857 + $0x8] sm:$0xe]
      %v2049 = vld [vmem:[%s857 + $0xc] sm:$0x1]
      %v2050 = vld [vmem:[%s857 + $0x10] sm:$0xe]
      %v2051 = vld [vmem:[%s857 + $0x14] sm:$0x1]
      %v2052 = vld [vmem:[%s857 + $0x18] sm:$0xe]
      %v2053 = vld [vmem:[%s857 + $0x1c] sm:$0x1]
      %v2054 = vld [vmem:[%s857 + $0x20] sm:$0xe]
      %v2055 = vld [vmem:[%s857 + $0x24] sm:$0x1]
      %v2056 = vld [vmem:[%s857 + $0x28] sm:$0xe]
      %v2057 = vld [vmem:[%s857 + $0x2c] sm:$0x1]
      %v2058 = vld [vmem:[%s857 + $0x30] sm:$0xe]
      %v2059 = vld [vmem:[%s857 + $0x34] sm:$0x1]
      %v2060 = vld [vmem:[%s857 + $0x38] sm:$0xe]
      %v2061 = vld [vmem:[%s857 + $0x3c] sm:$0x1]
      %v2078 = vrot.slane %v2046, 5
      %v2079 = vrot.slane %v2078, 4
      %v2080 = vrot.slane %v2047, 5
      %v2081 = vsel %vm1821, %v2079, %v2080
      %v2082 = vrot.slane %v2048, 5
      %v2083 = vrot.slane %v2082, 4
      %v2084 = vrot.slane %v2049, 5
      %v2085 = vsel %vm1821, %v2083, %v2084
      %v2086 = vrot.slane %v2050, 5
      %v2087 = vrot.slane %v2086, 4
      %v2088 = vrot.slane %v2051, 5
      %v2089 = vsel %vm1821, %v2087, %v2088
      %v2090 = vrot.slane %v2052, 5
      %v2091 = vrot.slane %v2090, 4
      %v2092 = vrot.slane %v2053, 5
      %v2093 = vsel %vm1821, %v2091, %v2092
      %v2094 = vrot.slane %v2054, 5
      %v2095 = vrot.slane %v2094, 4
      %v2096 = vrot.slane %v2055, 5
      %v2097 = vsel %vm1821, %v2095, %v2096
      %v2098 = vrot.slane %v2056, 5
      %v2099 = vrot.slane %v2098, 4
      %v2100 = vrot.slane %v2057, 5
      %v2101 = vsel %vm1821, %v2099, %v2100
      %v2102 = vrot.slane %v2058, 5
      %v2103 = vrot.slane %v2102, 4
      %v2104 = vrot.slane %v2059, 5
      %v2105 = vsel %vm1821, %v2103, %v2104
      %v2106 = vrot.slane %v2060, 5
      %v2107 = vrot.slane %v2106, 4
      %v2108 = vrot.slane %v2061, 5
      %v2109 = vsel %vm1821, %v2107, %v2108
      %2110 = vrot.lane.b32.xlu0 %v2081, 24
      %v2111 = vpop.permute.xlu0 %2110
      %2112 = vrot.lane.b32.xlu0 %v2085, 24
      %v2113 = vpop.permute.xlu0 %2112
      %2114 = vrot.lane.b32.xlu0 %v2089, 24
      %v2115 = vpop.permute.xlu0 %2114
      %2116 = vrot.lane.b32.xlu0 %v2093, 24
      %v2117 = vpop.permute.xlu0 %2116
      %2118 = vrot.lane.b32.xlu0 %v2097, 24
      %v2119 = vpop.permute.xlu0 %2118
      %2120 = vrot.lane.b32.xlu0 %v2101, 24
      %v2121 = vpop.permute.xlu0 %2120
      %2122 = vrot.lane.b32.xlu0 %v2105, 24
      %v2123 = vpop.permute.xlu0 %2122
      %2124 = vrot.lane.b32.xlu0 %v2109, 24
      %v2125 = vpop.permute.xlu0 %2124
      %2134 = vst.msk [vmem:[#allocation3] sm:$0xf] %vm1451, %v2111
      %2135 = vst.msk [vmem:[#allocation3 + $0x4] sm:$0xf] %vm1451, %v2113
      %2136 = vst.msk [vmem:[#allocation3 + $0x8] sm:$0xf] %vm1451, %v2115
      %2137 = vst.msk [vmem:[#allocation3 + $0xc] sm:$0xf] %vm1451, %v2117
      %2138 = vst.msk [vmem:[#allocation3 + $0x10] sm:$0xf] %vm1451, %v2119
      %2139 = vst.msk [vmem:[#allocation3 + $0x14] sm:$0xf] %vm1451, %v2121
      %2140 = vst.msk [vmem:[#allocation3 + $0x18] sm:$0xf] %vm1451, %v2123
      %2141 = vst.msk [vmem:[#allocation3 + $0x1c] sm:$0xf] %vm1451, %v2125
      %v2142 = vld [vmem:[#allocation3] sm:$0xf]
      %v2143 = vld [vmem:[#allocation3 + $0x4] sm:$0xf]
      %v2144 = vld [vmem:[#allocation3 + $0x8] sm:$0xf]
      %v2145 = vld [vmem:[#allocation3 + $0xc] sm:$0xf]
      %v2146 = vld [vmem:[#allocation3 + $0x10] sm:$0xf]
      %v2147 = vld [vmem:[#allocation3 + $0x14] sm:$0xf]
      %v2148 = vld [vmem:[#allocation3 + $0x18] sm:$0xf]
      %v2149 = vld [vmem:[#allocation3 + $0x1c] sm:$0xf]
      %s2150 = scalar_lea.vmem %s2, 16
      %v2151 = vld [vmem:[%s2150] sm:$0xf]
      %v2152 = vld [vmem:[%s2150 + $0x4] sm:$0xf]
      %v2153 = vld [vmem:[%s2150 + $0x8] sm:$0xf]
      %v2154 = vld [vmem:[%s2150 + $0xc] sm:$0xf]
      %v2163 = vunpack.c.l.b16 %v2142
      %v2164 = vunpack.c.l.b16 %v2143
      %v2165 = vunpack.c.l.b16 %v2144
      %v2166 = vunpack.c.l.b16 %v2145
      %v2167 = vunpack.c.l.b16 %v2146
      %v2168 = vunpack.c.l.b16 %v2147
      %v2169 = vunpack.c.l.b16 %v2148
      %v2170 = vunpack.c.l.b16 %v2149
      %v2171 = vpack.c.b16 %v2164, %v2163
      %v2172 = vpack.c.b16 %v2166, %v2165
      %v2173 = vpack.c.b16 %v2168, %v2167
      %v2174 = vpack.c.b16 %v2170, %v2169
      %v2179 = vunpack.c.l.b16 %v2151
      %v2180 = vunpack.c.l.b16 %v2152
      %v2181 = vunpack.c.l.b16 %v2153
      %v2182 = vunpack.c.l.b16 %v2154
      %v2183 = vpack.c.b16 %v2180, %v2179
      %v2184 = vpack.c.b16 %v2182, %v2181
      %v2188 = vsel %vm1504, %v2171, 0
      %v2191 = vsel %vm1504, %v2172, 0
      %v2194 = vsel %vm1504, %v2173, 0
      %v2197 = vsel %vm1504, %v2174, 0
      %2199 = vmatprep.subr.bf16.mxu0 0
      %2200 = vmatpush1.bf16.msra.mxu0 0
      %2201 = vmatprep.subr.bf16.mxu0 0
      %2202 = vmatpush1.bf16.msra.mxu0 0
      %2203 = vmatprep.subr.bf16.mxu0 0
      %2204 = vmatpush1.bf16.msra.mxu0 0
      %2205 = vmatprep.subr.bf16.mxu0 0
      %2206 = vmatpush1.bf16.msra.mxu0 0
      %2207 = vmatprep.subr.bf16.mxu0 0
      %2208 = vmatpush1.bf16.msra.mxu0 0
      %2209 = vmatprep.subr.bf16.mxu0 0
      %2210 = vmatpush1.bf16.msra.mxu0 0
      %2211 = vmatprep.subr.bf16.mxu0 0
      %2212 = vmatpush1.bf16.msra.mxu0 %v2184
      %2213 = vmatprep.subr.bf16.mxu0 0
      %2214 = vmatpush1.bf16.msra.mxu0 %v2183
      %2215 = vmatprep.subr.bf16.mxu0 0
      %2216 = vmatpush2.bf16.msra.mxu0 0
      %2217 = vmatprep.subr.bf16.mxu0 0
      %2218 = vmatpush2.bf16.msra.mxu0 0
      %2219 = vmatprep.subr.bf16.mxu0 0
      %2220 = vmatpush2.bf16.msra.mxu0 0
      %2221 = vmatprep.subr.bf16.mxu0 0
      %2222 = vmatpush2.bf16.msra.mxu0 0
      %2223 = vmatprep.subr.bf16.mxu0 0
      %2224 = vmatpush2.bf16.msra.mxu0 0
      %2225 = vmatprep.subr.bf16.mxu0 0
      %2226 = vmatpush2.bf16.msra.mxu0 0
      %2227 = vmatprep.subr.bf16.mxu0 0
      %2228 = vmatpush2.bf16.msra.mxu0 0
      %2229 = vmatprep.subr.bf16.mxu0 0
      %2230 = vmatpush2.bf16.msra.mxu0 0
      %2231 = vmatprep.mubr.bf16.mxu0 0
      %2232 = vmatmul.mubr.bf16.gmra.mxu0 %v2188
      %v2233 = vpop.f32.mrf.mxu0
      %v2234 = vadd.f32 0.0, %v2233
      %v2235 = vpop.f32.mrf.mxu0
      %v2236 = vpop.f32.mrf.mxu0
      %v2237 = vadd.f32 0.0, %v2236
      %v2238 = vpop.f32.mrf.mxu0
      %2239 = vmatprep.mubr.bf16.mxu0 0
      %2240 = vmatmul.mubr.bf16.gmra.mxu0 %v2191
      %v2241 = vpop.f32.mrf.mxu0
      %v2242 = vadd.f32 0.0, %v2241
      %v2243 = vpop.f32.mrf.mxu0
      %v2244 = vpop.f32.mrf.mxu0
      %v2245 = vadd.f32 0.0, %v2244
      %v2246 = vpop.f32.mrf.mxu0
      %2247 = vmatprep.mubr.bf16.mxu0 0
      %2248 = vmatmul.mubr.bf16.gmra.mxu0 %v2194
      %v2249 = vpop.f32.mrf.mxu0
      %v2250 = vadd.f32 0.0, %v2249
      %v2251 = vpop.f32.mrf.mxu0
      %v2252 = vpop.f32.mrf.mxu0
      %v2253 = vadd.f32 0.0, %v2252
      %v2254 = vpop.f32.mrf.mxu0
      %2255 = vmatprep.mubr.bf16.mxu0 0
      %2256 = vmatmul.mubr.bf16.gmra.mxu0 %v2197
      %v2257 = vpop.f32.mrf.mxu0
      %v2258 = vadd.f32 0.0, %v2257
      %v2259 = vpop.f32.mrf.mxu0
      %v2260 = vpop.f32.mrf.mxu0
      %v2261 = vadd.f32 0.0, %v2260
      %v2262 = vpop.f32.mrf.mxu0
      %2263 = vdwg.mxu0
      %s2264 = scalar_lea.vmem %s204, 64
      %2265 = vst.msk [vmem:[%s2264] sm:$0xff] %vm1582, %v2234
      %2266 = vst.msk [vmem:[%s2264 + $0x8] sm:$0xff] %vm1582, %v2237
      %2267 = vst.msk [vmem:[%s2264 + $0x10] sm:$0xff] %vm1582, %v2242
      %2268 = vst.msk [vmem:[%s2264 + $0x18] sm:$0xff] %vm1582, %v2245
      %2269 = vst.msk [vmem:[%s2264 + $0x20] sm:$0xff] %vm1582, %v2250
      %2270 = vst.msk [vmem:[%s2264 + $0x28] sm:$0xff] %vm1582, %v2253
      %2271 = vst.msk [vmem:[%s2264 + $0x30] sm:$0xff] %vm1582, %v2258
      %2272 = vst.msk [vmem:[%s2264 + $0x38] sm:$0xff] %vm1582, %v2261
      %v2273 = vsel %vm1582, %v2234, 0.0
      %v2274 = vsel %vm1582, %v2237, 0.0
      %v2275 = vadd.f32 %v2273, %v2274
      %v2276 = vsel %vm1582, %v2242, 0.0
      %v2277 = vadd.f32 %v2275, %v2276
      %v2278 = vsel %vm1582, %v2245, 0.0
      %v2279 = vadd.f32 %v2277, %v2278
      %v2280 = vsel %vm1582, %v2250, 0.0
      %v2281 = vadd.f32 %v2279, %v2280
      %v2282 = vsel %vm1582, %v2253, 0.0
      %v2283 = vadd.f32 %v2281, %v2282
      %v2284 = vsel %vm1582, %v2258, 0.0
      %v2285 = vadd.f32 %v2283, %v2284
      %v2286 = vsel %vm1582, %v2261, 0.0
      %v2287 = vadd.f32 %v2285, %v2286
      %v2288 = vrot.slane %v2287, 4
      %v2289 = vadd.f32 %v2287, %v2288
      %v2290 = vrot.slane %v2289, 2
      %v2291 = vadd.f32 %v2289, %v2290
      %v2292 = vrot.slane %v2291, 1
      %v2293 = vadd.f32 %v2291, %v2292
      %v2294 = vadd.f32 %v1612, %v2293
      %v2295 = vmul.f32 %v2234, %v2234
      %v2296 = vmul.f32 %v2237, %v2237
      %v2297 = vmul.f32 %v2242, %v2242
      %v2298 = vmul.f32 %v2245, %v2245
      %v2299 = vmul.f32 %v2250, %v2250
      %v2300 = vmul.f32 %v2253, %v2253
      %v2301 = vmul.f32 %v2258, %v2258
      %v2302 = vmul.f32 %v2261, %v2261
      %v2303 = vsel %vm1582, %v2295, 0.0
      %v2304 = vsel %vm1582, %v2296, 0.0
      %v2305 = vadd.f32 %v2303, %v2304
      %v2306 = vsel %vm1582, %v2297, 0.0
      %v2307 = vadd.f32 %v2305, %v2306
      %v2308 = vsel %vm1582, %v2298, 0.0
      %v2309 = vadd.f32 %v2307, %v2308
      %v2310 = vsel %vm1582, %v2299, 0.0
      %v2311 = vadd.f32 %v2309, %v2310
      %v2312 = vsel %vm1582, %v2300, 0.0
      %v2313 = vadd.f32 %v2311, %v2312
      %v2314 = vsel %vm1582, %v2301, 0.0
      %v2315 = vadd.f32 %v2313, %v2314
      %v2316 = vsel %vm1582, %v2302, 0.0
      %v2317 = vadd.f32 %v2315, %v2316
      %v2318 = vrot.slane %v2317, 4
      %v2319 = vadd.f32 %v2317, %v2318
      %v2320 = vrot.slane %v2319, 2
      %v2321 = vadd.f32 %v2319, %v2320
      %v2322 = vrot.slane %v2321, 1
      %v2323 = vadd.f32 %v2321, %v2322
      %v2324 = vadd.f32 %v1642, %v2323
      %v2325 = vld [vmem:[%s857] sm:$0xf]
      %v2326 = vld [vmem:[%s857 + $0x8] sm:$0xf]
      %v2327 = vld [vmem:[%s857 + $0x10] sm:$0xf]
      %v2328 = vld [vmem:[%s857 + $0x18] sm:$0xf]
      %v2329 = vld [vmem:[%s857 + $0x20] sm:$0xf]
      %v2330 = vld [vmem:[%s857 + $0x28] sm:$0xf]
      %v2331 = vld [vmem:[%s857 + $0x30] sm:$0xf]
      %v2332 = vld [vmem:[%s857 + $0x38] sm:$0xf]
      %2333 = vst.msk [vmem:[#allocation3] sm:$0xf] %vm850, %v2325
      %2334 = vst.msk [vmem:[#allocation3 + $0x4] sm:$0xf] %vm850, %v2326
      %2335 = vst.msk [vmem:[#allocation3 + $0x8] sm:$0xf] %vm850, %v2327
      %2336 = vst.msk [vmem:[#allocation3 + $0xc] sm:$0xf] %vm850, %v2328
      %2337 = vst.msk [vmem:[#allocation3 + $0x10] sm:$0xf] %vm850, %v2329
      %2338 = vst.msk [vmem:[#allocation3 + $0x14] sm:$0xf] %vm850, %v2330
      %2339 = vst.msk [vmem:[#allocation3 + $0x18] sm:$0xf] %vm850, %v2331
      %2340 = vst.msk [vmem:[#allocation3 + $0x1c] sm:$0xf] %vm850, %v2332
      %v2341 = vld [vmem:[%s857] sm:$0xf]
      %v2342 = vld [vmem:[%s857 + $0x4] sm:$0x1]
      %v2343 = vld [vmem:[%s857 + $0x8] sm:$0xf]
      %v2344 = vld [vmem:[%s857 + $0xc] sm:$0x1]
      %v2345 = vld [vmem:[%s857 + $0x10] sm:$0xf]
      %v2346 = vld [vmem:[%s857 + $0x14] sm:$0x1]
      %v2347 = vld [vmem:[%s857 + $0x18] sm:$0xf]
      %v2348 = vld [vmem:[%s857 + $0x1c] sm:$0x1]
      %v2349 = vld [vmem:[%s857 + $0x20] sm:$0xf]
      %v2350 = vld [vmem:[%s857 + $0x24] sm:$0x1]
      %v2351 = vld [vmem:[%s857 + $0x28] sm:$0xf]
      %v2352 = vld [vmem:[%s857 + $0x2c] sm:$0x1]
      %v2353 = vld [vmem:[%s857 + $0x30] sm:$0xf]
      %v2354 = vld [vmem:[%s857 + $0x34] sm:$0x1]
      %v2355 = vld [vmem:[%s857 + $0x38] sm:$0xf]
      %v2356 = vld [vmem:[%s857 + $0x3c] sm:$0x1]
      %v2358 = vshrl.u32 %v2341, 16
      %v2360 = vrot.slane %v2358, 4
      %v2361 = vshll.u32 %v2341, 16
      %v2363 = vrot.slane %v2361, 5
      %v2364 = vor.u32 %v2360, %v2363
      %v2365 = vrot.slane %v2364, 4
      %v2367 = vshll.u32 %v2342, 16
      %v2369 = vrot.slane %v2367, 5
      %v2370 = vsel %vm335, %v2365, %v2369
      %v2372 = vshrl.u32 %v2343, 16
      %v2374 = vrot.slane %v2372, 4
      %v2375 = vshll.u32 %v2343, 16
      %v2377 = vrot.slane %v2375, 5
      %v2378 = vor.u32 %v2374, %v2377
      %v2379 = vrot.slane %v2378, 4
      %v2381 = vshll.u32 %v2344, 16
      %v2383 = vrot.slane %v2381, 5
      %v2384 = vsel %vm335, %v2379, %v2383
      %v2386 = vshrl.u32 %v2345, 16
      %v2388 = vrot.slane %v2386, 4
      %v2389 = vshll.u32 %v2345, 16
      %v2391 = vrot.slane %v2389, 5
      %v2392 = vor.u32 %v2388, %v2391
      %v2393 = vrot.slane %v2392, 4
      %v2395 = vshll.u32 %v2346, 16
      %v2397 = vrot.slane %v2395, 5
      %v2398 = vsel %vm335, %v2393, %v2397
      %v2400 = vshrl.u32 %v2347, 16
      %v2402 = vrot.slane %v2400, 4
      %v2403 = vshll.u32 %v2347, 16
      %v2405 = vrot.slane %v2403, 5
      %v2406 = vor.u32 %v2402, %v2405
      %v2407 = vrot.slane %v2406, 4
      %v2409 = vshll.u32 %v2348, 16
      %v2411 = vrot.slane %v2409, 5
      %v2412 = vsel %vm335, %v2407, %v2411
      %v2414 = vshrl.u32 %v2349, 16
      %v2416 = vrot.slane %v2414, 4
      %v2417 = vshll.u32 %v2349, 16
      %v2419 = vrot.slane %v2417, 5
      %v2420 = vor.u32 %v2416, %v2419
      %v2421 = vrot.slane %v2420, 4
      %v2423 = vshll.u32 %v2350, 16
      %v2425 = vrot.slane %v2423, 5
      %v2426 = vsel %vm335, %v2421, %v2425
      %v2428 = vshrl.u32 %v2351, 16
      %v2430 = vrot.slane %v2428, 4
      %v2431 = vshll.u32 %v2351, 16
      %v2433 = vrot.slane %v2431, 5
      %v2434 = vor.u32 %v2430, %v2433
      %v2435 = vrot.slane %v2434, 4
      %v2437 = vshll.u32 %v2352, 16
      %v2439 = vrot.slane %v2437, 5
      %v2440 = vsel %vm335, %v2435, %v2439
      %v2442 = vshrl.u32 %v2353, 16
      %v2444 = vrot.slane %v2442, 4
      %v2445 = vshll.u32 %v2353, 16
      %v2447 = vrot.slane %v2445, 5
      %v2448 = vor.u32 %v2444, %v2447
      %v2449 = vrot.slane %v2448, 4
      %v2451 = vshll.u32 %v2354, 16
      %v2453 = vrot.slane %v2451, 5
      %v2454 = vsel %vm335, %v2449, %v2453
      %v2456 = vshrl.u32 %v2355, 16
      %v2458 = vrot.slane %v2456, 4
      %v2459 = vshll.u32 %v2355, 16
      %v2461 = vrot.slane %v2459, 5
      %v2462 = vor.u32 %v2458, %v2461
      %v2463 = vrot.slane %v2462, 4
      %v2465 = vshll.u32 %v2356, 16
      %v2467 = vrot.slane %v2465, 5
      %v2468 = vsel %vm335, %v2463, %v2467
      %2469 = vrot.lane.b32.xlu0 %v2370, 8
      %v2470 = vpop.permute.xlu0 %2469
      %2471 = vrot.lane.b32.xlu0 %v2384, 8
      %v2472 = vpop.permute.xlu0 %2471
      %2473 = vrot.lane.b32.xlu0 %v2398, 8
      %v2474 = vpop.permute.xlu0 %2473
      %2475 = vrot.lane.b32.xlu0 %v2412, 8
      %v2476 = vpop.permute.xlu0 %2475
      %2477 = vrot.lane.b32.xlu0 %v2426, 8
      %v2478 = vpop.permute.xlu0 %2477
      %2479 = vrot.lane.b32.xlu0 %v2440, 8
      %v2480 = vpop.permute.xlu0 %2479
      %2481 = vrot.lane.b32.xlu0 %v2454, 8
      %v2482 = vpop.permute.xlu0 %2481
      %2483 = vrot.lane.b32.xlu0 %v2468, 8
      %v2484 = vpop.permute.xlu0 %2483
      %2493 = vst.msk [vmem:[#allocation3] sm:$0xf] %vm1241, %v2470
      %2494 = vst.msk [vmem:[#allocation3 + $0x4] sm:$0xf] %vm1241, %v2472
      %2495 = vst.msk [vmem:[#allocation3 + $0x8] sm:$0xf] %vm1241, %v2474
      %2496 = vst.msk [vmem:[#allocation3 + $0xc] sm:$0xf] %vm1241, %v2476
      %2497 = vst.msk [vmem:[#allocation3 + $0x10] sm:$0xf] %vm1241, %v2478
      %2498 = vst.msk [vmem:[#allocation3 + $0x14] sm:$0xf] %vm1241, %v2480
      %2499 = vst.msk [vmem:[#allocation3 + $0x18] sm:$0xf] %vm1241, %v2482
      %2500 = vst.msk [vmem:[#allocation3 + $0x1c] sm:$0xf] %vm1241, %v2484
      %s2501 = scalar_lea.vmem [#allocation2], 16
      %v2502 = vld [vmem:[%s2501] sm:$0xf]
      %v2503 = vld [vmem:[%s2501 + $0x8] sm:$0xf]
      %v2504 = vld [vmem:[%s2501 + $0x10] sm:$0xf]
      %v2505 = vld [vmem:[%s2501 + $0x18] sm:$0xf]
      %v2506 = vld [vmem:[%s2501 + $0x20] sm:$0xf]
      %v2507 = vld [vmem:[%s2501 + $0x28] sm:$0xf]
      %v2508 = vld [vmem:[%s2501 + $0x30] sm:$0xf]
      %v2509 = vld [vmem:[%s2501 + $0x38] sm:$0xf]
      %2518 = vrot.lane.b32.xlu0 %v2502, 16
      %v2519 = vpop.permute.xlu0 %2518
      %2520 = vrot.lane.b32.xlu0 %v2503, 16
      %v2521 = vpop.permute.xlu0 %2520
      %2522 = vrot.lane.b32.xlu0 %v2504, 16
      %v2523 = vpop.permute.xlu0 %2522
      %2524 = vrot.lane.b32.xlu0 %v2505, 16
      %v2525 = vpop.permute.xlu0 %2524
      %2526 = vrot.lane.b32.xlu0 %v2506, 16
      %v2527 = vpop.permute.xlu0 %2526
      %2528 = vrot.lane.b32.xlu0 %v2507, 16
      %v2529 = vpop.permute.xlu0 %2528
      %2530 = vrot.lane.b32.xlu0 %v2508, 16
      %v2531 = vpop.permute.xlu0 %2530
      %2532 = vrot.lane.b32.xlu0 %v2509, 16
      %v2533 = vpop.permute.xlu0 %2532
      %2542 = vst.msk [vmem:[#allocation3] sm:$0xf] %vm1290, %v2519
      %2543 = vst.msk [vmem:[#allocation3 + $0x4] sm:$0xf] %vm1290, %v2521
      %2544 = vst.msk [vmem:[#allocation3 + $0x8] sm:$0xf] %vm1290, %v2523
      %2545 = vst.msk [vmem:[#allocation3 + $0xc] sm:$0xf] %vm1290, %v2525
      %2546 = vst.msk [vmem:[#allocation3 + $0x10] sm:$0xf] %vm1290, %v2527
      %2547 = vst.msk [vmem:[#allocation3 + $0x14] sm:$0xf] %vm1290, %v2529
      %2548 = vst.msk [vmem:[#allocation3 + $0x18] sm:$0xf] %vm1290, %v2531
      %2549 = vst.msk [vmem:[#allocation3 + $0x1c] sm:$0xf] %vm1290, %v2533
      %v2550 = vld [vmem:[%s2501] sm:$0xf]
      %v2551 = vld [vmem:[%s2501 + $0x4] sm:$0x1]
      %v2552 = vld [vmem:[%s2501 + $0x8] sm:$0xf]
      %v2553 = vld [vmem:[%s2501 + $0xc] sm:$0x1]
      %v2554 = vld [vmem:[%s2501 + $0x10] sm:$0xf]
      %v2555 = vld [vmem:[%s2501 + $0x14] sm:$0x1]
      %v2556 = vld [vmem:[%s2501 + $0x18] sm:$0xf]
      %v2557 = vld [vmem:[%s2501 + $0x1c] sm:$0x1]
      %v2558 = vld [vmem:[%s2501 + $0x20] sm:$0xf]
      %v2559 = vld [vmem:[%s2501 + $0x24] sm:$0x1]
      %v2560 = vld [vmem:[%s2501 + $0x28] sm:$0xf]
      %v2561 = vld [vmem:[%s2501 + $0x2c] sm:$0x1]
      %v2562 = vld [vmem:[%s2501 + $0x30] sm:$0xf]
      %v2563 = vld [vmem:[%s2501 + $0x34] sm:$0x1]
      %v2564 = vld [vmem:[%s2501 + $0x38] sm:$0xf]
      %v2565 = vld [vmem:[%s2501 + $0x3c] sm:$0x1]
      %v2567 = vshrl.u32 %v2550, 16
      %v2569 = vrot.slane %v2567, 4
      %v2570 = vshll.u32 %v2550, 16
      %v2572 = vrot.slane %v2570, 5
      %v2573 = vor.u32 %v2569, %v2572
      %v2574 = vrot.slane %v2573, 4
      %v2576 = vshll.u32 %v2551, 16
      %v2578 = vrot.slane %v2576, 5
      %v2579 = vsel %vm335, %v2574, %v2578
      %v2581 = vshrl.u32 %v2552, 16
      %v2583 = vrot.slane %v2581, 4
      %v2584 = vshll.u32 %v2552, 16
      %v2586 = vrot.slane %v2584, 5
      %v2587 = vor.u32 %v2583, %v2586
      %v2588 = vrot.slane %v2587, 4
      %v2590 = vshll.u32 %v2553, 16
      %v2592 = vrot.slane %v2590, 5
      %v2593 = vsel %vm335, %v2588, %v2592
      %v2595 = vshrl.u32 %v2554, 16
      %v2597 = vrot.slane %v2595, 4
      %v2598 = vshll.u32 %v2554, 16
      %v2600 = vrot.slane %v2598, 5
      %v2601 = vor.u32 %v2597, %v2600
      %v2602 = vrot.slane %v2601, 4
      %v2604 = vshll.u32 %v2555, 16
      %v2606 = vrot.slane %v2604, 5
      %v2607 = vsel %vm335, %v2602, %v2606
      %v2609 = vshrl.u32 %v2556, 16
      %v2611 = vrot.slane %v2609, 4
      %v2612 = vshll.u32 %v2556, 16
      %v2614 = vrot.slane %v2612, 5
      %v2615 = vor.u32 %v2611, %v2614
      %v2616 = vrot.slane %v2615, 4
      %v2618 = vshll.u32 %v2557, 16
      %v2620 = vrot.slane %v2618, 5
      %v2621 = vsel %vm335, %v2616, %v2620
      %v2623 = vshrl.u32 %v2558, 16
      %v2625 = vrot.slane %v2623, 4
      %v2626 = vshll.u32 %v2558, 16
      %v2628 = vrot.slane %v2626, 5
      %v2629 = vor.u32 %v2625, %v2628
      %v2630 = vrot.slane %v2629, 4
      %v2632 = vshll.u32 %v2559, 16
      %v2634 = vrot.slane %v2632, 5
      %v2635 = vsel %vm335, %v2630, %v2634
      %v2637 = vshrl.u32 %v2560, 16
      %v2639 = vrot.slane %v2637, 4
      %v2640 = vshll.u32 %v2560, 16
      %v2642 = vrot.slane %v2640, 5
      %v2643 = vor.u32 %v2639, %v2642
      %v2644 = vrot.slane %v2643, 4
      %v2646 = vshll.u32 %v2561, 16
      %v2648 = vrot.slane %v2646, 5
      %v2649 = vsel %vm335, %v2644, %v2648
      %v2651 = vshrl.u32 %v2562, 16
      %v2653 = vrot.slane %v2651, 4
      %v2654 = vshll.u32 %v2562, 16
      %v2656 = vrot.slane %v2654, 5
      %v2657 = vor.u32 %v2653, %v2656
      %v2658 = vrot.slane %v2657, 4
      %v2660 = vshll.u32 %v2563, 16
      %v2662 = vrot.slane %v2660, 5
      %v2663 = vsel %vm335, %v2658, %v2662
      %v2665 = vshrl.u32 %v2564, 16
      %v2667 = vrot.slane %v2665, 4
      %v2668 = vshll.u32 %v2564, 16
      %v2670 = vrot.slane %v2668, 5
      %v2671 = vor.u32 %v2667, %v2670
      %v2672 = vrot.slane %v2671, 4
      %v2674 = vshll.u32 %v2565, 16
      %v2676 = vrot.slane %v2674, 5
      %v2677 = vsel %vm335, %v2672, %v2676
      %2678 = vrot.lane.b32.xlu0 %v2579, 24
      %v2679 = vpop.permute.xlu0 %2678
      %2680 = vrot.lane.b32.xlu0 %v2593, 24
      %v2681 = vpop.permute.xlu0 %2680
      %2682 = vrot.lane.b32.xlu0 %v2607, 24
      %v2683 = vpop.permute.xlu0 %2682
      %2684 = vrot.lane.b32.xlu0 %v2621, 24
      %v2685 = vpop.permute.xlu0 %2684
      %2686 = vrot.lane.b32.xlu0 %v2635, 24
      %v2687 = vpop.permute.xlu0 %2686
      %2688 = vrot.lane.b32.xlu0 %v2649, 24
      %v2689 = vpop.permute.xlu0 %2688
      %2690 = vrot.lane.b32.xlu0 %v2663, 24
      %v2691 = vpop.permute.xlu0 %2690
      %2692 = vrot.lane.b32.xlu0 %v2677, 24
      %v2693 = vpop.permute.xlu0 %2692
      %2702 = vst.msk [vmem:[#allocation3] sm:$0xf] %vm1451, %v2679
      %2703 = vst.msk [vmem:[#allocation3 + $0x4] sm:$0xf] %vm1451, %v2681
      %2704 = vst.msk [vmem:[#allocation3 + $0x8] sm:$0xf] %vm1451, %v2683
      %2705 = vst.msk [vmem:[#allocation3 + $0xc] sm:$0xf] %vm1451, %v2685
      %2706 = vst.msk [vmem:[#allocation3 + $0x10] sm:$0xf] %vm1451, %v2687
      %2707 = vst.msk [vmem:[#allocation3 + $0x14] sm:$0xf] %vm1451, %v2689
      %2708 = vst.msk [vmem:[#allocation3 + $0x18] sm:$0xf] %vm1451, %v2691
      %2709 = vst.msk [vmem:[#allocation3 + $0x1c] sm:$0xf] %vm1451, %v2693
      %v2710 = vld [vmem:[#allocation3] sm:$0xf]
      %v2711 = vld [vmem:[#allocation3 + $0x4] sm:$0xf]
      %v2712 = vld [vmem:[#allocation3 + $0x8] sm:$0xf]
      %v2713 = vld [vmem:[#allocation3 + $0xc] sm:$0xf]
      %v2714 = vld [vmem:[#allocation3 + $0x10] sm:$0xf]
      %v2715 = vld [vmem:[#allocation3 + $0x14] sm:$0xf]
      %v2716 = vld [vmem:[#allocation3 + $0x18] sm:$0xf]
      %v2717 = vld [vmem:[#allocation3 + $0x1c] sm:$0xf]
      %s2718 = scalar_lea.vmem %s2, 32
      %v2719 = vld [vmem:[%s2718] sm:$0xf]
      %v2720 = vld [vmem:[%s2718 + $0x4] sm:$0xf]
      %v2721 = vld [vmem:[%s2718 + $0x8] sm:$0xf]
      %v2722 = vld [vmem:[%s2718 + $0xc] sm:$0xf]
      %v2731 = vunpack.c.l.b16 %v2710
      %v2732 = vunpack.c.l.b16 %v2711
      %v2733 = vunpack.c.l.b16 %v2712
      %v2734 = vunpack.c.l.b16 %v2713
      %v2735 = vunpack.c.l.b16 %v2714
      %v2736 = vunpack.c.l.b16 %v2715
      %v2737 = vunpack.c.l.b16 %v2716
      %v2738 = vunpack.c.l.b16 %v2717
      %v2739 = vpack.c.b16 %v2732, %v2731
      %v2740 = vpack.c.b16 %v2734, %v2733
      %v2741 = vpack.c.b16 %v2736, %v2735
      %v2742 = vpack.c.b16 %v2738, %v2737
      %v2747 = vunpack.c.l.b16 %v2719
      %v2748 = vunpack.c.l.b16 %v2720
      %v2749 = vunpack.c.l.b16 %v2721
      %v2750 = vunpack.c.l.b16 %v2722
      %v2751 = vpack.c.b16 %v2748, %v2747
      %v2752 = vpack.c.b16 %v2750, %v2749
      %v2756 = vsel %vm1504, %v2739, 0
      %v2759 = vsel %vm1504, %v2740, 0
      %v2762 = vsel %vm1504, %v2741, 0
      %v2765 = vsel %vm1504, %v2742, 0
      %2767 = vmatprep.subr.bf16.mxu0 0
      %2768 = vmatpush1.bf16.msra.mxu0 0
      %2769 = vmatprep.subr.bf16.mxu0 0
      %2770 = vmatpush1.bf16.msra.mxu0 0
      %2771 = vmatprep.subr.bf16.mxu0 0
      %2772 = vmatpush1.bf16.msra.mxu0 0
      %2773 = vmatprep.subr.bf16.mxu0 0
      %2774 = vmatpush1.bf16.msra.mxu0 0
      %2775 = vmatprep.subr.bf16.mxu0 0
      %2776 = vmatpush1.bf16.msra.mxu0 0
      %2777 = vmatprep.subr.bf16.mxu0 0
      %2778 = vmatpush1.bf16.msra.mxu0 0
      %2779 = vmatprep.subr.bf16.mxu0 0
      %2780 = vmatpush1.bf16.msra.mxu0 %v2752
      %2781 = vmatprep.subr.bf16.mxu0 0
      %2782 = vmatpush1.bf16.msra.mxu0 %v2751
      %2783 = vmatprep.subr.bf16.mxu0 0
      %2784 = vmatpush2.bf16.msra.mxu0 0
      %2785 = vmatprep.subr.bf16.mxu0 0
      %2786 = vmatpush2.bf16.msra.mxu0 0
      %2787 = vmatprep.subr.bf16.mxu0 0
      %2788 = vmatpush2.bf16.msra.mxu0 0
      %2789 = vmatprep.subr.bf16.mxu0 0
      %2790 = vmatpush2.bf16.msra.mxu0 0
      %2791 = vmatprep.subr.bf16.mxu0 0
      %2792 = vmatpush2.bf16.msra.mxu0 0
      %2793 = vmatprep.subr.bf16.mxu0 0
      %2794 = vmatpush2.bf16.msra.mxu0 0
      %2795 = vmatprep.subr.bf16.mxu0 0
      %2796 = vmatpush2.bf16.msra.mxu0 0
      %2797 = vmatprep.subr.bf16.mxu0 0
      %2798 = vmatpush2.bf16.msra.mxu0 0
      %2799 = vmatprep.mubr.bf16.mxu0 0
      %2800 = vmatmul.mubr.bf16.gmra.mxu0 %v2756
      %v2801 = vpop.f32.mrf.mxu0
      %v2802 = vadd.f32 0.0, %v2801
      %v2803 = vpop.f32.mrf.mxu0
      %v2804 = vpop.f32.mrf.mxu0
      %v2805 = vadd.f32 0.0, %v2804
      %v2806 = vpop.f32.mrf.mxu0
      %2807 = vmatprep.mubr.bf16.mxu0 0
      %2808 = vmatmul.mubr.bf16.gmra.mxu0 %v2759
      %v2809 = vpop.f32.mrf.mxu0
      %v2810 = vadd.f32 0.0, %v2809
      %v2811 = vpop.f32.mrf.mxu0
      %v2812 = vpop.f32.mrf.mxu0
      %v2813 = vadd.f32 0.0, %v2812
      %v2814 = vpop.f32.mrf.mxu0
      %2815 = vmatprep.mubr.bf16.mxu0 0
      %2816 = vmatmul.mubr.bf16.gmra.mxu0 %v2762
      %v2817 = vpop.f32.mrf.mxu0
      %v2818 = vadd.f32 0.0, %v2817
      %v2819 = vpop.f32.mrf.mxu0
      %v2820 = vpop.f32.mrf.mxu0
      %v2821 = vadd.f32 0.0, %v2820
      %v2822 = vpop.f32.mrf.mxu0
      %2823 = vmatprep.mubr.bf16.mxu0 0
      %2824 = vmatmul.mubr.bf16.gmra.mxu0 %v2765
      %v2825 = vpop.f32.mrf.mxu0
      %v2826 = vadd.f32 0.0, %v2825
      %v2827 = vpop.f32.mrf.mxu0
      %v2828 = vpop.f32.mrf.mxu0
      %v2829 = vadd.f32 0.0, %v2828
      %v2830 = vpop.f32.mrf.mxu0
      %2831 = vdwg.mxu0
      %s2832 = scalar_lea.vmem %s204, 128
      %2833 = vst.msk [vmem:[%s2832] sm:$0xff] %vm1582, %v2802
      %2834 = vst.msk [vmem:[%s2832 + $0x8] sm:$0xff] %vm1582, %v2805
      %2835 = vst.msk [vmem:[%s2832 + $0x10] sm:$0xff] %vm1582, %v2810
      %2836 = vst.msk [vmem:[%s2832 + $0x18] sm:$0xff] %vm1582, %v2813
      %2837 = vst.msk [vmem:[%s2832 + $0x20] sm:$0xff] %vm1582, %v2818
      %2838 = vst.msk [vmem:[%s2832 + $0x28] sm:$0xff] %vm1582, %v2821
      %2839 = vst.msk [vmem:[%s2832 + $0x30] sm:$0xff] %vm1582, %v2826
      %2840 = vst.msk [vmem:[%s2832 + $0x38] sm:$0xff] %vm1582, %v2829
      %v2841 = vsel %vm1582, %v2802, 0.0
      %v2842 = vsel %vm1582, %v2805, 0.0
      %v2843 = vadd.f32 %v2841, %v2842
      %v2844 = vsel %vm1582, %v2810, 0.0
      %v2845 = vadd.f32 %v2843, %v2844
      %v2846 = vsel %vm1582, %v2813, 0.0
      %v2847 = vadd.f32 %v2845, %v2846
      %v2848 = vsel %vm1582, %v2818, 0.0
      %v2849 = vadd.f32 %v2847, %v2848
      %v2850 = vsel %vm1582, %v2821, 0.0
      %v2851 = vadd.f32 %v2849, %v2850
      %v2852 = vsel %vm1582, %v2826, 0.0
      %v2853 = vadd.f32 %v2851, %v2852
      %v2854 = vsel %vm1582, %v2829, 0.0
      %v2855 = vadd.f32 %v2853, %v2854
      %v2856 = vrot.slane %v2855, 4
      %v2857 = vadd.f32 %v2855, %v2856
      %v2858 = vrot.slane %v2857, 2
      %v2859 = vadd.f32 %v2857, %v2858
      %v2860 = vrot.slane %v2859, 1
      %v2861 = vadd.f32 %v2859, %v2860
      %v2862 = vadd.f32 %v2294, %v2861
      %v2863 = vmul.f32 %v2802, %v2802
      %v2864 = vmul.f32 %v2805, %v2805
      %v2865 = vmul.f32 %v2810, %v2810
      %v2866 = vmul.f32 %v2813, %v2813
      %v2867 = vmul.f32 %v2818, %v2818
      %v2868 = vmul.f32 %v2821, %v2821
      %v2869 = vmul.f32 %v2826, %v2826
      %v2870 = vmul.f32 %v2829, %v2829
      %v2871 = vsel %vm1582, %v2863, 0.0
      %v2872 = vsel %vm1582, %v2864, 0.0
      %v2873 = vadd.f32 %v2871, %v2872
      %v2874 = vsel %vm1582, %v2865, 0.0
      %v2875 = vadd.f32 %v2873, %v2874
      %v2876 = vsel %vm1582, %v2866, 0.0
      %v2877 = vadd.f32 %v2875, %v2876
      %v2878 = vsel %vm1582, %v2867, 0.0
      %v2879 = vadd.f32 %v2877, %v2878
      %v2880 = vsel %vm1582, %v2868, 0.0
      %v2881 = vadd.f32 %v2879, %v2880
      %v2882 = vsel %vm1582, %v2869, 0.0
      %v2883 = vadd.f32 %v2881, %v2882
      %v2884 = vsel %vm1582, %v2870, 0.0
      %v2885 = vadd.f32 %v2883, %v2884
      %v2886 = vrot.slane %v2885, 4
      %v2887 = vadd.f32 %v2885, %v2886
      %v2888 = vrot.slane %v2887, 2
      %v2889 = vadd.f32 %v2887, %v2888
      %v2890 = vrot.slane %v2889, 1
      %v2891 = vadd.f32 %v2889, %v2890
      %v2892 = vadd.f32 %v2324, %v2891
      %v2893 = vld [vmem:[%s857] sm:$0xf]
      %v2894 = vld [vmem:[%s857 + $0x4] sm:$0x1]
      %v2895 = vld [vmem:[%s857 + $0x8] sm:$0xf]
      %v2896 = vld [vmem:[%s857 + $0xc] sm:$0x1]
      %v2897 = vld [vmem:[%s857 + $0x10] sm:$0xf]
      %v2898 = vld [vmem:[%s857 + $0x14] sm:$0x1]
      %v2899 = vld [vmem:[%s857 + $0x18] sm:$0xf]
      %v2900 = vld [vmem:[%s857 + $0x1c] sm:$0x1]
      %v2901 = vld [vmem:[%s857 + $0x20] sm:$0xf]
      %v2902 = vld [vmem:[%s857 + $0x24] sm:$0x1]
      %v2903 = vld [vmem:[%s857 + $0x28] sm:$0xf]
      %v2904 = vld [vmem:[%s857 + $0x2c] sm:$0x1]
      %v2905 = vld [vmem:[%s857 + $0x30] sm:$0xf]
      %v2906 = vld [vmem:[%s857 + $0x34] sm:$0x1]
      %v2907 = vld [vmem:[%s857 + $0x38] sm:$0xf]
      %v2908 = vld [vmem:[%s857 + $0x3c] sm:$0x1]
      %v2910 = vshrl.u32 %v2893, 16
      %v2912 = vrot.slane %v2910, 4
      %v2913 = vshll.u32 %v2893, 16
      %v2915 = vrot.slane %v2913, 5
      %v2916 = vor.u32 %v2912, %v2915
      %v2917 = vrot.slane %v2916, 4
      %v2919 = vshll.u32 %v2894, 16
      %v2921 = vrot.slane %v2919, 5
      %v2922 = vsel %vm335, %v2917, %v2921
      %v2924 = vshrl.u32 %v2895, 16
      %v2926 = vrot.slane %v2924, 4
      %v2927 = vshll.u32 %v2895, 16
      %v2929 = vrot.slane %v2927, 5
      %v2930 = vor.u32 %v2926, %v2929
      %v2931 = vrot.slane %v2930, 4
      %v2933 = vshll.u32 %v2896, 16
      %v2935 = vrot.slane %v2933, 5
      %v2936 = vsel %vm335, %v2931, %v2935
      %v2938 = vshrl.u32 %v2897, 16
      %v2940 = vrot.slane %v2938, 4
      %v2941 = vshll.u32 %v2897, 16
      %v2943 = vrot.slane %v2941, 5
      %v2944 = vor.u32 %v2940, %v2943
      %v2945 = vrot.slane %v2944, 4
      %v2947 = vshll.u32 %v2898, 16
      %v2949 = vrot.slane %v2947, 5
      %v2950 = vsel %vm335, %v2945, %v2949
      %v2952 = vshrl.u32 %v2899, 16
      %v2954 = vrot.slane %v2952, 4
      %v2955 = vshll.u32 %v2899, 16
      %v2957 = vrot.slane %v2955, 5
      %v2958 = vor.u32 %v2954, %v2957
      %v2959 = vrot.slane %v2958, 4
      %v2961 = vshll.u32 %v2900, 16
      %v2963 = vrot.slane %v2961, 5
      %v2964 = vsel %vm335, %v2959, %v2963
      %v2966 = vshrl.u32 %v2901, 16
      %v2968 = vrot.slane %v2966, 4
      %v2969 = vshll.u32 %v2901, 16
      %v2971 = vrot.slane %v2969, 5
      %v2972 = vor.u32 %v2968, %v2971
      %v2973 = vrot.slane %v2972, 4
      %v2975 = vshll.u32 %v2902, 16
      %v2977 = vrot.slane %v2975, 5
      %v2978 = vsel %vm335, %v2973, %v2977
      %v2980 = vshrl.u32 %v2903, 16
      %v2982 = vrot.slane %v2980, 4
      %v2983 = vshll.u32 %v2903, 16
      %v2985 = vrot.slane %v2983, 5
      %v2986 = vor.u32 %v2982, %v2985
      %v2987 = vrot.slane %v2986, 4
      %v2989 = vshll.u32 %v2904, 16
      %v2991 = vrot.slane %v2989, 5
      %v2992 = vsel %vm335, %v2987, %v2991
      %v2994 = vshrl.u32 %v2905, 16
      %v2996 = vrot.slane %v2994, 4
      %v2997 = vshll.u32 %v2905, 16
      %v2999 = vrot.slane %v2997, 5
      %v3000 = vor.u32 %v2996, %v2999
      %v3001 = vrot.slane %v3000, 4
      %v3003 = vshll.u32 %v2906, 16
      %v3005 = vrot.slane %v3003, 5
      %v3006 = vsel %vm335, %v3001, %v3005
      %v3008 = vshrl.u32 %v2907, 16
      %v3010 = vrot.slane %v3008, 4
      %v3011 = vshll.u32 %v2907, 16
      %v3013 = vrot.slane %v3011, 5
      %v3014 = vor.u32 %v3010, %v3013
      %v3015 = vrot.slane %v3014, 4
      %v3017 = vshll.u32 %v2908, 16
      %v3019 = vrot.slane %v3017, 5
      %v3020 = vsel %vm335, %v3015, %v3019
      %3029 = vst.msk [vmem:[#allocation3] sm:$0xf] %vm850, %v2922
      %3030 = vst.msk [vmem:[#allocation3 + $0x4] sm:$0xf] %vm850, %v2936
      %3031 = vst.msk [vmem:[#allocation3 + $0x8] sm:$0xf] %vm850, %v2950
      %3032 = vst.msk [vmem:[#allocation3 + $0xc] sm:$0xf] %vm850, %v2964
      %3033 = vst.msk [vmem:[#allocation3 + $0x10] sm:$0xf] %vm850, %v2978
      %3034 = vst.msk [vmem:[#allocation3 + $0x14] sm:$0xf] %vm850, %v2992
      %3035 = vst.msk [vmem:[#allocation3 + $0x18] sm:$0xf] %vm850, %v3006
      %3036 = vst.msk [vmem:[#allocation3 + $0x1c] sm:$0xf] %vm850, %v3020
      %v3037 = vld [vmem:[%s857] sm:$0xe]
      %v3038 = vld [vmem:[%s857 + $0x4] sm:$0x1]
      %v3039 = vld [vmem:[%s857 + $0x8] sm:$0xe]
      %v3040 = vld [vmem:[%s857 + $0xc] sm:$0x1]
      %v3041 = vld [vmem:[%s857 + $0x10] sm:$0xe]
      %v3042 = vld [vmem:[%s857 + $0x14] sm:$0x1]
      %v3043 = vld [vmem:[%s857 + $0x18] sm:$0xe]
      %v3044 = vld [vmem:[%s857 + $0x1c] sm:$0x1]
      %v3045 = vld [vmem:[%s857 + $0x20] sm:$0xe]
      %v3046 = vld [vmem:[%s857 + $0x24] sm:$0x1]
      %v3047 = vld [vmem:[%s857 + $0x28] sm:$0xe]
      %v3048 = vld [vmem:[%s857 + $0x2c] sm:$0x1]
      %v3049 = vld [vmem:[%s857 + $0x30] sm:$0xe]
      %v3050 = vld [vmem:[%s857 + $0x34] sm:$0x1]
      %v3051 = vld [vmem:[%s857 + $0x38] sm:$0xe]
      %v3052 = vld [vmem:[%s857 + $0x3c] sm:$0x1]
      %v3069 = vrot.slane %v3037, 5
      %v3070 = vrot.slane %v3069, 4
      %v3071 = vrot.slane %v3038, 5
      %v3072 = vsel %vm1821, %v3070, %v3071
      %v3073 = vrot.slane %v3039, 5
      %v3074 = vrot.slane %v3073, 4
      %v3075 = vrot.slane %v3040, 5
      %v3076 = vsel %vm1821, %v3074, %v3075
      %v3077 = vrot.slane %v3041, 5
      %v3078 = vrot.slane %v3077, 4
      %v3079 = vrot.slane %v3042, 5
      %v3080 = vsel %vm1821, %v3078, %v3079
      %v3081 = vrot.slane %v3043, 5
      %v3082 = vrot.slane %v3081, 4
      %v3083 = vrot.slane %v3044, 5
      %v3084 = vsel %vm1821, %v3082, %v3083
      %v3085 = vrot.slane %v3045, 5
      %v3086 = vrot.slane %v3085, 4
      %v3087 = vrot.slane %v3046, 5
      %v3088 = vsel %vm1821, %v3086, %v3087
      %v3089 = vrot.slane %v3047, 5
      %v3090 = vrot.slane %v3089, 4
      %v3091 = vrot.slane %v3048, 5
      %v3092 = vsel %vm1821, %v3090, %v3091
      %v3093 = vrot.slane %v3049, 5
      %v3094 = vrot.slane %v3093, 4
      %v3095 = vrot.slane %v3050, 5
      %v3096 = vsel %vm1821, %v3094, %v3095
      %v3097 = vrot.slane %v3051, 5
      %v3098 = vrot.slane %v3097, 4
      %v3099 = vrot.slane %v3052, 5
      %v3100 = vsel %vm1821, %v3098, %v3099
      %3101 = vrot.lane.b32.xlu0 %v3072, 8
      %v3102 = vpop.permute.xlu0 %3101
      %3103 = vrot.lane.b32.xlu0 %v3076, 8
      %v3104 = vpop.permute.xlu0 %3103
      %3105 = vrot.lane.b32.xlu0 %v3080, 8
      %v3106 = vpop.permute.xlu0 %3105
      %3107 = vrot.lane.b32.xlu0 %v3084, 8
      %v3108 = vpop.permute.xlu0 %3107
      %3109 = vrot.lane.b32.xlu0 %v3088, 8
      %v3110 = vpop.permute.xlu0 %3109
      %3111 = vrot.lane.b32.xlu0 %v3092, 8
      %v3112 = vpop.permute.xlu0 %3111
      %3113 = vrot.lane.b32.xlu0 %v3096, 8
      %v3114 = vpop.permute.xlu0 %3113
      %3115 = vrot.lane.b32.xlu0 %v3100, 8
      %v3116 = vpop.permute.xlu0 %3115
      %3125 = vst.msk [vmem:[#allocation3] sm:$0xf] %vm1241, %v3102
      %3126 = vst.msk [vmem:[#allocation3 + $0x4] sm:$0xf] %vm1241, %v3104
      %3127 = vst.msk [vmem:[#allocation3 + $0x8] sm:$0xf] %vm1241, %v3106
      %3128 = vst.msk [vmem:[#allocation3 + $0xc] sm:$0xf] %vm1241, %v3108
      %3129 = vst.msk [vmem:[#allocation3 + $0x10] sm:$0xf] %vm1241, %v3110
      %3130 = vst.msk [vmem:[#allocation3 + $0x14] sm:$0xf] %vm1241, %v3112
      %3131 = vst.msk [vmem:[#allocation3 + $0x18] sm:$0xf] %vm1241, %v3114
      %3132 = vst.msk [vmem:[#allocation3 + $0x1c] sm:$0xf] %vm1241, %v3116
      %v3133 = vld [vmem:[%s2501] sm:$0xf]
      %v3134 = vld [vmem:[%s2501 + $0x4] sm:$0x1]
      %v3135 = vld [vmem:[%s2501 + $0x8] sm:$0xf]
      %v3136 = vld [vmem:[%s2501 + $0xc] sm:$0x1]
      %v3137 = vld [vmem:[%s2501 + $0x10] sm:$0xf]
      %v3138 = vld [vmem:[%s2501 + $0x14] sm:$0x1]
      %v3139 = vld [vmem:[%s2501 + $0x18] sm:$0xf]
      %v3140 = vld [vmem:[%s2501 + $0x1c] sm:$0x1]
      %v3141 = vld [vmem:[%s2501 + $0x20] sm:$0xf]
      %v3142 = vld [vmem:[%s2501 + $0x24] sm:$0x1]
      %v3143 = vld [vmem:[%s2501 + $0x28] sm:$0xf]
      %v3144 = vld [vmem:[%s2501 + $0x2c] sm:$0x1]
      %v3145 = vld [vmem:[%s2501 + $0x30] sm:$0xf]
      %v3146 = vld [vmem:[%s2501 + $0x34] sm:$0x1]
      %v3147 = vld [vmem:[%s2501 + $0x38] sm:$0xf]
      %v3148 = vld [vmem:[%s2501 + $0x3c] sm:$0x1]
      %v3150 = vshrl.u32 %v3133, 16
      %v3152 = vrot.slane %v3150, 4
      %v3153 = vshll.u32 %v3133, 16
      %v3155 = vrot.slane %v3153, 5
      %v3156 = vor.u32 %v3152, %v3155
      %v3157 = vrot.slane %v3156, 4
      %v3159 = vshll.u32 %v3134, 16
      %v3161 = vrot.slane %v3159, 5
      %v3162 = vsel %vm335, %v3157, %v3161
      %v3164 = vshrl.u32 %v3135, 16
      %v3166 = vrot.slane %v3164, 4
      %v3167 = vshll.u32 %v3135, 16
      %v3169 = vrot.slane %v3167, 5
      %v3170 = vor.u32 %v3166, %v3169
      %v3171 = vrot.slane %v3170, 4
      %v3173 = vshll.u32 %v3136, 16
      %v3175 = vrot.slane %v3173, 5
      %v3176 = vsel %vm335, %v3171, %v3175
      %v3178 = vshrl.u32 %v3137, 16
      %v3180 = vrot.slane %v3178, 4
      %v3181 = vshll.u32 %v3137, 16
      %v3183 = vrot.slane %v3181, 5
      %v3184 = vor.u32 %v3180, %v3183
      %v3185 = vrot.slane %v3184, 4
      %v3187 = vshll.u32 %v3138, 16
      %v3189 = vrot.slane %v3187, 5
      %v3190 = vsel %vm335, %v3185, %v3189
      %v3192 = vshrl.u32 %v3139, 16
      %v3194 = vrot.slane %v3192, 4
      %v3195 = vshll.u32 %v3139, 16
      %v3197 = vrot.slane %v3195, 5
      %v3198 = vor.u32 %v3194, %v3197
      %v3199 = vrot.slane %v3198, 4
      %v3201 = vshll.u32 %v3140, 16
      %v3203 = vrot.slane %v3201, 5
      %v3204 = vsel %vm335, %v3199, %v3203
      %v3206 = vshrl.u32 %v3141, 16
      %v3208 = vrot.slane %v3206, 4
      %v3209 = vshll.u32 %v3141, 16
      %v3211 = vrot.slane %v3209, 5
      %v3212 = vor.u32 %v3208, %v3211
      %v3213 = vrot.slane %v3212, 4
      %v3215 = vshll.u32 %v3142, 16
      %v3217 = vrot.slane %v3215, 5
      %v3218 = vsel %vm335, %v3213, %v3217
      %v3220 = vshrl.u32 %v3143, 16
      %v3222 = vrot.slane %v3220, 4
      %v3223 = vshll.u32 %v3143, 16
      %v3225 = vrot.slane %v3223, 5
      %v3226 = vor.u32 %v3222, %v3225
      %v3227 = vrot.slane %v3226, 4
      %v3229 = vshll.u32 %v3144, 16
      %v3231 = vrot.slane %v3229, 5
      %v3232 = vsel %vm335, %v3227, %v3231
      %v3234 = vshrl.u32 %v3145, 16
      %v3236 = vrot.slane %v3234, 4
      %v3237 = vshll.u32 %v3145, 16
      %v3239 = vrot.slane %v3237, 5
      %v3240 = vor.u32 %v3236, %v3239
      %v3241 = vrot.slane %v3240, 4
      %v3243 = vshll.u32 %v3146, 16
      %v3245 = vrot.slane %v3243, 5
      %v3246 = vsel %vm335, %v3241, %v3245
      %v3248 = vshrl.u32 %v3147, 16
      %v3250 = vrot.slane %v3248, 4
      %v3251 = vshll.u32 %v3147, 16
      %v3253 = vrot.slane %v3251, 5
      %v3254 = vor.u32 %v3250, %v3253
      %v3255 = vrot.slane %v3254, 4
      %v3257 = vshll.u32 %v3148, 16
      %v3259 = vrot.slane %v3257, 5
      %v3260 = vsel %vm335, %v3255, %v3259
      %3261 = vrot.lane.b32.xlu0 %v3162, 16
      %v3262 = vpop.permute.xlu0 %3261
      %3263 = vrot.lane.b32.xlu0 %v3176, 16
      %v3264 = vpop.permute.xlu0 %3263
      %3265 = vrot.lane.b32.xlu0 %v3190, 16
      %v3266 = vpop.permute.xlu0 %3265
      %3267 = vrot.lane.b32.xlu0 %v3204, 16
      %v3268 = vpop.permute.xlu0 %3267
      %3269 = vrot.lane.b32.xlu0 %v3218, 16
      %v3270 = vpop.permute.xlu0 %3269
      %3271 = vrot.lane.b32.xlu0 %v3232, 16
      %v3272 = vpop.permute.xlu0 %3271
      %3273 = vrot.lane.b32.xlu0 %v3246, 16
      %v3274 = vpop.permute.xlu0 %3273
      %3275 = vrot.lane.b32.xlu0 %v3260, 16
      %v3276 = vpop.permute.xlu0 %3275
      %3285 = vst.msk [vmem:[#allocation3] sm:$0xf] %vm1290, %v3262
      %3286 = vst.msk [vmem:[#allocation3 + $0x4] sm:$0xf] %vm1290, %v3264
      %3287 = vst.msk [vmem:[#allocation3 + $0x8] sm:$0xf] %vm1290, %v3266
      %3288 = vst.msk [vmem:[#allocation3 + $0xc] sm:$0xf] %vm1290, %v3268
      %3289 = vst.msk [vmem:[#allocation3 + $0x10] sm:$0xf] %vm1290, %v3270
      %3290 = vst.msk [vmem:[#allocation3 + $0x14] sm:$0xf] %vm1290, %v3272
      %3291 = vst.msk [vmem:[#allocation3 + $0x18] sm:$0xf] %vm1290, %v3274
      %3292 = vst.msk [vmem:[#allocation3 + $0x1c] sm:$0xf] %vm1290, %v3276
      %v3293 = vld [vmem:[%s2501] sm:$0xe]
      %v3294 = vld [vmem:[%s2501 + $0x4] sm:$0x1]
      %v3295 = vld [vmem:[%s2501 + $0x8] sm:$0xe]
      %v3296 = vld [vmem:[%s2501 + $0xc] sm:$0x1]
      %v3297 = vld [vmem:[%s2501 + $0x10] sm:$0xe]
      %v3298 = vld [vmem:[%s2501 + $0x14] sm:$0x1]
      %v3299 = vld [vmem:[%s2501 + $0x18] sm:$0xe]
      %v3300 = vld [vmem:[%s2501 + $0x1c] sm:$0x1]
      %v3301 = vld [vmem:[%s2501 + $0x20] sm:$0xe]
      %v3302 = vld [vmem:[%s2501 + $0x24] sm:$0x1]
      %v3303 = vld [vmem:[%s2501 + $0x28] sm:$0xe]
      %v3304 = vld [vmem:[%s2501 + $0x2c] sm:$0x1]
      %v3305 = vld [vmem:[%s2501 + $0x30] sm:$0xe]
      %v3306 = vld [vmem:[%s2501 + $0x34] sm:$0x1]
      %v3307 = vld [vmem:[%s2501 + $0x38] sm:$0xe]
      %v3308 = vld [vmem:[%s2501 + $0x3c] sm:$0x1]
      %v3325 = vrot.slane %v3293, 5
      %v3326 = vrot.slane %v3325, 4
      %v3327 = vrot.slane %v3294, 5
      %v3328 = vsel %vm1821, %v3326, %v3327
      %v3329 = vrot.slane %v3295, 5
      %v3330 = vrot.slane %v3329, 4
      %v3331 = vrot.slane %v3296, 5
      %v3332 = vsel %vm1821, %v3330, %v3331
      %v3333 = vrot.slane %v3297, 5
      %v3334 = vrot.slane %v3333, 4
      %v3335 = vrot.slane %v3298, 5
      %v3336 = vsel %vm1821, %v3334, %v3335
      %v3337 = vrot.slane %v3299, 5
      %v3338 = vrot.slane %v3337, 4
      %v3339 = vrot.slane %v3300, 5
      %v3340 = vsel %vm1821, %v3338, %v3339
      %v3341 = vrot.slane %v3301, 5
      %v3342 = vrot.slane %v3341, 4
      %v3343 = vrot.slane %v3302, 5
      %v3344 = vsel %vm1821, %v3342, %v3343
      %v3345 = vrot.slane %v3303, 5
      %v3346 = vrot.slane %v3345, 4
      %v3347 = vrot.slane %v3304, 5
      %v3348 = vsel %vm1821, %v3346, %v3347
      %v3349 = vrot.slane %v3305, 5
      %v3350 = vrot.slane %v3349, 4
      %v3351 = vrot.slane %v3306, 5
      %v3352 = vsel %vm1821, %v3350, %v3351
      %v3353 = vrot.slane %v3307, 5
      %v3354 = vrot.slane %v3353, 4
      %v3355 = vrot.slane %v3308, 5
      %v3356 = vsel %vm1821, %v3354, %v3355
      %3357 = vrot.lane.b32.xlu0 %v3328, 24
      %v3358 = vpop.permute.xlu0 %3357
      %3359 = vrot.lane.b32.xlu0 %v3332, 24
      %v3360 = vpop.permute.xlu0 %3359
      %3361 = vrot.lane.b32.xlu0 %v3336, 24
      %v3362 = vpop.permute.xlu0 %3361
      %3363 = vrot.lane.b32.xlu0 %v3340, 24
      %v3364 = vpop.permute.xlu0 %3363
      %3365 = vrot.lane.b32.xlu0 %v3344, 24
      %v3366 = vpop.permute.xlu0 %3365
      %3367 = vrot.lane.b32.xlu0 %v3348, 24
      %v3368 = vpop.permute.xlu0 %3367
      %3369 = vrot.lane.b32.xlu0 %v3352, 24
      %v3370 = vpop.permute.xlu0 %3369
      %3371 = vrot.lane.b32.xlu0 %v3356, 24
      %v3372 = vpop.permute.xlu0 %3371
      %3381 = vst.msk [vmem:[#allocation3] sm:$0xf] %vm1451, %v3358
      %3382 = vst.msk [vmem:[#allocation3 + $0x4] sm:$0xf] %vm1451, %v3360
      %3383 = vst.msk [vmem:[#allocation3 + $0x8] sm:$0xf] %vm1451, %v3362
      %3384 = vst.msk [vmem:[#allocation3 + $0xc] sm:$0xf] %vm1451, %v3364
      %3385 = vst.msk [vmem:[#allocation3 + $0x10] sm:$0xf] %vm1451, %v3366
      %3386 = vst.msk [vmem:[#allocation3 + $0x14] sm:$0xf] %vm1451, %v3368
      %3387 = vst.msk [vmem:[#allocation3 + $0x18] sm:$0xf] %vm1451, %v3370
      %3388 = vst.msk [vmem:[#allocation3 + $0x1c] sm:$0xf] %vm1451, %v3372
      %v3389 = vld [vmem:[#allocation3] sm:$0xf]
      %v3390 = vld [vmem:[#allocation3 + $0x4] sm:$0xf]
      %v3391 = vld [vmem:[#allocation3 + $0x8] sm:$0xf]
      %v3392 = vld [vmem:[#allocation3 + $0xc] sm:$0xf]
      %v3393 = vld [vmem:[#allocation3 + $0x10] sm:$0xf]
      %v3394 = vld [vmem:[#allocation3 + $0x14] sm:$0xf]
      %v3395 = vld [vmem:[#allocation3 + $0x18] sm:$0xf]
      %v3396 = vld [vmem:[#allocation3 + $0x1c] sm:$0xf]
      %s3397 = scalar_lea.vmem %s2, 48
      %v3398 = vld [vmem:[%s3397] sm:$0xf]
      %v3399 = vld [vmem:[%s3397 + $0x4] sm:$0xf]
      %v3400 = vld [vmem:[%s3397 + $0x8] sm:$0xf]
      %v3401 = vld [vmem:[%s3397 + $0xc] sm:$0xf]
      %v3410 = vunpack.c.l.b16 %v3389
      %v3411 = vunpack.c.l.b16 %v3390
      %v3412 = vunpack.c.l.b16 %v3391
      %v3413 = vunpack.c.l.b16 %v3392
      %v3414 = vunpack.c.l.b16 %v3393
      %v3415 = vunpack.c.l.b16 %v3394
      %v3416 = vunpack.c.l.b16 %v3395
      %v3417 = vunpack.c.l.b16 %v3396
      %v3418 = vpack.c.b16 %v3411, %v3410
      %v3419 = vpack.c.b16 %v3413, %v3412
      %v3420 = vpack.c.b16 %v3415, %v3414
      %v3421 = vpack.c.b16 %v3417, %v3416
      %v3426 = vunpack.c.l.b16 %v3398
      %v3427 = vunpack.c.l.b16 %v3399
      %v3428 = vunpack.c.l.b16 %v3400
      %v3429 = vunpack.c.l.b16 %v3401
      %v3430 = vpack.c.b16 %v3427, %v3426
      %v3431 = vpack.c.b16 %v3429, %v3428
      %v3435 = vsel %vm1504, %v3418, 0
      %v3438 = vsel %vm1504, %v3419, 0
      %v3441 = vsel %vm1504, %v3420, 0
      %v3444 = vsel %vm1504, %v3421, 0
      %3446 = vmatprep.subr.bf16.mxu0 0
      %3447 = vmatpush1.bf16.msra.mxu0 0
      %3448 = vmatprep.subr.bf16.mxu0 0
      %3449 = vmatpush1.bf16.msra.mxu0 0
      %3450 = vmatprep.subr.bf16.mxu0 0
      %3451 = vmatpush1.bf16.msra.mxu0 0
      %3452 = vmatprep.subr.bf16.mxu0 0
      %3453 = vmatpush1.bf16.msra.mxu0 0
      %3454 = vmatprep.subr.bf16.mxu0 0
      %3455 = vmatpush1.bf16.msra.mxu0 0
      %3456 = vmatprep.subr.bf16.mxu0 0
      %3457 = vmatpush1.bf16.msra.mxu0 0
      %3458 = vmatprep.subr.bf16.mxu0 0
      %3459 = vmatpush1.bf16.msra.mxu0 %v3431
      %3460 = vmatprep.subr.bf16.mxu0 0
      %3461 = vmatpush1.bf16.msra.mxu0 %v3430
      %3462 = vmatprep.subr.bf16.mxu0 0
      %3463 = vmatpush2.bf16.msra.mxu0 0
      %3464 = vmatprep.subr.bf16.mxu0 0
      %3465 = vmatpush2.bf16.msra.mxu0 0
      %3466 = vmatprep.subr.bf16.mxu0 0
      %3467 = vmatpush2.bf16.msra.mxu0 0
      %3468 = vmatprep.subr.bf16.mxu0 0
      %3469 = vmatpush2.bf16.msra.mxu0 0
      %3470 = vmatprep.subr.bf16.mxu0 0
      %3471 = vmatpush2.bf16.msra.mxu0 0
      %3472 = vmatprep.subr.bf16.mxu0 0
      %3473 = vmatpush2.bf16.msra.mxu0 0
      %3474 = vmatprep.subr.bf16.mxu0 0
      %3475 = vmatpush2.bf16.msra.mxu0 0
      %3476 = vmatprep.subr.bf16.mxu0 0
      %3477 = vmatpush2.bf16.msra.mxu0 0
      %3478 = vmatprep.mubr.bf16.mxu0 0
      %3479 = vmatmul.mubr.bf16.gmra.mxu0 %v3435
      %v3480 = vpop.f32.mrf.mxu0
      %v3481 = vadd.f32 0.0, %v3480
      %v3482 = vpop.f32.mrf.mxu0
      %v3483 = vpop.f32.mrf.mxu0
      %v3484 = vadd.f32 0.0, %v3483
      %v3485 = vpop.f32.mrf.mxu0
      %3486 = vmatprep.mubr.bf16.mxu0 0
      %3487 = vmatmul.mubr.bf16.gmra.mxu0 %v3438
      %v3488 = vpop.f32.mrf.mxu0
      %v3489 = vadd.f32 0.0, %v3488
      %v3490 = vpop.f32.mrf.mxu0
      %v3491 = vpop.f32.mrf.mxu0
      %v3492 = vadd.f32 0.0, %v3491
      %v3493 = vpop.f32.mrf.mxu0
      %3494 = vmatprep.mubr.bf16.mxu0 0
      %3495 = vmatmul.mubr.bf16.gmra.mxu0 %v3441
      %v3496 = vpop.f32.mrf.mxu0
      %v3497 = vadd.f32 0.0, %v3496
      %v3498 = vpop.f32.mrf.mxu0
      %v3499 = vpop.f32.mrf.mxu0
      %v3500 = vadd.f32 0.0, %v3499
      %v3501 = vpop.f32.mrf.mxu0
      %3502 = vmatprep.mubr.bf16.mxu0 0
      %3503 = vmatmul.mubr.bf16.gmra.mxu0 %v3444
      %v3504 = vpop.f32.mrf.mxu0
      %v3505 = vadd.f32 0.0, %v3504
      %v3506 = vpop.f32.mrf.mxu0
      %v3507 = vpop.f32.mrf.mxu0
      %v3508 = vadd.f32 0.0, %v3507
      %v3509 = vpop.f32.mrf.mxu0
      %3510 = vdwg.mxu0
      %s3511 = scalar_lea.vmem %s204, 192
      %3512 = vst.msk [vmem:[%s3511] sm:$0xff] %vm1582, %v3481
      %3513 = vst.msk [vmem:[%s3511 + $0x8] sm:$0xff] %vm1582, %v3484
      %3514 = vst.msk [vmem:[%s3511 + $0x10] sm:$0xff] %vm1582, %v3489
      %3515 = vst.msk [vmem:[%s3511 + $0x18] sm:$0xff] %vm1582, %v3492
      %3516 = vst.msk [vmem:[%s3511 + $0x20] sm:$0xff] %vm1582, %v3497
      %3517 = vst.msk [vmem:[%s3511 + $0x28] sm:$0xff] %vm1582, %v3500
      %3518 = vst.msk [vmem:[%s3511 + $0x30] sm:$0xff] %vm1582, %v3505
      %3519 = vst.msk [vmem:[%s3511 + $0x38] sm:$0xff] %vm1582, %v3508
      %v3520 = vsel %vm1582, %v3481, 0.0
      %v3521 = vsel %vm1582, %v3484, 0.0
      %v3522 = vadd.f32 %v3520, %v3521
      %v3523 = vsel %vm1582, %v3489, 0.0
      %v3524 = vadd.f32 %v3522, %v3523
      %v3525 = vsel %vm1582, %v3492, 0.0
      %v3526 = vadd.f32 %v3524, %v3525
      %v3527 = vsel %vm1582, %v3497, 0.0
      %v3528 = vadd.f32 %v3526, %v3527
      %v3529 = vsel %vm1582, %v3500, 0.0
      %v3530 = vadd.f32 %v3528, %v3529
      %v3531 = vsel %vm1582, %v3505, 0.0
      %v3532 = vadd.f32 %v3530, %v3531
      %v3533 = vsel %vm1582, %v3508, 0.0
      %v3534 = vadd.f32 %v3532, %v3533
      %v3535 = vrot.slane %v3534, 4
      %v3536 = vadd.f32 %v3534, %v3535
      %v3537 = vrot.slane %v3536, 2
      %v3538 = vadd.f32 %v3536, %v3537
      %v3539 = vrot.slane %v3538, 1
      %v3540 = vadd.f32 %v3538, %v3539
      %v3541 = vadd.f32 %v2862, %v3540
      %v3542 = vmul.f32 %v3481, %v3481
      %v3543 = vmul.f32 %v3484, %v3484
      %v3544 = vmul.f32 %v3489, %v3489
      %v3545 = vmul.f32 %v3492, %v3492
      %v3546 = vmul.f32 %v3497, %v3497
      %v3547 = vmul.f32 %v3500, %v3500
      %v3548 = vmul.f32 %v3505, %v3505
      %v3549 = vmul.f32 %v3508, %v3508
      %v3550 = vsel %vm1582, %v3542, 0.0
      %v3551 = vsel %vm1582, %v3543, 0.0
      %v3552 = vadd.f32 %v3550, %v3551
      %v3553 = vsel %vm1582, %v3544, 0.0
      %v3554 = vadd.f32 %v3552, %v3553
      %v3555 = vsel %vm1582, %v3545, 0.0
      %v3556 = vadd.f32 %v3554, %v3555
      %v3557 = vsel %vm1582, %v3546, 0.0
      %v3558 = vadd.f32 %v3556, %v3557
      %v3559 = vsel %vm1582, %v3547, 0.0
      %v3560 = vadd.f32 %v3558, %v3559
      %v3561 = vsel %vm1582, %v3548, 0.0
      %v3562 = vadd.f32 %v3560, %v3561
      %v3563 = vsel %vm1582, %v3549, 0.0
      %v3564 = vadd.f32 %v3562, %v3563
      %v3565 = vrot.slane %v3564, 4
      %v3566 = vadd.f32 %v3564, %v3565
      %v3567 = vrot.slane %v3566, 2
      %v3568 = vadd.f32 %v3566, %v3567
      %v3569 = vrot.slane %v3568, 1
      %v3570 = vadd.f32 %v3568, %v3569
      %v3571 = vadd.f32 %v2892, %v3570
      %vm3572 = vcmask 24576
      %3573 = vst.msk [vmem:[%s208] sm:$0x1] %vm3572, %v3541
      %3574 = vst.msk [vmem:[%s208 + $0x1] sm:$0x1] %vm3572, %v3571
      %p3575 = scmp.lt.s32.totalorder %s16, 1
      %s3576 = scalar_select %p3575, %s16, 1
      %s3577 = smul.addr %s3576, 32
      %s3578 = smul.addr %s3577, 8
      %s3579 = scalar_lea.vmem %s3, %s3578
      %p3580 = scmp.lt.s32.totalorder %s16, 1
      %s3581 = scalar_select %p3580, %s16, 1
      %s3582 = smul.addr %s3581, 2
      %s3583 = scalar_lea.vmem %s4, %s3582
      // Predicated region
      $region33: #{unet_innermost_forward.2} parent=31 // pred_check
        %p3584 = pneg %p102
      $region34: #{unet_innermost_forward.2} parent=31 // pred_check_branch
        %3586 = sbr.rel (%p3584) target = $region36
      $region35: #{unet_innermost_forward.2} parent=31 // pred_region
        _
      $region36: #{unet_innermost_forward.2} parent=31 // pred_fallthru
        _
      // Predicated region
      $region37: #{unet_innermost_forward.2} parent=31 // pred_check
        %p3587 = pneg %p128
      $region38: #{unet_innermost_forward.2} parent=31 // pred_check_branch
        %3589 = sbr.rel (%p3587) target = $region40
      $region39: #{unet_innermost_forward.2} parent=31 // pred_region
        _
      $region40: #{unet_innermost_forward.2} parent=31 // pred_fallthru
        _
    $region32: #{unet_innermost_forward.2} parent=5 // pred_fallthru
      _
    %p3590 = scmp.le.s32.totalorder 2, %s11
    // Predicated region
    $region41: #{unet_innermost_forward.2} parent=5 // pred_check
      %p3591 = pneg %p3590
    $region42: #{unet_innermost_forward.2} parent=5 // pred_check_branch
      %3593 = sbr.rel (%p3591) target = $region44
    $region43: #{unet_innermost_forward.2} parent=5 // pred_region
      %s3594 = ssub.s32 %s11, 2
      // Predicated region
      $region45: #{unet_innermost_forward.2} parent=43 // pred_check
        %p3595 = pneg %p108
      $region46: #{unet_innermost_forward.2} parent=43 // pred_check_branch
        %3597 = sbr.rel (%p3595) target = $region48
      $region47: #{unet_innermost_forward.2} parent=43 // pred_region
        %p3598 = scmp.lt.s32.totalorder %s17, 1
        %s3599 = scalar_select %p3598, %s17, 1
        %s3600 = smul.addr %s3599, 32
        %s3601 = smul.addr %s3600, 8
        %s3602 = scalar_lea.vmem %s3, %s3601
      $region48: #{unet_innermost_forward.2} parent=43 // pred_fallthru
        _
      // Predicated region
      $region49: #{unet_innermost_forward.2} parent=43 // pred_check
        %p3603 = pneg %p134
      $region50: #{unet_innermost_forward.2} parent=43 // pred_check_branch
        %3605 = sbr.rel (%p3603) target = $region52
      $region51: #{unet_innermost_forward.2} parent=43 // pred_region
        %p3606 = scmp.lt.s32.totalorder %s17, 1
        %s3607 = scalar_select %p3606, %s17, 1
        %s3608 = smul.addr %s3607, 2
        %s3609 = scalar_lea.vmem %s4, %s3608
      $region52: #{unet_innermost_forward.2} parent=43 // pred_fallthru
        _
    $region44: #{unet_innermost_forward.2} parent=5 // pred_fallthru
      _
  $region6: #{unet_innermost_forward.2} parent=0 // loop_footer
    %s15 = sadd.s32 1, %s11
  $region7: #{unet_innermost_forward.2} parent=0 // loop_footer_branch
    %10 = sbr.rel target = $region3
  $region8: #{unet_innermost_forward.2} parent=0 // loop_exit
    _

</llo_original>
